<compile_context>
chip_gen: v7x
topology: tpu7x:2x2x1
jax: 0.10.0
libtpu: 0.0.40
codegen_flags: <defaults>
</compile_context>

<pallas_src>
import functools

import jax
import jax.numpy as jnp
from jax.experimental import pallas as pl
from jax.experimental.pallas import tpu as pltpu


# ----------------------------------------------------------------------------
# Exact (erf-based) GELU via the XLA/Eigen f32 erf rational approximation.
# Exact divide for the denominator (numerics); EUP reciprocal is reserved for softmax.
# ----------------------------------------------------------------------------
def _erf_f32(x):
    x = jnp.clip(x, -4.0, 4.0)
    x2 = x * x
    a = jnp.float32(-2.72614225801306e-10)
    a = a * x2 + jnp.float32(2.77068142495902e-08)
    a = a * x2 + jnp.float32(-2.10102402082508e-06)
    a = a * x2 + jnp.float32(-5.69250639462346e-05)
    a = a * x2 + jnp.float32(-7.34990630326855e-04)
    a = a * x2 + jnp.float32(-2.95459980854025e-03)
    a = a * x2 + jnp.float32(-1.60960333262415e-02)
    a = a * x
    b = jnp.float32(-1.45660718464996e-05)
    b = b * x2 + jnp.float32(-2.13374055278905e-04)
    b = b * x2 + jnp.float32(-1.68282697438203e-03)
    b = b * x2 + jnp.float32(-7.37332916720468e-03)
    b = b * x2 + jnp.float32(-1.42647390514189e-02)
    return a / b  # b is bounded away from 0 on [-4, 4]


def _gelu_exact(x):
    return 0.5 * x * (1.0 + _erf_f32(x * jnp.float32(0.7071067811865476)))


# ----------------------------------------------------------------------------
# Kernel: one (batch, query-tile) block per grid step.
# ----------------------------------------------------------------------------
def attention_block_kernel(
    alphas_ref,                 # SMEM (3,): [alpha_k, alpha_q, alpha_2]  (DyT scales)
    xk_ref, xq_ref,             # (1, Nk, Ck) f32, (1, TQ, Cq) f32
    gk_ref, gq_ref, g2_ref,     # (1, Ck), (1, Cq), (1, D)   DyT per-channel gammas (f32)
    wq_ref, wk_ref, wv_ref,     # bf16 (H, Cq, hd), (H, Ck, hd), (H, Ck, hd) (scale in wq)
    wproj_ref, bproj_ref,       # bf16 (H, hd, D), f32 (1, D)
    w1_ref, b1_ref,             # bf16 (D, Hm), f32 (1, Hm)
    w2_ref, b2_ref,             # bf16 (Hm, D), f32 (1, D)
    out_ref,                    # (1, TQ, D) f32
    kb_ref, vb_ref,             # VMEM scratch bf16 (H, Nk, hd) — persistent K/V cache
    *, num_heads,
):
    alpha_k = alphas_ref[0]
    alpha_q = alphas_ref[1]
    alpha_2 = alphas_ref[2]

    unroll_heads = num_heads <= 8

    # ---- K/V: DyT norm + projections, only on the first query tile of each batch ----
    @pl.when(pl.program_id(1) == 0)
    def _():
        xk_n = (gk_ref[...] * jnp.tanh(alpha_k * xk_ref[0])).astype(jnp.bfloat16)

        def project_kv(h):
            kb_ref[h] = jnp.dot(
                xk_n, wk_ref[h], preferred_element_type=jnp.float32).astype(jnp.bfloat16)
            vb_ref[h] = jnp.dot(
                xk_n, wv_ref[h], preferred_element_type=jnp.float32).astype(jnp.bfloat16)

        if unroll_heads:
            for h in range(num_heads):
                project_kv(h)
        else:
            @pl.loop(0, num_heads)
            def _(h):
                project_kv(h)

    # ---- query tile: DyT norm ----
    xq_n = (gq_ref[...] * jnp.tanh(alpha_q * xq_ref[0])).astype(jnp.bfloat16)
    tq = xq_n.shape[0]
    d = wproj_ref.shape[2]

    # ---- per-head attention, fused with the output projection (head-major refs) ----
    def head_attn(h, acc):
        qh = jnp.dot(xq_n, wq_ref[h],
                     preferred_element_type=jnp.float32).astype(jnp.bfloat16)   # (TQ, hd)
        s = jax.lax.dot_general(qh, kb_ref[h], (((1,), (1,)), ((), ())),
                                preferred_element_type=jnp.float32)             # (TQ, Nk)
        s = s - jnp.max(s, axis=-1, keepdims=True)
        p = jnp.exp(s)                                                          # unnormalized
        l = jnp.sum(p, axis=-1, keepdims=True)                                  # (TQ, 1)
        o = jnp.dot(p.astype(jnp.bfloat16), vb_ref[h],
                    preferred_element_type=jnp.float32)                         # (TQ, hd)
        o = (o * pl.reciprocal(l, approx=True)).astype(jnp.bfloat16)
        return acc + jnp.dot(o, wproj_ref[h], preferred_element_type=jnp.float32)

    acc0 = jnp.zeros((tq, d), jnp.float32)
    if unroll_heads:
        acc = acc0
        for h in range(num_heads):
            acc = head_attn(h, acc)
    else:
        acc = jax.lax.fori_loop(0, num_heads, head_attn, acc0)

    x = acc + bproj_ref[...]                                                    # (TQ, D)

    # ---- norm2 + MLP (Linear -> exact GELU -> Linear) + residual ----
    xn = (g2_ref[...] * jnp.tanh(alpha_2 * x)).astype(jnp.bfloat16)
    h1 = jnp.dot(xn, w1_ref[...], preferred_element_type=jnp.float32) + b1_ref[...]
    h1 = _gelu_exact(h1).astype(jnp.bfloat16)
    h2 = jnp.dot(h1, w2_ref[...], preferred_element_type=jnp.float32) + b2_ref[...]

    out_ref[0] = x + h2


# ----------------------------------------------------------------------------
# Wrapper
# ----------------------------------------------------------------------------
def _choose_q_tiling(nq, max_tile=512):
    """Return (TQ, Nq_padded). TQ divides Nq_padded and satisfies the (8,128) rule.

    Prefers 256-multiples (v6e/v7x MXU), then 128, then 8. If Nq has no aligned
    divisor <= max_tile (e.g. prime), the query axis is padded instead of silently
    falling back to a huge tile.
    """
    if nq <= max_tile:
        return nq, nq
    for align in (256, 128, 8):
        if max_tile < align:
            continue
        hi = max_tile - max_tile % align
        for t in range(hi, align - 1, -align):
            if nq % t == 0:
                return t, nq
    t = max(8, max_tile - max_tile % 8)
    return t, -(-nq // t) * t


def attention_block(xk, xq, params, *, num_heads, max_q_tile=512):
    B, Nk, Ck = xk.shape
    _, Nq, Cq = xq.shape
    D = params["wq"].shape[1]
    hidden = params["w1"].shape[1]
    hd = D // num_heads
    scale = float(hd) ** -0.5

    TQ, Nq_pad = _choose_q_tiling(Nq, max_q_tile)
    xq_in = xq if Nq_pad == Nq else jnp.pad(xq, ((0, 0), (0, Nq_pad - Nq), (0, 0)))
    grid = (B, Nq_pad // TQ)

    # ---- host-side weight prep: head-major bf16 layouts, qk scale folded into wq ----
    def head_major(w):  # (C, D) -> (H, C, hd)
        return jnp.transpose(w.reshape(w.shape[0], num_heads, hd), (1, 0, 2))

    wq = head_major(params["wq"] * scale).astype(jnp.bfloat16)     # (H, Cq, hd)
    wk = head_major(params["wkv"][:, :D]).astype(jnp.bfloat16)     # (H, Ck, hd)
    wv = head_major(params["wkv"][:, D:]).astype(jnp.bfloat16)     # (H, Ck, hd)
    wproj = params["wproj"].reshape(num_heads, hd, D).astype(jnp.bfloat16)
    w1 = params["w1"].astype(jnp.bfloat16)
    w2 = params["w2"].astype(jnp.bfloat16)

    kernel = functools.partial(attention_block_kernel, num_heads=num_heads)

    def build_and_run(single_buffer_weights):
        def invariant_spec(shape):  # grid-invariant operand
            nd = len(shape)
            idx = lambda b, qi, _nd=nd: (0,) * _nd
            if single_buffer_weights:
                try:
                    return pl.BlockSpec(shape, idx, pipeline_mode=pl.Buffered(1))
                except (TypeError, AttributeError):
                    pass
            return pl.BlockSpec(shape, idx)

        in_specs = [
            pl.BlockSpec(memory_space=pltpu.MemorySpace.SMEM),        # alphas (scalars)
            pl.BlockSpec((1, Nk, Ck), lambda b, qi: (b, 0, 0)),       # xk (fetched once per b)
            pl.BlockSpec((1, TQ, Cq), lambda b, qi: (b, qi, 0)),      # xq query tile
            invariant_spec((1, Ck)), invariant_spec((1, Cq)), invariant_spec((1, D)),
            invariant_spec((num_heads, Cq, hd)),                      # wq
            invariant_spec((num_heads, Ck, hd)),                      # wk
            invariant_spec((num_heads, Ck, hd)),                      # wv
            invariant_spec((num_heads, hd, D)), invariant_spec((1, D)),
            invariant_spec((D, hidden)), invariant_spec((1, hidden)),
            invariant_spec((hidden, D)), invariant_spec((1, D)),
        ]
        out_specs = pl.BlockSpec((1, TQ, D), lambda b, qi: (b, qi, 0))

        # ---- VMEM budget: single-buffered weights, double-buffered streamed blocks ----
        BF16, F32 = 2, 4
        wmul = 1 if single_buffer_weights else 2
        weight_bytes = wmul * BF16 * (Cq * D + 2 * Ck * D + D * D + 2 * D * hidden)
        small_bytes = wmul * F32 * (Ck + Cq + 3 * D + hidden + 8)
        stream_bytes = 2 * F32 * (Nk * Ck + TQ * Cq + TQ * D)         # xk, xq, out
        cache_bytes = 2 * BF16 * (D * Nk)                              # persistent K/V
        work_bytes = (F32 * (Nk * Ck + TQ * Nk + 2 * TQ * D + 2 * TQ * hidden)
                      + BF16 * (Nk * Ck + TQ * Cq + TQ * D + TQ * hidden))
        need = weight_bytes + small_bytes + stream_bytes + cache_bytes + work_bytes
        vmem_limit = int(min(max(need + (16 << 20), 32 << 20), 56 << 20))

        return pl.pallas_call(
            kernel,
            out_shape=jax.ShapeDtypeStruct((B, Nq_pad, D), jnp.float32),
            grid=grid,
            in_specs=in_specs,
            out_specs=out_specs,
            scratch_shapes=[pltpu.VMEM((num_heads, Nk, hd), jnp.bfloat16),
                            pltpu.VMEM((num_heads, Nk, hd), jnp.bfloat16)],
            compiler_params=pltpu.CompilerParams(
                # qi must iterate sequentially (K/V cache is keyed on qi == 0);
                # the batch axis shards across cores (v7x megacore).
                dimension_semantics=("parallel", "arbitrary"),
                vmem_limit_bytes=vmem_limit),
        )(params["alphas"], xk, xq_in,
          params["gamma_k"], params["gamma_q"], params["gamma2"],
          wq, wk, wv, wproj, params["bproj"],
          w1, params["b1"], w2, params["b2"])

    try:
        out = build_and_run(True)
    except Exception:
        # Fallback: some JAX versions may reject Buffered(1); run with default buffering.
        out = build_and_run(False)

    return out[:, :Nq, :] if Nq_pad != Nq else out


# ----------------------------------------------------------------------------
# Pure-JAX f32 reference (mirrors the PyTorch forward exactly) for a sanity check.
# ----------------------------------------------------------------------------
def attention_block_ref(xk, xq, p, *, num_heads):
    D = p["wq"].shape[1]
    hd = D // num_heads
    scale = float(hd) ** -0.5
    xkn = p["gamma_k"][0] * jnp.tanh(p["alphas"][0] * xk)
    xqn = p["gamma_q"][0] * jnp.tanh(p["alphas"][1] * xq)
    q = xqn @ p["wq"]                               # (B, Nq, D)
    kv = xkn @ p["wkv"]                             # (B, Nk, 2D)
    k, v = kv[..., :D], kv[..., D:]
    B, Nq, _ = q.shape
    qh = q.reshape(B, Nq, num_heads, hd).transpose(0, 2, 1, 3)
    kh = k.reshape(B, -1, num_heads, hd).transpose(0, 2, 1, 3)
    vh = v.reshape(B, -1, num_heads, hd).transpose(0, 2, 1, 3)
    attn = jnp.einsum("bhqd,bhkd->bhqk", qh, kh) * scale
    attn = jax.nn.softmax(attn, axis=-1)
    o = jnp.einsum("bhqk,bhkd->bhqd", attn, vh).transpose(0, 2, 1, 3).reshape(B, Nq, D)
    x = o @ p["wproj"] + p["bproj"][0]
    xn = p["gamma2"][0] * jnp.tanh(p["alphas"][2] * x)
    h = jax.nn.gelu(xn @ p["w1"] + p["b1"][0], approximate=False)
    return x + (h @ p["w2"] + p["b2"][0])


if __name__ == "__main__":
    # Small shapes consistent with the module's forward signature.
    B, Nk, Nq = 2, 8, 8
    in_dim_k, in_dim_q = 16, 16
    out_dim, num_heads = 32, 4
    mlp_ratio = 2.0
    hidden = int(out_dim * mlp_ratio)

    key = jax.random.PRNGKey(0)
    ks = jax.random.split(key, 10)

    xk = jax.random.normal(ks[0], (B, Nk, in_dim_k), jnp.float32)
    xq = jax.random.normal(ks[1], (B, Nq, in_dim_q), jnp.float32)

    def w(k, shape, scl=0.05):
        return (jax.random.normal(k, shape) * scl).astype(jnp.float32)

    params = dict(
        # DyT defaults: alpha=0.5, gamma=1.0  (order: [alpha_k, alpha_q, alpha_2])
        alphas=jnp.array([0.5, 0.5, 0.5], jnp.float32),
        gamma_k=jnp.ones((1, in_dim_k), jnp.float32),
        gamma_q=jnp.ones((1, in_dim_q), jnp.float32),
        gamma2=jnp.ones((1, out_dim), jnp.float32),
        # Linear weights stored as (in_features, out_features) == torch weight.T
        wq=w(ks[2], (in_dim_q, out_dim)),
        wkv=w(ks[3], (in_dim_k, 2 * out_dim)),
        wproj=w(ks[4], (out_dim, out_dim)),
        bproj=w(ks[5], (1, out_dim)),
        w1=w(ks[6], (out_dim, hidden)),
        b1=w(ks[7], (1, hidden)),
        w2=w(ks[8], (hidden, out_dim)),
        b2=w(ks[9], (1, out_dim)),
    )

    out = attention_block(xk, xq, params, num_heads=num_heads)
    out = jax.block_until_ready(out)

    ref = attention_block_ref(xk, xq, params, num_heads=num_heads)
    assert out.shape == (B, Nq, out_dim)
    # bf16 matmul operands + approx EUP reciprocal for softmax => loosened tolerance.
    assert bool(jnp.allclose(out, ref, rtol=5e-2, atol=1e-2)), "mismatch vs reference"

    print("KERNEL_OK")
</pallas_src>

<mosaic_0001>
module attributes {stable_mosaic.version = 11 : i64} {
  func.func @attention_block_kernel(%arg0: i32, %arg1: i32, %arg2: memref<3xf32, #tpu.memory_space<smem>>, %arg3: memref<1x8x16xf32, #tpu.memory_space<vmem>>, %arg4: memref<1x8x16xf32, #tpu.memory_space<vmem>>, %arg5: memref<1x16xf32, #tpu.memory_space<vmem>>, %arg6: memref<1x16xf32, #tpu.memory_space<vmem>>, %arg7: memref<1x32xf32, #tpu.memory_space<vmem>>, %arg8: memref<4x16x8xbf16, #tpu.memory_space<vmem>>, %arg9: memref<4x16x8xbf16, #tpu.memory_space<vmem>>, %arg10: memref<4x16x8xbf16, #tpu.memory_space<vmem>>, %arg11: memref<4x8x32xbf16, #tpu.memory_space<vmem>>, %arg12: memref<1x32xf32, #tpu.memory_space<vmem>>, %arg13: memref<32x64xbf16, #tpu.memory_space<vmem>>, %arg14: memref<1x64xf32, #tpu.memory_space<vmem>>, %arg15: memref<64x32xbf16, #tpu.memory_space<vmem>>, %arg16: memref<1x32xf32, #tpu.memory_space<vmem>>, %arg17: memref<1x8x32xf32, #tpu.memory_space<vmem>>, %arg18: memref<4x8x8xbf16, #tpu.memory_space<vmem>>, %arg19: memref<4x8x8xbf16, #tpu.memory_space<vmem>>) attributes {dimension_semantics = [#tpu.dimension_semantics<parallel>, #tpu.dimension_semantics<arbitrary>], iteration_bounds = array<i64: 2, 1>, scalar_prefetch = 0 : i64, scratch_operands = 2 : i64, tpu.core_type = #tpu.core_type<tc>, window_params = [{transform_indices = @transform_0, window_bounds = array<i64: 3>}, {transform_indices = @transform_1, window_bounds = array<i64: 1, 8, 16>}, {transform_indices = @transform_2, window_bounds = array<i64: 1, 8, 16>}, {pipeline_mode = #tpu.pipeline_mode<synchronous>, transform_indices = @transform_3, window_bounds = array<i64: 1, 16>}, {pipeline_mode = #tpu.pipeline_mode<synchronous>, transform_indices = @transform_4, window_bounds = array<i64: 1, 16>}, {pipeline_mode = #tpu.pipeline_mode<synchronous>, transform_indices = @transform_5, window_bounds = array<i64: 1, 32>}, {pipeline_mode = #tpu.pipeline_mode<synchronous>, transform_indices = @transform_6, window_bounds = array<i64: 4, 16, 8>}, {pipeline_mode = #tpu.pipeline_mode<synchronous>, transform_indices = @transform_7, window_bounds = array<i64: 4, 16, 8>}, {pipeline_mode = #tpu.pipeline_mode<synchronous>, transform_indices = @transform_8, window_bounds = array<i64: 4, 16, 8>}, {pipeline_mode = #tpu.pipeline_mode<synchronous>, transform_indices = @transform_9, window_bounds = array<i64: 4, 8, 32>}, {pipeline_mode = #tpu.pipeline_mode<synchronous>, transform_indices = @transform_10, window_bounds = array<i64: 1, 32>}, {pipeline_mode = #tpu.pipeline_mode<synchronous>, transform_indices = @transform_11, window_bounds = array<i64: 32, 64>}, {pipeline_mode = #tpu.pipeline_mode<synchronous>, transform_indices = @transform_12, window_bounds = array<i64: 1, 64>}, {pipeline_mode = #tpu.pipeline_mode<synchronous>, transform_indices = @transform_13, window_bounds = array<i64: 64, 32>}, {pipeline_mode = #tpu.pipeline_mode<synchronous>, transform_indices = @transform_14, window_bounds = array<i64: 1, 32>}, {transform_indices = @transform_15, window_bounds = array<i64: 1, 8, 32>}]} {
    %c0 = arith.constant 0 : index
    %0 = memref.load %arg2[%c0] : memref<3xf32, #tpu.memory_space<smem>>
    %c1 = arith.constant 1 : index
    %1 = memref.load %arg2[%c1] : memref<3xf32, #tpu.memory_space<smem>>
    %c2 = arith.constant 2 : index
    %2 = memref.load %arg2[%c2] : memref<3xf32, #tpu.memory_space<smem>>
    %c0_i32 = arith.constant 0 : i32
    %3 = arith.cmpi eq, %arg1, %c0_i32 : i32
    %4 = arith.extui %3 : i1 to i32
    %c0_i32_0 = arith.constant 0 : i32
    %5 = arith.cmpi ne, %4, %c0_i32_0 : i32
    scf.if %5 {
      %c0_111 = arith.constant 0 : index
      %c0_112 = arith.constant 0 : index
      %191 = vector.load %arg5[%c0_111, %c0_112] : memref<1x16xf32, #tpu.memory_space<vmem>>, vector<1x16xf32>
      %c0_113 = arith.constant 0 : index
      %c0_114 = arith.constant 0 : index
      %c0_115 = arith.constant 0 : index
      %192 = vector.load %arg3[%c0_113, %c0_114, %c0_115] : memref<1x8x16xf32, #tpu.memory_space<vmem>>, vector<1x8x16xf32>
      %193 = vector.shape_cast %192 : vector<1x8x16xf32> to vector<8x16xf32>
      %194 = vector.broadcast %0 : f32 to vector<8x16xf32>
      %195 = arith.mulf %194, %193 : vector<8x16xf32>
      %196 = math.tanh %195 : vector<8x16xf32>
      %197 = vector.broadcast %191 : vector<1x16xf32> to vector<8x16xf32>
      %198 = arith.mulf %197, %196 : vector<8x16xf32>
      %199 = arith.truncf %198 : vector<8x16xf32> to vector<8x16xbf16>
      %c0_116 = arith.constant 0 : index
      %c0_117 = arith.constant 0 : index
      %c0_118 = arith.constant 0 : index
      %200 = vector.load %arg9[%c0_116, %c0_117, %c0_118] : memref<4x16x8xbf16, #tpu.memory_space<vmem>>, vector<1x16x8xbf16>
      %201 = vector.shape_cast %200 : vector<1x16x8xbf16> to vector<16x8xbf16>
      %cst_119 = arith.constant dense<0.000000e+00> : vector<8x8xf32>
      %202 = tpu.matmul %199, %201, %cst_119 {dimension_numbers = #tpu.dot_dimension_numbers<[1], [0], [0], [1], [0, 0, 1, 1], [], []>} : vector<8x16xbf16>, vector<16x8xbf16>, vector<8x8xf32> -> vector<8x8xf32>
      %203 = arith.truncf %202 : vector<8x8xf32> to vector<8x8xbf16>
      %c0_120 = arith.constant 0 : index
      %c0_121 = arith.constant 0 : index
      %c0_122 = arith.constant 0 : index
      %204 = vector.load %arg18[%c0_120, %c0_121, %c0_122] : memref<4x8x8xbf16, #tpu.memory_space<vmem>>, vector<1x8x8xbf16>
      %205 = vector.shape_cast %204 : vector<1x8x8xbf16> to vector<8x8xbf16>
      %206 = vector.shape_cast %203 : vector<8x8xbf16> to vector<1x8x8xbf16>
      tpu.vector_store %arg18[%c0_120, %c0_121, %c0_122], %206 {strides = array<i32>} : memref<4x8x8xbf16, #tpu.memory_space<vmem>>, vector<1x8x8xbf16>,
      %c0_123 = arith.constant 0 : index
      %c0_124 = arith.constant 0 : index
      %c0_125 = arith.constant 0 : index
      %207 = vector.load %arg10[%c0_123, %c0_124, %c0_125] : memref<4x16x8xbf16, #tpu.memory_space<vmem>>, vector<1x16x8xbf16>
      %208 = vector.shape_cast %207 : vector<1x16x8xbf16> to vector<16x8xbf16>
      %cst_126 = arith.constant dense<0.000000e+00> : vector<8x8xf32>
      %209 = tpu.matmul %199, %208, %cst_126 {dimension_numbers = #tpu.dot_dimension_numbers<[1], [0], [0], [1], [0, 0, 1, 1], [], []>} : vector<8x16xbf16>, vector<16x8xbf16>, vector<8x8xf32> -> vector<8x8xf32>
      %210 = arith.truncf %209 : vector<8x8xf32> to vector<8x8xbf16>
      %c0_127 = arith.constant 0 : index
      %c0_128 = arith.constant 0 : index
      %c0_129 = arith.constant 0 : index
      %211 = vector.load %arg19[%c0_127, %c0_128, %c0_129] : memref<4x8x8xbf16, #tpu.memory_space<vmem>>, vector<1x8x8xbf16>
      %212 = vector.shape_cast %211 : vector<1x8x8xbf16> to vector<8x8xbf16>
      %213 = vector.shape_cast %210 : vector<8x8xbf16> to vector<1x8x8xbf16>
      tpu.vector_store %arg19[%c0_127, %c0_128, %c0_129], %213 {strides = array<i32>} : memref<4x8x8xbf16, #tpu.memory_space<vmem>>, vector<1x8x8xbf16>,
      %c1_130 = arith.constant 1 : index
      %c0_131 = arith.constant 0 : index
      %c0_132 = arith.constant 0 : index
      %214 = vector.load %arg9[%c1_130, %c0_131, %c0_132] : memref<4x16x8xbf16, #tpu.memory_space<vmem>>, vector<1x16x8xbf16>
      %215 = vector.shape_cast %214 : vector<1x16x8xbf16> to vector<16x8xbf16>
      %cst_133 = arith.constant dense<0.000000e+00> : vector<8x8xf32>
      %216 = tpu.matmul %199, %215, %cst_133 {dimension_numbers = #tpu.dot_dimension_numbers<[1], [0], [0], [1], [0, 0, 1, 1], [], []>} : vector<8x16xbf16>, vector<16x8xbf16>, vector<8x8xf32> -> vector<8x8xf32>
      %217 = arith.truncf %216 : vector<8x8xf32> to vector<8x8xbf16>
      %c1_134 = arith.constant 1 : index
      %c0_135 = arith.constant 0 : index
      %c0_136 = arith.constant 0 : index
      %218 = vector.load %arg18[%c1_134, %c0_135, %c0_136] : memref<4x8x8xbf16, #tpu.memory_space<vmem>>, vector<1x8x8xbf16>
      %219 = vector.shape_cast %218 : vector<1x8x8xbf16> to vector<8x8xbf16>
      %220 = vector.shape_cast %217 : vector<8x8xbf16> to vector<1x8x8xbf16>
      tpu.vector_store %arg18[%c1_134, %c0_135, %c0_136], %220 {strides = array<i32>} : memref<4x8x8xbf16, #tpu.memory_space<vmem>>, vector<1x8x8xbf16>,
      %c1_137 = arith.constant 1 : index
      %c0_138 = arith.constant 0 : index
      %c0_139 = arith.constant 0 : index
      %221 = vector.load %arg10[%c1_137, %c0_138, %c0_139] : memref<4x16x8xbf16, #tpu.memory_space<vmem>>, vector<1x16x8xbf16>
      %222 = vector.shape_cast %221 : vector<1x16x8xbf16> to vector<16x8xbf16>
      %cst_140 = arith.constant dense<0.000000e+00> : vector<8x8xf32>
      %223 = tpu.matmul %199, %222, %cst_140 {dimension_numbers = #tpu.dot_dimension_numbers<[1], [0], [0], [1], [0, 0, 1, 1], [], []>} : vector<8x16xbf16>, vector<16x8xbf16>, vector<8x8xf32> -> vector<8x8xf32>
      %224 = arith.truncf %223 : vector<8x8xf32> to vector<8x8xbf16>
      %c1_141 = arith.constant 1 : index
      %c0_142 = arith.constant 0 : index
      %c0_143 = arith.constant 0 : index
      %225 = vector.load %arg19[%c1_141, %c0_142, %c0_143] : memref<4x8x8xbf16, #tpu.memory_space<vmem>>, vector<1x8x8xbf16>
      %226 = vector.shape_cast %225 : vector<1x8x8xbf16> to vector<8x8xbf16>
      %227 = vector.shape_cast %224 : vector<8x8xbf16> to vector<1x8x8xbf16>
      tpu.vector_store %arg19[%c1_141, %c0_142, %c0_143], %227 {strides = array<i32>} : memref<4x8x8xbf16, #tpu.memory_space<vmem>>, vector<1x8x8xbf16>,
      %c2_144 = arith.constant 2 : index
      %c0_145 = arith.constant 0 : index
      %c0_146 = arith.constant 0 : index
      %228 = vector.load %arg9[%c2_144, %c0_145, %c0_146] : memref<4x16x8xbf16, #tpu.memory_space<vmem>>, vector<1x16x8xbf16>
      %229 = vector.shape_cast %228 : vector<1x16x8xbf16> to vector<16x8xbf16>
      %cst_147 = arith.constant dense<0.000000e+00> : vector<8x8xf32>
      %230 = tpu.matmul %199, %229, %cst_147 {dimension_numbers = #tpu.dot_dimension_numbers<[1], [0], [0], [1], [0, 0, 1, 1], [], []>} : vector<8x16xbf16>, vector<16x8xbf16>, vector<8x8xf32> -> vector<8x8xf32>
      %231 = arith.truncf %230 : vector<8x8xf32> to vector<8x8xbf16>
      %c2_148 = arith.constant 2 : index
      %c0_149 = arith.constant 0 : index
      %c0_150 = arith.constant 0 : index
      %232 = vector.load %arg18[%c2_148, %c0_149, %c0_150] : memref<4x8x8xbf16, #tpu.memory_space<vmem>>, vector<1x8x8xbf16>
      %233 = vector.shape_cast %232 : vector<1x8x8xbf16> to vector<8x8xbf16>
      %234 = vector.shape_cast %231 : vector<8x8xbf16> to vector<1x8x8xbf16>
      tpu.vector_store %arg18[%c2_148, %c0_149, %c0_150], %234 {strides = array<i32>} : memref<4x8x8xbf16, #tpu.memory_space<vmem>>, vector<1x8x8xbf16>,
      %c2_151 = arith.constant 2 : index
      %c0_152 = arith.constant 0 : index
      %c0_153 = arith.constant 0 : index
      %235 = vector.load %arg10[%c2_151, %c0_152, %c0_153] : memref<4x16x8xbf16, #tpu.memory_space<vmem>>, vector<1x16x8xbf16>
      %236 = vector.shape_cast %235 : vector<1x16x8xbf16> to vector<16x8xbf16>
      %cst_154 = arith.constant dense<0.000000e+00> : vector<8x8xf32>
      %237 = tpu.matmul %199, %236, %cst_154 {dimension_numbers = #tpu.dot_dimension_numbers<[1], [0], [0], [1], [0, 0, 1, 1], [], []>} : vector<8x16xbf16>, vector<16x8xbf16>, vector<8x8xf32> -> vector<8x8xf32>
      %238 = arith.truncf %237 : vector<8x8xf32> to vector<8x8xbf16>
      %c2_155 = arith.constant 2 : index
      %c0_156 = arith.constant 0 : index
      %c0_157 = arith.constant 0 : index
      %239 = vector.load %arg19[%c2_155, %c0_156, %c0_157] : memref<4x8x8xbf16, #tpu.memory_space<vmem>>, vector<1x8x8xbf16>
      %240 = vector.shape_cast %239 : vector<1x8x8xbf16> to vector<8x8xbf16>
      %241 = vector.shape_cast %238 : vector<8x8xbf16> to vector<1x8x8xbf16>
      tpu.vector_store %arg19[%c2_155, %c0_156, %c0_157], %241 {strides = array<i32>} : memref<4x8x8xbf16, #tpu.memory_space<vmem>>, vector<1x8x8xbf16>,
      %c3_158 = arith.constant 3 : index
      %c0_159 = arith.constant 0 : index
      %c0_160 = arith.constant 0 : index
      %242 = vector.load %arg9[%c3_158, %c0_159, %c0_160] : memref<4x16x8xbf16, #tpu.memory_space<vmem>>, vector<1x16x8xbf16>
      %243 = vector.shape_cast %242 : vector<1x16x8xbf16> to vector<16x8xbf16>
      %cst_161 = arith.constant dense<0.000000e+00> : vector<8x8xf32>
      %244 = tpu.matmul %199, %243, %cst_161 {dimension_numbers = #tpu.dot_dimension_numbers<[1], [0], [0], [1], [0, 0, 1, 1], [], []>} : vector<8x16xbf16>, vector<16x8xbf16>, vector<8x8xf32> -> vector<8x8xf32>
      %245 = arith.truncf %244 : vector<8x8xf32> to vector<8x8xbf16>
      %c3_162 = arith.constant 3 : index
      %c0_163 = arith.constant 0 : index
      %c0_164 = arith.constant 0 : index
      %246 = vector.load %arg18[%c3_162, %c0_163, %c0_164] : memref<4x8x8xbf16, #tpu.memory_space<vmem>>, vector<1x8x8xbf16>
      %247 = vector.shape_cast %246 : vector<1x8x8xbf16> to vector<8x8xbf16>
      %248 = vector.shape_cast %245 : vector<8x8xbf16> to vector<1x8x8xbf16>
      tpu.vector_store %arg18[%c3_162, %c0_163, %c0_164], %248 {strides = array<i32>} : memref<4x8x8xbf16, #tpu.memory_space<vmem>>, vector<1x8x8xbf16>,
      %c3_165 = arith.constant 3 : index
      %c0_166 = arith.constant 0 : index
      %c0_167 = arith.constant 0 : index
      %249 = vector.load %arg10[%c3_165, %c0_166, %c0_167] : memref<4x16x8xbf16, #tpu.memory_space<vmem>>, vector<1x16x8xbf16>
      %250 = vector.shape_cast %249 : vector<1x16x8xbf16> to vector<16x8xbf16>
      %cst_168 = arith.constant dense<0.000000e+00> : vector<8x8xf32>
      %251 = tpu.matmul %199, %250, %cst_168 {dimension_numbers = #tpu.dot_dimension_numbers<[1], [0], [0], [1], [0, 0, 1, 1], [], []>} : vector<8x16xbf16>, vector<16x8xbf16>, vector<8x8xf32> -> vector<8x8xf32>
      %252 = arith.truncf %251 : vector<8x8xf32> to vector<8x8xbf16>
      %c3_169 = arith.constant 3 : index
      %c0_170 = arith.constant 0 : index
      %c0_171 = arith.constant 0 : index
      %253 = vector.load %arg19[%c3_169, %c0_170, %c0_171] : memref<4x8x8xbf16, #tpu.memory_space<vmem>>, vector<1x8x8xbf16>
      %254 = vector.shape_cast %253 : vector<1x8x8xbf16> to vector<8x8xbf16>
      %255 = vector.shape_cast %252 : vector<8x8xbf16> to vector<1x8x8xbf16>
      tpu.vector_store %arg19[%c3_169, %c0_170, %c0_171], %255 {strides = array<i32>} : memref<4x8x8xbf16, #tpu.memory_space<vmem>>, vector<1x8x8xbf16>,
    } else {
    }
    %c0_1 = arith.constant 0 : index
    %c0_2 = arith.constant 0 : index
    %6 = vector.load %arg6[%c0_1, %c0_2] : memref<1x16xf32, #tpu.memory_space<vmem>>, vector<1x16xf32>
    %c0_3 = arith.constant 0 : index
    %c0_4 = arith.constant 0 : index
    %c0_5 = arith.constant 0 : index
    %7 = vector.load %arg4[%c0_3, %c0_4, %c0_5] : memref<1x8x16xf32, #tpu.memory_space<vmem>>, vector<1x8x16xf32>
    %8 = vector.shape_cast %7 : vector<1x8x16xf32> to vector<8x16xf32>
    %9 = vector.broadcast %1 : f32 to vector<8x16xf32>
    %10 = arith.mulf %9, %8 : vector<8x16xf32>
    %11 = math.tanh %10 : vector<8x16xf32>
    %12 = vector.broadcast %6 : vector<1x16xf32> to vector<8x16xf32>
    %13 = arith.mulf %12, %11 : vector<8x16xf32>
    %14 = arith.truncf %13 : vector<8x16xf32> to vector<8x16xbf16>
    %cst = arith.constant 0.000000e+00 : f32
    %15 = vector.broadcast %cst : f32 to vector<8x32xf32>
    %c0_6 = arith.constant 0 : index
    %c0_7 = arith.constant 0 : index
    %c0_8 = arith.constant 0 : index
    %16 = vector.load %arg8[%c0_6, %c0_7, %c0_8] : memref<4x16x8xbf16, #tpu.memory_space<vmem>>, vector<1x16x8xbf16>
    %17 = vector.shape_cast %16 : vector<1x16x8xbf16> to vector<16x8xbf16>
    %cst_9 = arith.constant dense<0.000000e+00> : vector<8x8xf32>
    %18 = tpu.matmul %14, %17, %cst_9 {dimension_numbers = #tpu.dot_dimension_numbers<[1], [0], [0], [1], [0, 0, 1, 1], [], []>} : vector<8x16xbf16>, vector<16x8xbf16>, vector<8x8xf32> -> vector<8x8xf32>
    %19 = arith.truncf %18 : vector<8x8xf32> to vector<8x8xbf16>
    %c0_10 = arith.constant 0 : index
    %c0_11 = arith.constant 0 : index
    %c0_12 = arith.constant 0 : index
    %20 = vector.load %arg18[%c0_10, %c0_11, %c0_12] : memref<4x8x8xbf16, #tpu.memory_space<vmem>>, vector<1x8x8xbf16>
    %21 = vector.shape_cast %20 : vector<1x8x8xbf16> to vector<8x8xbf16>
    %cst_13 = arith.constant dense<0.000000e+00> : vector<8x8xf32>
    %22 = tpu.matmul %19, %21, %cst_13 {dimension_numbers = #tpu.dot_dimension_numbers<[1], [1], [0], [0], [0, 0, 1, 0], [], []>} : vector<8x8xbf16>, vector<8x8xbf16>, vector<8x8xf32> -> vector<8x8xf32>
    %cst_14 = arith.constant dense<0xFF800000> : vector<8xf32>
    %23 = vector.multi_reduction <maximumf>, %22, %cst_14 [1] : vector<8x8xf32> to vector<8xf32>
    %24 = vector.shape_cast %23 : vector<8xf32> to vector<8x1xf32>
    %25 = vector.broadcast %24 : vector<8x1xf32> to vector<8x8xf32>
    %26 = arith.subf %22, %25 : vector<8x8xf32>
    %27 = math.exp %26 : vector<8x8xf32>
    %cst_15 = arith.constant dense<0.000000e+00> : vector<8xf32>
    %28 = vector.multi_reduction <add>, %27, %cst_15 [1] : vector<8x8xf32> to vector<8xf32>
    %29 = vector.shape_cast %28 : vector<8xf32> to vector<8x1xf32>
    %30 = arith.truncf %27 : vector<8x8xf32> to vector<8x8xbf16>
    %c0_16 = arith.constant 0 : index
    %c0_17 = arith.constant 0 : index
    %c0_18 = arith.constant 0 : index
    %31 = vector.load %arg19[%c0_16, %c0_17, %c0_18] : memref<4x8x8xbf16, #tpu.memory_space<vmem>>, vector<1x8x8xbf16>
    %32 = vector.shape_cast %31 : vector<1x8x8xbf16> to vector<8x8xbf16>
    %cst_19 = arith.constant dense<0.000000e+00> : vector<8x8xf32>
    %33 = tpu.matmul %30, %32, %cst_19 {dimension_numbers = #tpu.dot_dimension_numbers<[1], [0], [0], [1], [0, 0, 1, 1], [], []>} : vector<8x8xbf16>, vector<8x8xbf16>, vector<8x8xf32> -> vector<8x8xf32>
    %34 = tpu.reciprocal %29 {approx = true} : vector<8x1xf32> -> vector<8x1xf32>
    %35 = vector.broadcast %34 : vector<8x1xf32> to vector<8x8xf32>
    %36 = arith.mulf %33, %35 : vector<8x8xf32>
    %37 = arith.truncf %36 : vector<8x8xf32> to vector<8x8xbf16>
    %c0_20 = arith.constant 0 : index
    %c0_21 = arith.constant 0 : index
    %c0_22 = arith.constant 0 : index
    %38 = vector.load %arg11[%c0_20, %c0_21, %c0_22] : memref<4x8x32xbf16, #tpu.memory_space<vmem>>, vector<1x8x32xbf16>
    %39 = vector.shape_cast %38 : vector<1x8x32xbf16> to vector<8x32xbf16>
    %cst_23 = arith.constant dense<0.000000e+00> : vector<8x32xf32>
    %40 = tpu.matmul %37, %39, %cst_23 {dimension_numbers = #tpu.dot_dimension_numbers<[1], [0], [0], [1], [0, 0, 1, 1], [], []>} : vector<8x8xbf16>, vector<8x32xbf16>, vector<8x32xf32> -> vector<8x32xf32>
    %41 = arith.addf %15, %40 : vector<8x32xf32>
    %c1_24 = arith.constant 1 : index
    %c0_25 = arith.constant 0 : index
    %c0_26 = arith.constant 0 : index
    %42 = vector.load %arg8[%c1_24, %c0_25, %c0_26] : memref<4x16x8xbf16, #tpu.memory_space<vmem>>, vector<1x16x8xbf16>
    %43 = vector.shape_cast %42 : vector<1x16x8xbf16> to vector<16x8xbf16>
    %cst_27 = arith.constant dense<0.000000e+00> : vector<8x8xf32>
    %44 = tpu.matmul %14, %43, %cst_27 {dimension_numbers = #tpu.dot_dimension_numbers<[1], [0], [0], [1], [0, 0, 1, 1], [], []>} : vector<8x16xbf16>, vector<16x8xbf16>, vector<8x8xf32> -> vector<8x8xf32>
    %45 = arith.truncf %44 : vector<8x8xf32> to vector<8x8xbf16>
    %c1_28 = arith.constant 1 : index
    %c0_29 = arith.constant 0 : index
    %c0_30 = arith.constant 0 : index
    %46 = vector.load %arg18[%c1_28, %c0_29, %c0_30] : memref<4x8x8xbf16, #tpu.memory_space<vmem>>, vector<1x8x8xbf16>
    %47 = vector.shape_cast %46 : vector<1x8x8xbf16> to vector<8x8xbf16>
    %cst_31 = arith.constant dense<0.000000e+00> : vector<8x8xf32>
    %48 = tpu.matmul %45, %47, %cst_31 {dimension_numbers = #tpu.dot_dimension_numbers<[1], [1], [0], [0], [0, 0, 1, 0], [], []>} : vector<8x8xbf16>, vector<8x8xbf16>, vector<8x8xf32> -> vector<8x8xf32>
    %cst_32 = arith.constant dense<0xFF800000> : vector<8xf32>
    %49 = vector.multi_reduction <maximumf>, %48, %cst_32 [1] : vector<8x8xf32> to vector<8xf32>
    %50 = vector.shape_cast %49 : vector<8xf32> to vector<8x1xf32>
    %51 = vector.broadcast %50 : vector<8x1xf32> to vector<8x8xf32>
    %52 = arith.subf %48, %51 : vector<8x8xf32>
    %53 = math.exp %52 : vector<8x8xf32>
    %cst_33 = arith.constant dense<0.000000e+00> : vector<8xf32>
    %54 = vector.multi_reduction <add>, %53, %cst_33 [1] : vector<8x8xf32> to vector<8xf32>
    %55 = vector.shape_cast %54 : vector<8xf32> to vector<8x1xf32>
    %56 = arith.truncf %53 : vector<8x8xf32> to vector<8x8xbf16>
    %c1_34 = arith.constant 1 : index
    %c0_35 = arith.constant 0 : index
    %c0_36 = arith.constant 0 : index
    %57 = vector.load %arg19[%c1_34, %c0_35, %c0_36] : memref<4x8x8xbf16, #tpu.memory_space<vmem>>, vector<1x8x8xbf16>
    %58 = vector.shape_cast %57 : vector<1x8x8xbf16> to vector<8x8xbf16>
    %cst_37 = arith.constant dense<0.000000e+00> : vector<8x8xf32>
    %59 = tpu.matmul %56, %58, %cst_37 {dimension_numbers = #tpu.dot_dimension_numbers<[1], [0], [0], [1], [0, 0, 1, 1], [], []>} : vector<8x8xbf16>, vector<8x8xbf16>, vector<8x8xf32> -> vector<8x8xf32>
    %60 = tpu.reciprocal %55 {approx = true} : vector<8x1xf32> -> vector<8x1xf32>
    %61 = vector.broadcast %60 : vector<8x1xf32> to vector<8x8xf32>
    %62 = arith.mulf %59, %61 : vector<8x8xf32>
    %63 = arith.truncf %62 : vector<8x8xf32> to vector<8x8xbf16>
    %c1_38 = arith.constant 1 : index
    %c0_39 = arith.constant 0 : index
    %c0_40 = arith.constant 0 : index
    %64 = vector.load %arg11[%c1_38, %c0_39, %c0_40] : memref<4x8x32xbf16, #tpu.memory_space<vmem>>, vector<1x8x32xbf16>
    %65 = vector.shape_cast %64 : vector<1x8x32xbf16> to vector<8x32xbf16>
    %cst_41 = arith.constant dense<0.000000e+00> : vector<8x32xf32>
    %66 = tpu.matmul %63, %65, %cst_41 {dimension_numbers = #tpu.dot_dimension_numbers<[1], [0], [0], [1], [0, 0, 1, 1], [], []>} : vector<8x8xbf16>, vector<8x32xbf16>, vector<8x32xf32> -> vector<8x32xf32>
    %67 = arith.addf %41, %66 : vector<8x32xf32>
    %c2_42 = arith.constant 2 : index
    %c0_43 = arith.constant 0 : index
    %c0_44 = arith.constant 0 : index
    %68 = vector.load %arg8[%c2_42, %c0_43, %c0_44] : memref<4x16x8xbf16, #tpu.memory_space<vmem>>, vector<1x16x8xbf16>
    %69 = vector.shape_cast %68 : vector<1x16x8xbf16> to vector<16x8xbf16>
    %cst_45 = arith.constant dense<0.000000e+00> : vector<8x8xf32>
    %70 = tpu.matmul %14, %69, %cst_45 {dimension_numbers = #tpu.dot_dimension_numbers<[1], [0], [0], [1], [0, 0, 1, 1], [], []>} : vector<8x16xbf16>, vector<16x8xbf16>, vector<8x8xf32> -> vector<8x8xf32>
    %71 = arith.truncf %70 : vector<8x8xf32> to vector<8x8xbf16>
    %c2_46 = arith.constant 2 : index
    %c0_47 = arith.constant 0 : index
    %c0_48 = arith.constant 0 : index
    %72 = vector.load %arg18[%c2_46, %c0_47, %c0_48] : memref<4x8x8xbf16, #tpu.memory_space<vmem>>, vector<1x8x8xbf16>
    %73 = vector.shape_cast %72 : vector<1x8x8xbf16> to vector<8x8xbf16>
    %cst_49 = arith.constant dense<0.000000e+00> : vector<8x8xf32>
    %74 = tpu.matmul %71, %73, %cst_49 {dimension_numbers = #tpu.dot_dimension_numbers<[1], [1], [0], [0], [0, 0, 1, 0], [], []>} : vector<8x8xbf16>, vector<8x8xbf16>, vector<8x8xf32> -> vector<8x8xf32>
    %cst_50 = arith.constant dense<0xFF800000> : vector<8xf32>
    %75 = vector.multi_reduction <maximumf>, %74, %cst_50 [1] : vector<8x8xf32> to vector<8xf32>
    %76 = vector.shape_cast %75 : vector<8xf32> to vector<8x1xf32>
    %77 = vector.broadcast %76 : vector<8x1xf32> to vector<8x8xf32>
    %78 = arith.subf %74, %77 : vector<8x8xf32>
    %79 = math.exp %78 : vector<8x8xf32>
    %cst_51 = arith.constant dense<0.000000e+00> : vector<8xf32>
    %80 = vector.multi_reduction <add>, %79, %cst_51 [1] : vector<8x8xf32> to vector<8xf32>
    %81 = vector.shape_cast %80 : vector<8xf32> to vector<8x1xf32>
    %82 = arith.truncf %79 : vector<8x8xf32> to vector<8x8xbf16>
    %c2_52 = arith.constant 2 : index
    %c0_53 = arith.constant 0 : index
    %c0_54 = arith.constant 0 : index
    %83 = vector.load %arg19[%c2_52, %c0_53, %c0_54] : memref<4x8x8xbf16, #tpu.memory_space<vmem>>, vector<1x8x8xbf16>
    %84 = vector.shape_cast %83 : vector<1x8x8xbf16> to vector<8x8xbf16>
    %cst_55 = arith.constant dense<0.000000e+00> : vector<8x8xf32>
    %85 = tpu.matmul %82, %84, %cst_55 {dimension_numbers = #tpu.dot_dimension_numbers<[1], [0], [0], [1], [0, 0, 1, 1], [], []>} : vector<8x8xbf16>, vector<8x8xbf16>, vector<8x8xf32> -> vector<8x8xf32>
    %86 = tpu.reciprocal %81 {approx = true} : vector<8x1xf32> -> vector<8x1xf32>
    %87 = vector.broadcast %86 : vector<8x1xf32> to vector<8x8xf32>
    %88 = arith.mulf %85, %87 : vector<8x8xf32>
    %89 = arith.truncf %88 : vector<8x8xf32> to vector<8x8xbf16>
    %c2_56 = arith.constant 2 : index
    %c0_57 = arith.constant 0 : index
    %c0_58 = arith.constant 0 : index
    %90 = vector.load %arg11[%c2_56, %c0_57, %c0_58] : memref<4x8x32xbf16, #tpu.memory_space<vmem>>, vector<1x8x32xbf16>
    %91 = vector.shape_cast %90 : vector<1x8x32xbf16> to vector<8x32xbf16>
    %cst_59 = arith.constant dense<0.000000e+00> : vector<8x32xf32>
    %92 = tpu.matmul %89, %91, %cst_59 {dimension_numbers = #tpu.dot_dimension_numbers<[1], [0], [0], [1], [0, 0, 1, 1], [], []>} : vector<8x8xbf16>, vector<8x32xbf16>, vector<8x32xf32> -> vector<8x32xf32>
    %93 = arith.addf %67, %92 : vector<8x32xf32>
    %c3 = arith.constant 3 : index
    %c0_60 = arith.constant 0 : index
    %c0_61 = arith.constant 0 : index
    %94 = vector.load %arg8[%c3, %c0_60, %c0_61] : memref<4x16x8xbf16, #tpu.memory_space<vmem>>, vector<1x16x8xbf16>
    %95 = vector.shape_cast %94 : vector<1x16x8xbf16> to vector<16x8xbf16>
    %cst_62 = arith.constant dense<0.000000e+00> : vector<8x8xf32>
    %96 = tpu.matmul %14, %95, %cst_62 {dimension_numbers = #tpu.dot_dimension_numbers<[1], [0], [0], [1], [0, 0, 1, 1], [], []>} : vector<8x16xbf16>, vector<16x8xbf16>, vector<8x8xf32> -> vector<8x8xf32>
    %97 = arith.truncf %96 : vector<8x8xf32> to vector<8x8xbf16>
    %c3_63 = arith.constant 3 : index
    %c0_64 = arith.constant 0 : index
    %c0_65 = arith.constant 0 : index
    %98 = vector.load %arg18[%c3_63, %c0_64, %c0_65] : memref<4x8x8xbf16, #tpu.memory_space<vmem>>, vector<1x8x8xbf16>
    %99 = vector.shape_cast %98 : vector<1x8x8xbf16> to vector<8x8xbf16>
    %cst_66 = arith.constant dense<0.000000e+00> : vector<8x8xf32>
    %100 = tpu.matmul %97, %99, %cst_66 {dimension_numbers = #tpu.dot_dimension_numbers<[1], [1], [0], [0], [0, 0, 1, 0], [], []>} : vector<8x8xbf16>, vector<8x8xbf16>, vector<8x8xf32> -> vector<8x8xf32>
    %cst_67 = arith.constant dense<0xFF800000> : vector<8xf32>
    %101 = vector.multi_reduction <maximumf>, %100, %cst_67 [1] : vector<8x8xf32> to vector<8xf32>
    %102 = vector.shape_cast %101 : vector<8xf32> to vector<8x1xf32>
    %103 = vector.broadcast %102 : vector<8x1xf32> to vector<8x8xf32>
    %104 = arith.subf %100, %103 : vector<8x8xf32>
    %105 = math.exp %104 : vector<8x8xf32>
    %cst_68 = arith.constant dense<0.000000e+00> : vector<8xf32>
    %106 = vector.multi_reduction <add>, %105, %cst_68 [1] : vector<8x8xf32> to vector<8xf32>
    %107 = vector.shape_cast %106 : vector<8xf32> to vector<8x1xf32>
    %108 = arith.truncf %105 : vector<8x8xf32> to vector<8x8xbf16>
    %c3_69 = arith.constant 3 : index
    %c0_70 = arith.constant 0 : index
    %c0_71 = arith.constant 0 : index
    %109 = vector.load %arg19[%c3_69, %c0_70, %c0_71] : memref<4x8x8xbf16, #tpu.memory_space<vmem>>, vector<1x8x8xbf16>
    %110 = vector.shape_cast %109 : vector<1x8x8xbf16> to vector<8x8xbf16>
    %cst_72 = arith.constant dense<0.000000e+00> : vector<8x8xf32>
    %111 = tpu.matmul %108, %110, %cst_72 {dimension_numbers = #tpu.dot_dimension_numbers<[1], [0], [0], [1], [0, 0, 1, 1], [], []>} : vector<8x8xbf16>, vector<8x8xbf16>, vector<8x8xf32> -> vector<8x8xf32>
    %112 = tpu.reciprocal %107 {approx = true} : vector<8x1xf32> -> vector<8x1xf32>
    %113 = vector.broadcast %112 : vector<8x1xf32> to vector<8x8xf32>
    %114 = arith.mulf %111, %113 : vector<8x8xf32>
    %115 = arith.truncf %114 : vector<8x8xf32> to vector<8x8xbf16>
    %c3_73 = arith.constant 3 : index
    %c0_74 = arith.constant 0 : index
    %c0_75 = arith.constant 0 : index
    %116 = vector.load %arg11[%c3_73, %c0_74, %c0_75] : memref<4x8x32xbf16, #tpu.memory_space<vmem>>, vector<1x8x32xbf16>
    %117 = vector.shape_cast %116 : vector<1x8x32xbf16> to vector<8x32xbf16>
    %cst_76 = arith.constant dense<0.000000e+00> : vector<8x32xf32>
    %118 = tpu.matmul %115, %117, %cst_76 {dimension_numbers = #tpu.dot_dimension_numbers<[1], [0], [0], [1], [0, 0, 1, 1], [], []>} : vector<8x8xbf16>, vector<8x32xbf16>, vector<8x32xf32> -> vector<8x32xf32>
    %119 = arith.addf %93, %118 : vector<8x32xf32>
    %c0_77 = arith.constant 0 : index
    %c0_78 = arith.constant 0 : index
    %120 = vector.load %arg12[%c0_77, %c0_78] : memref<1x32xf32, #tpu.memory_space<vmem>>, vector<1x32xf32>
    %121 = vector.broadcast %120 : vector<1x32xf32> to vector<8x32xf32>
    %122 = arith.addf %119, %121 : vector<8x32xf32>
    %c0_79 = arith.constant 0 : index
    %c0_80 = arith.constant 0 : index
    %123 = vector.load %arg7[%c0_79, %c0_80] : memref<1x32xf32, #tpu.memory_space<vmem>>, vector<1x32xf32>
    %124 = vector.broadcast %2 : f32 to vector<8x32xf32>
    %125 = arith.mulf %124, %122 : vector<8x32xf32>
    %126 = math.tanh %125 : vector<8x32xf32>
    %127 = vector.broadcast %123 : vector<1x32xf32> to vector<8x32xf32>
    %128 = arith.mulf %127, %126 : vector<8x32xf32>
    %129 = arith.truncf %128 : vector<8x32xf32> to vector<8x32xbf16>
    %c0_81 = arith.constant 0 : index
    %c0_82 = arith.constant 0 : index
    %130 = vector.load %arg13[%c0_81, %c0_82] : memref<32x64xbf16, #tpu.memory_space<vmem>>, vector<32x64xbf16>
    %cst_83 = arith.constant dense<0.000000e+00> : vector<8x64xf32>
    %131 = tpu.matmul %129, %130, %cst_83 {dimension_numbers = #tpu.dot_dimension_numbers<[1], [0], [0], [1], [0, 0, 1, 1], [], []>} : vector<8x32xbf16>, vector<32x64xbf16>, vector<8x64xf32> -> vector<8x64xf32>
    %c0_84 = arith.constant 0 : index
    %c0_85 = arith.constant 0 : index
    %132 = vector.load %arg14[%c0_84, %c0_85] : memref<1x64xf32, #tpu.memory_space<vmem>>, vector<1x64xf32>
    %133 = vector.broadcast %132 : vector<1x64xf32> to vector<8x64xf32>
    %134 = arith.addf %131, %133 : vector<8x64xf32>
    %cst_86 = arith.constant 5.000000e-01 : f32
    %135 = vector.broadcast %cst_86 : f32 to vector<8x64xf32>
    %136 = arith.mulf %135, %134 : vector<8x64xf32>
    %cst_87 = arith.constant 0.707106769 : f32
    %137 = vector.broadcast %cst_87 : f32 to vector<8x64xf32>
    %138 = arith.mulf %134, %137 : vector<8x64xf32>
    %cst_88 = arith.constant -4.000000e+00 : f32
    %cst_89 = arith.constant 4.000000e+00 : f32
    %139 = vector.broadcast %cst_88 : f32 to vector<8x64xf32>
    %140 = arith.maximumf %139, %138 : vector<8x64xf32>
    %141 = vector.broadcast %cst_89 : f32 to vector<8x64xf32>
    %142 = arith.minimumf %141, %140 : vector<8x64xf32>
    %143 = arith.mulf %142, %142 : vector<8x64xf32>
    %cst_90 = arith.constant -2.72614237E-10 : f32
    %144 = vector.broadcast %cst_90 : f32 to vector<8x64xf32>
    %145 = arith.mulf %144, %143 : vector<8x64xf32>
    %cst_91 = arith.constant 2.77068146E-8 : f32
    %146 = vector.broadcast %cst_91 : f32 to vector<8x64xf32>
    %147 = arith.addf %145, %146 : vector<8x64xf32>
    %148 = arith.mulf %147, %143 : vector<8x64xf32>
    %cst_92 = arith.constant -2.10102394E-6 : f32
    %149 = vector.broadcast %cst_92 : f32 to vector<8x64xf32>
    %150 = arith.addf %148, %149 : vector<8x64xf32>
    %151 = arith.mulf %150, %143 : vector<8x64xf32>
    %cst_93 = arith.constant -5.69250624E-5 : f32
    %152 = vector.broadcast %cst_93 : f32 to vector<8x64xf32>
    %153 = arith.addf %151, %152 : vector<8x64xf32>
    %154 = arith.mulf %153, %143 : vector<8x64xf32>
    %cst_94 = arith.constant -7.34990637E-4 : f32
    %155 = vector.broadcast %cst_94 : f32 to vector<8x64xf32>
    %156 = arith.addf %154, %155 : vector<8x64xf32>
    %157 = arith.mulf %156, %143 : vector<8x64xf32>
    %cst_95 = arith.constant -2.954600e-03 : f32
    %158 = vector.broadcast %cst_95 : f32 to vector<8x64xf32>
    %159 = arith.addf %157, %158 : vector<8x64xf32>
    %160 = arith.mulf %159, %143 : vector<8x64xf32>
    %cst_96 = arith.constant -0.0160960332 : f32
    %161 = vector.broadcast %cst_96 : f32 to vector<8x64xf32>
    %162 = arith.addf %160, %161 : vector<8x64xf32>
    %163 = arith.mulf %162, %142 : vector<8x64xf32>
    %cst_97 = arith.constant -1.45660715E-5 : f32
    %164 = vector.broadcast %cst_97 : f32 to vector<8x64xf32>
    %165 = arith.mulf %164, %143 : vector<8x64xf32>
    %cst_98 = arith.constant -2.13374049E-4 : f32
    %166 = vector.broadcast %cst_98 : f32 to vector<8x64xf32>
    %167 = arith.addf %165, %166 : vector<8x64xf32>
    %168 = arith.mulf %167, %143 : vector<8x64xf32>
    %cst_99 = arith.constant -0.00168282702 : f32
    %169 = vector.broadcast %cst_99 : f32 to vector<8x64xf32>
    %170 = arith.addf %168, %169 : vector<8x64xf32>
    %171 = arith.mulf %170, %143 : vector<8x64xf32>
    %cst_100 = arith.constant -0.00737332925 : f32
    %172 = vector.broadcast %cst_100 : f32 to vector<8x64xf32>
    %173 = arith.addf %171, %172 : vector<8x64xf32>
    %174 = arith.mulf %173, %143 : vector<8x64xf32>
    %cst_101 = arith.constant -0.0142647391 : f32
    %175 = vector.broadcast %cst_101 : f32 to vector<8x64xf32>
    %176 = arith.addf %174, %175 : vector<8x64xf32>
    %177 = arith.divf %163, %176 : vector<8x64xf32>
    %cst_102 = arith.constant 1.000000e+00 : f32
    %178 = vector.broadcast %cst_102 : f32 to vector<8x64xf32>
    %179 = arith.addf %178, %177 : vector<8x64xf32>
    %180 = arith.mulf %136, %179 : vector<8x64xf32>
    %181 = arith.truncf %180 : vector<8x64xf32> to vector<8x64xbf16>
    %c0_103 = arith.constant 0 : index
    %c0_104 = arith.constant 0 : index
    %182 = vector.load %arg15[%c0_103, %c0_104] : memref<64x32xbf16, #tpu.memory_space<vmem>>, vector<64x32xbf16>
    %cst_105 = arith.constant dense<0.000000e+00> : vector<8x32xf32>
    %183 = tpu.matmul %181, %182, %cst_105 {dimension_numbers = #tpu.dot_dimension_numbers<[1], [0], [0], [1], [0, 0, 1, 1], [], []>} : vector<8x64xbf16>, vector<64x32xbf16>, vector<8x32xf32> -> vector<8x32xf32>
    %c0_106 = arith.constant 0 : index
    %c0_107 = arith.constant 0 : index
    %184 = vector.load %arg16[%c0_106, %c0_107] : memref<1x32xf32, #tpu.memory_space<vmem>>, vector<1x32xf32>
    %185 = vector.broadcast %184 : vector<1x32xf32> to vector<8x32xf32>
    %186 = arith.addf %183, %185 : vector<8x32xf32>
    %187 = arith.addf %122, %186 : vector<8x32xf32>
    %c0_108 = arith.constant 0 : index
    %c0_109 = arith.constant 0 : index
    %c0_110 = arith.constant 0 : index
    %188 = vector.load %arg17[%c0_108, %c0_109, %c0_110] : memref<1x8x32xf32, #tpu.memory_space<vmem>>, vector<1x8x32xf32>
    %189 = vector.shape_cast %188 : vector<1x8x32xf32> to vector<8x32xf32>
    %190 = vector.shape_cast %187 : vector<8x32xf32> to vector<1x8x32xf32>
    tpu.vector_store %arg17[%c0_108, %c0_109, %c0_110], %190 {strides = array<i32>} : memref<1x8x32xf32, #tpu.memory_space<vmem>>, vector<1x8x32xf32>,
    return
  }
  func.func @transform_0(%arg0: i32, %arg1: i32) -> i32 {
    %c0_i32 = arith.constant 0 : i32
    %c0_i32_0 = arith.constant 0 : i32
    return %c0_i32 : i32
  }
  func.func @transform_1(%arg0: i32, %arg1: i32) -> (i32, i32, i32) {
    %c0_i32 = arith.constant 0 : i32
    %c0_i32_0 = arith.constant 0 : i32
    %c0_i32_1 = arith.constant 0 : i32
    return %arg0, %c0_i32, %c0_i32_0 : i32, i32, i32
  }
  func.func @transform_2(%arg0: i32, %arg1: i32) -> (i32, i32, i32) {
    %c0_i32 = arith.constant 0 : i32
    %c0_i32_0 = arith.constant 0 : i32
    return %arg0, %arg1, %c0_i32 : i32, i32, i32
  }
  func.func @transform_3(%arg0: i32, %arg1: i32) -> (i32, i32) {
    %c0_i32 = arith.constant 0 : i32
    %c0_i32_0 = arith.constant 0 : i32
    %c0_i32_1 = arith.constant 0 : i32
    return %c0_i32, %c0_i32_0 : i32, i32
  }
  func.func @transform_4(%arg0: i32, %arg1: i32) -> (i32, i32) {
    %c0_i32 = arith.constant 0 : i32
    %c0_i32_0 = arith.constant 0 : i32
    %c0_i32_1 = arith.constant 0 : i32
    return %c0_i32, %c0_i32_0 : i32, i32
  }
  func.func @transform_5(%arg0: i32, %arg1: i32) -> (i32, i32) {
    %c0_i32 = arith.constant 0 : i32
    %c0_i32_0 = arith.constant 0 : i32
    %c0_i32_1 = arith.constant 0 : i32
    return %c0_i32, %c0_i32_0 : i32, i32
  }
  func.func @transform_6(%arg0: i32, %arg1: i32) -> (i32, i32, i32) {
    %c0_i32 = arith.constant 0 : i32
    %c0_i32_0 = arith.constant 0 : i32
    %c0_i32_1 = arith.constant 0 : i32
    %c0_i32_2 = arith.constant 0 : i32
    return %c0_i32, %c0_i32_0, %c0_i32_1 : i32, i32, i32
  }
  func.func @transform_7(%arg0: i32, %arg1: i32) -> (i32, i32, i32) {
    %c0_i32 = arith.constant 0 : i32
    %c0_i32_0 = arith.constant 0 : i32
    %c0_i32_1 = arith.constant 0 : i32
    %c0_i32_2 = arith.constant 0 : i32
    return %c0_i32, %c0_i32_0, %c0_i32_1 : i32, i32, i32
  }
  func.func @transform_8(%arg0: i32, %arg1: i32) -> (i32, i32, i32) {
    %c0_i32 = arith.constant 0 : i32
    %c0_i32_0 = arith.constant 0 : i32
    %c0_i32_1 = arith.constant 0 : i32
    %c0_i32_2 = arith.constant 0 : i32
    return %c0_i32, %c0_i32_0, %c0_i32_1 : i32, i32, i32
  }
  func.func @transform_9(%arg0: i32, %arg1: i32) -> (i32, i32, i32) {
    %c0_i32 = arith.constant 0 : i32
    %c0_i32_0 = arith.constant 0 : i32
    %c0_i32_1 = arith.constant 0 : i32
    %c0_i32_2 = arith.constant 0 : i32
    return %c0_i32, %c0_i32_0, %c0_i32_1 : i32, i32, i32
  }
  func.func @transform_10(%arg0: i32, %arg1: i32) -> (i32, i32) {
    %c0_i32 = arith.constant 0 : i32
    %c0_i32_0 = arith.constant 0 : i32
    %c0_i32_1 = arith.constant 0 : i32
    return %c0_i32, %c0_i32_0 : i32, i32
  }
  func.func @transform_11(%arg0: i32, %arg1: i32) -> (i32, i32) {
    %c0_i32 = arith.constant 0 : i32
    %c0_i32_0 = arith.constant 0 : i32
    %c0_i32_1 = arith.constant 0 : i32
    return %c0_i32, %c0_i32_0 : i32, i32
  }
  func.func @transform_12(%arg0: i32, %arg1: i32) -> (i32, i32) {
    %c0_i32 = arith.constant 0 : i32
    %c0_i32_0 = arith.constant 0 : i32
    %c0_i32_1 = arith.constant 0 : i32
    return %c0_i32, %c0_i32_0 : i32, i32
  }
  func.func @transform_13(%arg0: i32, %arg1: i32) -> (i32, i32) {
    %c0_i32 = arith.constant 0 : i32
    %c0_i32_0 = arith.constant 0 : i32
    %c0_i32_1 = arith.constant 0 : i32
    return %c0_i32, %c0_i32_0 : i32, i32
  }
  func.func @transform_14(%arg0: i32, %arg1: i32) -> (i32, i32) {
    %c0_i32 = arith.constant 0 : i32
    %c0_i32_0 = arith.constant 0 : i32
    %c0_i32_1 = arith.constant 0 : i32
    return %c0_i32, %c0_i32_0 : i32, i32
  }
  func.func @transform_15(%arg0: i32, %arg1: i32) -> (i32, i32, i32) {
    %c0_i32 = arith.constant 0 : i32
    %c0_i32_0 = arith.constant 0 : i32
    return %arg0, %arg1, %c0_i32 : i32, i32, i32
  }
}

module attributes {stable_mosaic.version = 11 : i64} {
  func.func @attention_block_kernel(%arg0: i32, %arg1: i32, %arg2: memref<3xf32, #tpu.memory_space<smem>>, %arg3: memref<1x8x16xf32, #tpu.memory_space<vmem>>, %arg4: memref<1x8x16xf32, #tpu.memory_space<vmem>>, %arg5: memref<1x16xf32, #tpu.memory_space<vmem>>, %arg6: memref<1x16xf32, #tpu.memory_space<vmem>>, %arg7: memref<1x32xf32, #tpu.memory_space<vmem>>, %arg8: memref<4x16x8xbf16, #tpu.memory_space<vmem>>, %arg9: memref<4x16x8xbf16, #tpu.memory_space<vmem>>, %arg10: memref<4x16x8xbf16, #tpu.memory_space<vmem>>, %arg11: memref<4x8x32xbf16, #tpu.memory_space<vmem>>, %arg12: memref<1x32xf32, #tpu.memory_space<vmem>>, %arg13: memref<32x64xbf16, #tpu.memory_space<vmem>>, %arg14: memref<1x64xf32, #tpu.memory_space<vmem>>, %arg15: memref<64x32xbf16, #tpu.memory_space<vmem>>, %arg16: memref<1x32xf32, #tpu.memory_space<vmem>>, %arg17: memref<1x8x32xf32, #tpu.memory_space<vmem>>, %arg18: memref<4x8x8xbf16, #tpu.memory_space<vmem>>, %arg19: memref<4x8x8xbf16, #tpu.memory_space<vmem>>) attributes {dimension_semantics = [#tpu.dimension_semantics<parallel>, #tpu.dimension_semantics<arbitrary>], iteration_bounds = array<i64: 2, 1>, scalar_prefetch = 0 : i64, scratch_operands = 2 : i64, tpu.core_type = #tpu.core_type<tc>, window_params = [{transform_indices = @transform_0, window_bounds = array<i64: 3>}, {transform_indices = @transform_1, window_bounds = array<i64: 1, 8, 16>}, {transform_indices = @transform_2, window_bounds = array<i64: 1, 8, 16>}, {pipeline_mode = #tpu.pipeline_mode<synchronous>, transform_indices = @transform_3, window_bounds = array<i64: 1, 16>}, {pipeline_mode = #tpu.pipeline_mode<synchronous>, transform_indices = @transform_4, window_bounds = array<i64: 1, 16>}, {pipeline_mode = #tpu.pipeline_mode<synchronous>, transform_indices = @transform_5, window_bounds = array<i64: 1, 32>}, {pipeline_mode = #tpu.pipeline_mode<synchronous>, transform_indices = @transform_6, window_bounds = array<i64: 4, 16, 8>}, {pipeline_mode = #tpu.pipeline_mode<synchronous>, transform_indices = @transform_7, window_bounds = array<i64: 4, 16, 8>}, {pipeline_mode = #tpu.pipeline_mode<synchronous>, transform_indices = @transform_8, window_bounds = array<i64: 4, 16, 8>}, {pipeline_mode = #tpu.pipeline_mode<synchronous>, transform_indices = @transform_9, window_bounds = array<i64: 4, 8, 32>}, {pipeline_mode = #tpu.pipeline_mode<synchronous>, transform_indices = @transform_10, window_bounds = array<i64: 1, 32>}, {pipeline_mode = #tpu.pipeline_mode<synchronous>, transform_indices = @transform_11, window_bounds = array<i64: 32, 64>}, {pipeline_mode = #tpu.pipeline_mode<synchronous>, transform_indices = @transform_12, window_bounds = array<i64: 1, 64>}, {pipeline_mode = #tpu.pipeline_mode<synchronous>, transform_indices = @transform_13, window_bounds = array<i64: 64, 32>}, {pipeline_mode = #tpu.pipeline_mode<synchronous>, transform_indices = @transform_14, window_bounds = array<i64: 1, 32>}, {transform_indices = @transform_15, window_bounds = array<i64: 1, 8, 32>}]} {
    %c0 = arith.constant 0 : index
    %0 = memref.load %arg2[%c0] : memref<3xf32, #tpu.memory_space<smem>>
    %c1 = arith.constant 1 : index
    %1 = memref.load %arg2[%c1] : memref<3xf32, #tpu.memory_space<smem>>
    %c2 = arith.constant 2 : index
    %2 = memref.load %arg2[%c2] : memref<3xf32, #tpu.memory_space<smem>>
    %c0_i32 = arith.constant 0 : i32
    %3 = arith.cmpi eq, %arg1, %c0_i32 : i32
    %4 = arith.extui %3 : i1 to i32
    %c0_i32_0 = arith.constant 0 : i32
    %5 = arith.cmpi ne, %4, %c0_i32_0 : i32
    scf.if %5 {
      %c0_111 = arith.constant 0 : index
      %c0_112 = arith.constant 0 : index
      %191 = vector.load %arg5[%c0_111, %c0_112] : memref<1x16xf32, #tpu.memory_space<vmem>>, vector<1x16xf32>
      %c0_113 = arith.constant 0 : index
      %c0_114 = arith.constant 0 : index
      %c0_115 = arith.constant 0 : index
      %192 = vector.load %arg3[%c0_113, %c0_114, %c0_115] : memref<1x8x16xf32, #tpu.memory_space<vmem>>, vector<1x8x16xf32>
      %193 = vector.shape_cast %192 : vector<1x8x16xf32> to vector<8x16xf32>
      %194 = vector.broadcast %0 : f32 to vector<8x16xf32>
      %195 = arith.mulf %194, %193 : vector<8x16xf32>
      %196 = math.tanh %195 : vector<8x16xf32>
      %197 = vector.broadcast %191 : vector<1x16xf32> to vector<8x16xf32>
      %198 = arith.mulf %197, %196 : vector<8x16xf32>
      %199 = arith.truncf %198 : vector<8x16xf32> to vector<8x16xbf16>
      %c0_116 = arith.constant 0 : index
      %c0_117 = arith.constant 0 : index
      %c0_118 = arith.constant 0 : index
      %200 = vector.load %arg9[%c0_116, %c0_117, %c0_118] : memref<4x16x8xbf16, #tpu.memory_space<vmem>>, vector<1x16x8xbf16>
      %201 = vector.shape_cast %200 : vector<1x16x8xbf16> to vector<16x8xbf16>
      %cst_119 = arith.constant dense<0.000000e+00> : vector<8x8xf32>
      %202 = tpu.matmul %199, %201, %cst_119 {dimension_numbers = #tpu.dot_dimension_numbers<[1], [0], [0], [1], [0, 0, 1, 1], [], []>} : vector<8x16xbf16>, vector<16x8xbf16>, vector<8x8xf32> -> vector<8x8xf32>
      %203 = arith.truncf %202 : vector<8x8xf32> to vector<8x8xbf16>
      %c0_120 = arith.constant 0 : index
      %c0_121 = arith.constant 0 : index
      %c0_122 = arith.constant 0 : index
      %204 = vector.load %arg18[%c0_120, %c0_121, %c0_122] : memref<4x8x8xbf16, #tpu.memory_space<vmem>>, vector<1x8x8xbf16>
      %205 = vector.shape_cast %204 : vector<1x8x8xbf16> to vector<8x8xbf16>
      %206 = vector.shape_cast %203 : vector<8x8xbf16> to vector<1x8x8xbf16>
      tpu.vector_store %arg18[%c0_120, %c0_121, %c0_122], %206 {strides = array<i32>} : memref<4x8x8xbf16, #tpu.memory_space<vmem>>, vector<1x8x8xbf16>,
      %c0_123 = arith.constant 0 : index
      %c0_124 = arith.constant 0 : index
      %c0_125 = arith.constant 0 : index
      %207 = vector.load %arg10[%c0_123, %c0_124, %c0_125] : memref<4x16x8xbf16, #tpu.memory_space<vmem>>, vector<1x16x8xbf16>
      %208 = vector.shape_cast %207 : vector<1x16x8xbf16> to vector<16x8xbf16>
      %cst_126 = arith.constant dense<0.000000e+00> : vector<8x8xf32>
      %209 = tpu.matmul %199, %208, %cst_126 {dimension_numbers = #tpu.dot_dimension_numbers<[1], [0], [0], [1], [0, 0, 1, 1], [], []>} : vector<8x16xbf16>, vector<16x8xbf16>, vector<8x8xf32> -> vector<8x8xf32>
      %210 = arith.truncf %209 : vector<8x8xf32> to vector<8x8xbf16>
      %c0_127 = arith.constant 0 : index
      %c0_128 = arith.constant 0 : index
      %c0_129 = arith.constant 0 : index
      %211 = vector.load %arg19[%c0_127, %c0_128, %c0_129] : memref<4x8x8xbf16, #tpu.memory_space<vmem>>, vector<1x8x8xbf16>
      %212 = vector.shape_cast %211 : vector<1x8x8xbf16> to vector<8x8xbf16>
      %213 = vector.shape_cast %210 : vector<8x8xbf16> to vector<1x8x8xbf16>
      tpu.vector_store %arg19[%c0_127, %c0_128, %c0_129], %213 {strides = array<i32>} : memref<4x8x8xbf16, #tpu.memory_space<vmem>>, vector<1x8x8xbf16>,
      %c1_130 = arith.constant 1 : index
      %c0_131 = arith.constant 0 : index
      %c0_132 = arith.constant 0 : index
      %214 = vector.load %arg9[%c1_130, %c0_131, %c0_132] : memref<4x16x8xbf16, #tpu.memory_space<vmem>>, vector<1x16x8xbf16>
      %215 = vector.shape_cast %214 : vector<1x16x8xbf16> to vector<16x8xbf16>
      %cst_133 = arith.constant dense<0.000000e+00> : vector<8x8xf32>
      %216 = tpu.matmul %199, %215, %cst_133 {dimension_numbers = #tpu.dot_dimension_numbers<[1], [0], [0], [1], [0, 0, 1, 1], [], []>} : vector<8x16xbf16>, vector<16x8xbf16>, vector<8x8xf32> -> vector<8x8xf32>
      %217 = arith.truncf %216 : vector<8x8xf32> to vector<8x8xbf16>
      %c1_134 = arith.constant 1 : index
      %c0_135 = arith.constant 0 : index
      %c0_136 = arith.constant 0 : index
      %218 = vector.load %arg18[%c1_134, %c0_135, %c0_136] : memref<4x8x8xbf16, #tpu.memory_space<vmem>>, vector<1x8x8xbf16>
      %219 = vector.shape_cast %218 : vector<1x8x8xbf16> to vector<8x8xbf16>
      %220 = vector.shape_cast %217 : vector<8x8xbf16> to vector<1x8x8xbf16>
      tpu.vector_store %arg18[%c1_134, %c0_135, %c0_136], %220 {strides = array<i32>} : memref<4x8x8xbf16, #tpu.memory_space<vmem>>, vector<1x8x8xbf16>,
      %c1_137 = arith.constant 1 : index
      %c0_138 = arith.constant 0 : index
      %c0_139 = arith.constant 0 : index
      %221 = vector.load %arg10[%c1_137, %c0_138, %c0_139] : memref<4x16x8xbf16, #tpu.memory_space<vmem>>, vector<1x16x8xbf16>
      %222 = vector.shape_cast %221 : vector<1x16x8xbf16> to vector<16x8xbf16>
      %cst_140 = arith.constant dense<0.000000e+00> : vector<8x8xf32>
      %223 = tpu.matmul %199, %222, %cst_140 {dimension_numbers = #tpu.dot_dimension_numbers<[1], [0], [0], [1], [0, 0, 1, 1], [], []>} : vector<8x16xbf16>, vector<16x8xbf16>, vector<8x8xf32> -> vector<8x8xf32>
      %224 = arith.truncf %223 : vector<8x8xf32> to vector<8x8xbf16>
      %c1_141 = arith.constant 1 : index
      %c0_142 = arith.constant 0 : index
      %c0_143 = arith.constant 0 : index
      %225 = vector.load %arg19[%c1_141, %c0_142, %c0_143] : memref<4x8x8xbf16, #tpu.memory_space<vmem>>, vector<1x8x8xbf16>
      %226 = vector.shape_cast %225 : vector<1x8x8xbf16> to vector<8x8xbf16>
      %227 = vector.shape_cast %224 : vector<8x8xbf16> to vector<1x8x8xbf16>
      tpu.vector_store %arg19[%c1_141, %c0_142, %c0_143], %227 {strides = array<i32>} : memref<4x8x8xbf16, #tpu.memory_space<vmem>>, vector<1x8x8xbf16>,
      %c2_144 = arith.constant 2 : index
      %c0_145 = arith.constant 0 : index
      %c0_146 = arith.constant 0 : index
      %228 = vector.load %arg9[%c2_144, %c0_145, %c0_146] : memref<4x16x8xbf16, #tpu.memory_space<vmem>>, vector<1x16x8xbf16>
      %229 = vector.shape_cast %228 : vector<1x16x8xbf16> to vector<16x8xbf16>
      %cst_147 = arith.constant dense<0.000000e+00> : vector<8x8xf32>
      %230 = tpu.matmul %199, %229, %cst_147 {dimension_numbers = #tpu.dot_dimension_numbers<[1], [0], [0], [1], [0, 0, 1, 1], [], []>} : vector<8x16xbf16>, vector<16x8xbf16>, vector<8x8xf32> -> vector<8x8xf32>
      %231 = arith.truncf %230 : vector<8x8xf32> to vector<8x8xbf16>
      %c2_148 = arith.constant 2 : index
      %c0_149 = arith.constant 0 : index
      %c0_150 = arith.constant 0 : index
      %232 = vector.load %arg18[%c2_148, %c0_149, %c0_150] : memref<4x8x8xbf16, #tpu.memory_space<vmem>>, vector<1x8x8xbf16>
      %233 = vector.shape_cast %232 : vector<1x8x8xbf16> to vector<8x8xbf16>
      %234 = vector.shape_cast %231 : vector<8x8xbf16> to vector<1x8x8xbf16>
      tpu.vector_store %arg18[%c2_148, %c0_149, %c0_150], %234 {strides = array<i32>} : memref<4x8x8xbf16, #tpu.memory_space<vmem>>, vector<1x8x8xbf16>,
      %c2_151 = arith.constant 2 : index
      %c0_152 = arith.constant 0 : index
      %c0_153 = arith.constant 0 : index
      %235 = vector.load %arg10[%c2_151, %c0_152, %c0_153] : memref<4x16x8xbf16, #tpu.memory_space<vmem>>, vector<1x16x8xbf16>
      %236 = vector.shape_cast %235 : vector<1x16x8xbf16> to vector<16x8xbf16>
      %cst_154 = arith.constant dense<0.000000e+00> : vector<8x8xf32>
      %237 = tpu.matmul %199, %236, %cst_154 {dimension_numbers = #tpu.dot_dimension_numbers<[1], [0], [0], [1], [0, 0, 1, 1], [], []>} : vector<8x16xbf16>, vector<16x8xbf16>, vector<8x8xf32> -> vector<8x8xf32>
      %238 = arith.truncf %237 : vector<8x8xf32> to vector<8x8xbf16>
      %c2_155 = arith.constant 2 : index
      %c0_156 = arith.constant 0 : index
      %c0_157 = arith.constant 0 : index
      %239 = vector.load %arg19[%c2_155, %c0_156, %c0_157] : memref<4x8x8xbf16, #tpu.memory_space<vmem>>, vector<1x8x8xbf16>
      %240 = vector.shape_cast %239 : vector<1x8x8xbf16> to vector<8x8xbf16>
      %241 = vector.shape_cast %238 : vector<8x8xbf16> to vector<1x8x8xbf16>
      tpu.vector_store %arg19[%c2_155, %c0_156, %c0_157], %241 {strides = array<i32>} : memref<4x8x8xbf16, #tpu.memory_space<vmem>>, vector<1x8x8xbf16>,
      %c3_158 = arith.constant 3 : index
      %c0_159 = arith.constant 0 : index
      %c0_160 = arith.constant 0 : index
      %242 = vector.load %arg9[%c3_158, %c0_159, %c0_160] : memref<4x16x8xbf16, #tpu.memory_space<vmem>>, vector<1x16x8xbf16>
      %243 = vector.shape_cast %242 : vector<1x16x8xbf16> to vector<16x8xbf16>
      %cst_161 = arith.constant dense<0.000000e+00> : vector<8x8xf32>
      %244 = tpu.matmul %199, %243, %cst_161 {dimension_numbers = #tpu.dot_dimension_numbers<[1], [0], [0], [1], [0, 0, 1, 1], [], []>} : vector<8x16xbf16>, vector<16x8xbf16>, vector<8x8xf32> -> vector<8x8xf32>
      %245 = arith.truncf %244 : vector<8x8xf32> to vector<8x8xbf16>
      %c3_162 = arith.constant 3 : index
      %c0_163 = arith.constant 0 : index
      %c0_164 = arith.constant 0 : index
      %246 = vector.load %arg18[%c3_162, %c0_163, %c0_164] : memref<4x8x8xbf16, #tpu.memory_space<vmem>>, vector<1x8x8xbf16>
      %247 = vector.shape_cast %246 : vector<1x8x8xbf16> to vector<8x8xbf16>
      %248 = vector.shape_cast %245 : vector<8x8xbf16> to vector<1x8x8xbf16>
      tpu.vector_store %arg18[%c3_162, %c0_163, %c0_164], %248 {strides = array<i32>} : memref<4x8x8xbf16, #tpu.memory_space<vmem>>, vector<1x8x8xbf16>,
      %c3_165 = arith.constant 3 : index
      %c0_166 = arith.constant 0 : index
      %c0_167 = arith.constant 0 : index
      %249 = vector.load %arg10[%c3_165, %c0_166, %c0_167] : memref<4x16x8xbf16, #tpu.memory_space<vmem>>, vector<1x16x8xbf16>
      %250 = vector.shape_cast %249 : vector<1x16x8xbf16> to vector<16x8xbf16>
      %cst_168 = arith.constant dense<0.000000e+00> : vector<8x8xf32>
      %251 = tpu.matmul %199, %250, %cst_168 {dimension_numbers = #tpu.dot_dimension_numbers<[1], [0], [0], [1], [0, 0, 1, 1], [], []>} : vector<8x16xbf16>, vector<16x8xbf16>, vector<8x8xf32> -> vector<8x8xf32>
      %252 = arith.truncf %251 : vector<8x8xf32> to vector<8x8xbf16>
      %c3_169 = arith.constant 3 : index
      %c0_170 = arith.constant 0 : index
      %c0_171 = arith.constant 0 : index
      %253 = vector.load %arg19[%c3_169, %c0_170, %c0_171] : memref<4x8x8xbf16, #tpu.memory_space<vmem>>, vector<1x8x8xbf16>
      %254 = vector.shape_cast %253 : vector<1x8x8xbf16> to vector<8x8xbf16>
      %255 = vector.shape_cast %252 : vector<8x8xbf16> to vector<1x8x8xbf16>
      tpu.vector_store %arg19[%c3_169, %c0_170, %c0_171], %255 {strides = array<i32>} : memref<4x8x8xbf16, #tpu.memory_space<vmem>>, vector<1x8x8xbf16>,
    } else {
    }
    %c0_1 = arith.constant 0 : index
    %c0_2 = arith.constant 0 : index
    %6 = vector.load %arg6[%c0_1, %c0_2] : memref<1x16xf32, #tpu.memory_space<vmem>>, vector<1x16xf32>
    %c0_3 = arith.constant 0 : index
    %c0_4 = arith.constant 0 : index
    %c0_5 = arith.constant 0 : index
    %7 = vector.load %arg4[%c0_3, %c0_4, %c0_5] : memref<1x8x16xf32, #tpu.memory_space<vmem>>, vector<1x8x16xf32>
    %8 = vector.shape_cast %7 : vector<1x8x16xf32> to vector<8x16xf32>
    %9 = vector.broadcast %1 : f32 to vector<8x16xf32>
    %10 = arith.mulf %9, %8 : vector<8x16xf32>
    %11 = math.tanh %10 : vector<8x16xf32>
    %12 = vector.broadcast %6 : vector<1x16xf32> to vector<8x16xf32>
    %13 = arith.mulf %12, %11 : vector<8x16xf32>
    %14 = arith.truncf %13 : vector<8x16xf32> to vector<8x16xbf16>
    %cst = arith.constant 0.000000e+00 : f32
    %15 = vector.broadcast %cst : f32 to vector<8x32xf32>
    %c0_6 = arith.constant 0 : index
    %c0_7 = arith.constant 0 : index
    %c0_8 = arith.constant 0 : index
    %16 = vector.load %arg8[%c0_6, %c0_7, %c0_8] : memref<4x16x8xbf16, #tpu.memory_space<vmem>>, vector<1x16x8xbf16>
    %17 = vector.shape_cast %16 : vector<1x16x8xbf16> to vector<16x8xbf16>
    %cst_9 = arith.constant dense<0.000000e+00> : vector<8x8xf32>
    %18 = tpu.matmul %14, %17, %cst_9 {dimension_numbers = #tpu.dot_dimension_numbers<[1], [0], [0], [1], [0, 0, 1, 1], [], []>} : vector<8x16xbf16>, vector<16x8xbf16>, vector<8x8xf32> -> vector<8x8xf32>
    %19 = arith.truncf %18 : vector<8x8xf32> to vector<8x8xbf16>
    %c0_10 = arith.constant 0 : index
    %c0_11 = arith.constant 0 : index
    %c0_12 = arith.constant 0 : index
    %20 = vector.load %arg18[%c0_10, %c0_11, %c0_12] : memref<4x8x8xbf16, #tpu.memory_space<vmem>>, vector<1x8x8xbf16>
    %21 = vector.shape_cast %20 : vector<1x8x8xbf16> to vector<8x8xbf16>
    %cst_13 = arith.constant dense<0.000000e+00> : vector<8x8xf32>
    %22 = tpu.matmul %19, %21, %cst_13 {dimension_numbers = #tpu.dot_dimension_numbers<[1], [1], [0], [0], [0, 0, 1, 0], [], []>} : vector<8x8xbf16>, vector<8x8xbf16>, vector<8x8xf32> -> vector<8x8xf32>
    %cst_14 = arith.constant dense<0xFF800000> : vector<8xf32>
    %23 = vector.multi_reduction <maximumf>, %22, %cst_14 [1] : vector<8x8xf32> to vector<8xf32>
    %24 = vector.shape_cast %23 : vector<8xf32> to vector<8x1xf32>
    %25 = vector.broadcast %24 : vector<8x1xf32> to vector<8x8xf32>
    %26 = arith.subf %22, %25 : vector<8x8xf32>
    %27 = math.exp %26 : vector<8x8xf32>
    %cst_15 = arith.constant dense<0.000000e+00> : vector<8xf32>
    %28 = vector.multi_reduction <add>, %27, %cst_15 [1] : vector<8x8xf32> to vector<8xf32>
    %29 = vector.shape_cast %28 : vector<8xf32> to vector<8x1xf32>
    %30 = arith.truncf %27 : vector<8x8xf32> to vector<8x8xbf16>
    %c0_16 = arith.constant 0 : index
    %c0_17 = arith.constant 0 : index
    %c0_18 = arith.constant 0 : index
    %31 = vector.load %arg19[%c0_16, %c0_17, %c0_18] : memref<4x8x8xbf16, #tpu.memory_space<vmem>>, vector<1x8x8xbf16>
    %32 = vector.shape_cast %31 : vector<1x8x8xbf16> to vector<8x8xbf16>
    %cst_19 = arith.constant dense<0.000000e+00> : vector<8x8xf32>
    %33 = tpu.matmul %30, %32, %cst_19 {dimension_numbers = #tpu.dot_dimension_numbers<[1], [0], [0], [1], [0, 0, 1, 1], [], []>} : vector<8x8xbf16>, vector<8x8xbf16>, vector<8x8xf32> -> vector<8x8xf32>
    %34 = tpu.reciprocal %29 {approx = true} : vector<8x1xf32> -> vector<8x1xf32>
    %35 = vector.broadcast %34 : vector<8x1xf32> to vector<8x8xf32>
    %36 = arith.mulf %33, %35 : vector<8x8xf32>
    %37 = arith.truncf %36 : vector<8x8xf32> to vector<8x8xbf16>
    %c0_20 = arith.constant 0 : index
    %c0_21 = arith.constant 0 : index
    %c0_22 = arith.constant 0 : index
    %38 = vector.load %arg11[%c0_20, %c0_21, %c0_22] : memref<4x8x32xbf16, #tpu.memory_space<vmem>>, vector<1x8x32xbf16>
    %39 = vector.shape_cast %38 : vector<1x8x32xbf16> to vector<8x32xbf16>
    %cst_23 = arith.constant dense<0.000000e+00> : vector<8x32xf32>
    %40 = tpu.matmul %37, %39, %cst_23 {dimension_numbers = #tpu.dot_dimension_numbers<[1], [0], [0], [1], [0, 0, 1, 1], [], []>} : vector<8x8xbf16>, vector<8x32xbf16>, vector<8x32xf32> -> vector<8x32xf32>
    %41 = arith.addf %15, %40 : vector<8x32xf32>
    %c1_24 = arith.constant 1 : index
    %c0_25 = arith.constant 0 : index
    %c0_26 = arith.constant 0 : index
    %42 = vector.load %arg8[%c1_24, %c0_25, %c0_26] : memref<4x16x8xbf16, #tpu.memory_space<vmem>>, vector<1x16x8xbf16>
    %43 = vector.shape_cast %42 : vector<1x16x8xbf16> to vector<16x8xbf16>
    %cst_27 = arith.constant dense<0.000000e+00> : vector<8x8xf32>
    %44 = tpu.matmul %14, %43, %cst_27 {dimension_numbers = #tpu.dot_dimension_numbers<[1], [0], [0], [1], [0, 0, 1, 1], [], []>} : vector<8x16xbf16>, vector<16x8xbf16>, vector<8x8xf32> -> vector<8x8xf32>
    %45 = arith.truncf %44 : vector<8x8xf32> to vector<8x8xbf16>
    %c1_28 = arith.constant 1 : index
    %c0_29 = arith.constant 0 : index
    %c0_30 = arith.constant 0 : index
    %46 = vector.load %arg18[%c1_28, %c0_29, %c0_30] : memref<4x8x8xbf16, #tpu.memory_space<vmem>>, vector<1x8x8xbf16>
    %47 = vector.shape_cast %46 : vector<1x8x8xbf16> to vector<8x8xbf16>
    %cst_31 = arith.constant dense<0.000000e+00> : vector<8x8xf32>
    %48 = tpu.matmul %45, %47, %cst_31 {dimension_numbers = #tpu.dot_dimension_numbers<[1], [1], [0], [0], [0, 0, 1, 0], [], []>} : vector<8x8xbf16>, vector<8x8xbf16>, vector<8x8xf32> -> vector<8x8xf32>
    %cst_32 = arith.constant dense<0xFF800000> : vector<8xf32>
    %49 = vector.multi_reduction <maximumf>, %48, %cst_32 [1] : vector<8x8xf32> to vector<8xf32>
    %50 = vector.shape_cast %49 : vector<8xf32> to vector<8x1xf32>
    %51 = vector.broadcast %50 : vector<8x1xf32> to vector<8x8xf32>
    %52 = arith.subf %48, %51 : vector<8x8xf32>
    %53 = math.exp %52 : vector<8x8xf32>
    %cst_33 = arith.constant dense<0.000000e+00> : vector<8xf32>
    %54 = vector.multi_reduction <add>, %53, %cst_33 [1] : vector<8x8xf32> to vector<8xf32>
    %55 = vector.shape_cast %54 : vector<8xf32> to vector<8x1xf32>
    %56 = arith.truncf %53 : vector<8x8xf32> to vector<8x8xbf16>
    %c1_34 = arith.constant 1 : index
    %c0_35 = arith.constant 0 : index
    %c0_36 = arith.constant 0 : index
    %57 = vector.load %arg19[%c1_34, %c0_35, %c0_36] : memref<4x8x8xbf16, #tpu.memory_space<vmem>>, vector<1x8x8xbf16>
    %58 = vector.shape_cast %57 : vector<1x8x8xbf16> to vector<8x8xbf16>
    %cst_37 = arith.constant dense<0.000000e+00> : vector<8x8xf32>
    %59 = tpu.matmul %56, %58, %cst_37 {dimension_numbers = #tpu.dot_dimension_numbers<[1], [0], [0], [1], [0, 0, 1, 1], [], []>} : vector<8x8xbf16>, vector<8x8xbf16>, vector<8x8xf32> -> vector<8x8xf32>
    %60 = tpu.reciprocal %55 {approx = true} : vector<8x1xf32> -> vector<8x1xf32>
    %61 = vector.broadcast %60 : vector<8x1xf32> to vector<8x8xf32>
    %62 = arith.mulf %59, %61 : vector<8x8xf32>
    %63 = arith.truncf %62 : vector<8x8xf32> to vector<8x8xbf16>
    %c1_38 = arith.constant 1 : index
    %c0_39 = arith.constant 0 : index
    %c0_40 = arith.constant 0 : index
    %64 = vector.load %arg11[%c1_38, %c0_39, %c0_40] : memref<4x8x32xbf16, #tpu.memory_space<vmem>>, vector<1x8x32xbf16>
    %65 = vector.shape_cast %64 : vector<1x8x32xbf16> to vector<8x32xbf16>
    %cst_41 = arith.constant dense<0.000000e+00> : vector<8x32xf32>
    %66 = tpu.matmul %63, %65, %cst_41 {dimension_numbers = #tpu.dot_dimension_numbers<[1], [0], [0], [1], [0, 0, 1, 1], [], []>} : vector<8x8xbf16>, vector<8x32xbf16>, vector<8x32xf32> -> vector<8x32xf32>
    %67 = arith.addf %41, %66 : vector<8x32xf32>
    %c2_42 = arith.constant 2 : index
    %c0_43 = arith.constant 0 : index
    %c0_44 = arith.constant 0 : index
    %68 = vector.load %arg8[%c2_42, %c0_43, %c0_44] : memref<4x16x8xbf16, #tpu.memory_space<vmem>>, vector<1x16x8xbf16>
    %69 = vector.shape_cast %68 : vector<1x16x8xbf16> to vector<16x8xbf16>
    %cst_45 = arith.constant dense<0.000000e+00> : vector<8x8xf32>
    %70 = tpu.matmul %14, %69, %cst_45 {dimension_numbers = #tpu.dot_dimension_numbers<[1], [0], [0], [1], [0, 0, 1, 1], [], []>} : vector<8x16xbf16>, vector<16x8xbf16>, vector<8x8xf32> -> vector<8x8xf32>
    %71 = arith.truncf %70 : vector<8x8xf32> to vector<8x8xbf16>
    %c2_46 = arith.constant 2 : index
    %c0_47 = arith.constant 0 : index
    %c0_48 = arith.constant 0 : index
    %72 = vector.load %arg18[%c2_46, %c0_47, %c0_48] : memref<4x8x8xbf16, #tpu.memory_space<vmem>>, vector<1x8x8xbf16>
    %73 = vector.shape_cast %72 : vector<1x8x8xbf16> to vector<8x8xbf16>
    %cst_49 = arith.constant dense<0.000000e+00> : vector<8x8xf32>
    %74 = tpu.matmul %71, %73, %cst_49 {dimension_numbers = #tpu.dot_dimension_numbers<[1], [1], [0], [0], [0, 0, 1, 0], [], []>} : vector<8x8xbf16>, vector<8x8xbf16>, vector<8x8xf32> -> vector<8x8xf32>
    %cst_50 = arith.constant dense<0xFF800000> : vector<8xf32>
    %75 = vector.multi_reduction <maximumf>, %74, %cst_50 [1] : vector<8x8xf32> to vector<8xf32>
    %76 = vector.shape_cast %75 : vector<8xf32> to vector<8x1xf32>
    %77 = vector.broadcast %76 : vector<8x1xf32> to vector<8x8xf32>
    %78 = arith.subf %74, %77 : vector<8x8xf32>
    %79 = math.exp %78 : vector<8x8xf32>
    %cst_51 = arith.constant dense<0.000000e+00> : vector<8xf32>
    %80 = vector.multi_reduction <add>, %79, %cst_51 [1] : vector<8x8xf32> to vector<8xf32>
    %81 = vector.shape_cast %80 : vector<8xf32> to vector<8x1xf32>
    %82 = arith.truncf %79 : vector<8x8xf32> to vector<8x8xbf16>
    %c2_52 = arith.constant 2 : index
    %c0_53 = arith.constant 0 : index
    %c0_54 = arith.constant 0 : index
    %83 = vector.load %arg19[%c2_52, %c0_53, %c0_54] : memref<4x8x8xbf16, #tpu.memory_space<vmem>>, vector<1x8x8xbf16>
    %84 = vector.shape_cast %83 : vector<1x8x8xbf16> to vector<8x8xbf16>
    %cst_55 = arith.constant dense<0.000000e+00> : vector<8x8xf32>
    %85 = tpu.matmul %82, %84, %cst_55 {dimension_numbers = #tpu.dot_dimension_numbers<[1], [0], [0], [1], [0, 0, 1, 1], [], []>} : vector<8x8xbf16>, vector<8x8xbf16>, vector<8x8xf32> -> vector<8x8xf32>
    %86 = tpu.reciprocal %81 {approx = true} : vector<8x1xf32> -> vector<8x1xf32>
    %87 = vector.broadcast %86 : vector<8x1xf32> to vector<8x8xf32>
    %88 = arith.mulf %85, %87 : vector<8x8xf32>
    %89 = arith.truncf %88 : vector<8x8xf32> to vector<8x8xbf16>
    %c2_56 = arith.constant 2 : index
    %c0_57 = arith.constant 0 : index
    %c0_58 = arith.constant 0 : index
    %90 = vector.load %arg11[%c2_56, %c0_57, %c0_58] : memref<4x8x32xbf16, #tpu.memory_space<vmem>>, vector<1x8x32xbf16>
    %91 = vector.shape_cast %90 : vector<1x8x32xbf16> to vector<8x32xbf16>
    %cst_59 = arith.constant dense<0.000000e+00> : vector<8x32xf32>
    %92 = tpu.matmul %89, %91, %cst_59 {dimension_numbers = #tpu.dot_dimension_numbers<[1], [0], [0], [1], [0, 0, 1, 1], [], []>} : vector<8x8xbf16>, vector<8x32xbf16>, vector<8x32xf32> -> vector<8x32xf32>
    %93 = arith.addf %67, %92 : vector<8x32xf32>
    %c3 = arith.constant 3 : index
    %c0_60 = arith.constant 0 : index
    %c0_61 = arith.constant 0 : index
    %94 = vector.load %arg8[%c3, %c0_60, %c0_61] : memref<4x16x8xbf16, #tpu.memory_space<vmem>>, vector<1x16x8xbf16>
    %95 = vector.shape_cast %94 : vector<1x16x8xbf16> to vector<16x8xbf16>
    %cst_62 = arith.constant dense<0.000000e+00> : vector<8x8xf32>
    %96 = tpu.matmul %14, %95, %cst_62 {dimension_numbers = #tpu.dot_dimension_numbers<[1], [0], [0], [1], [0, 0, 1, 1], [], []>} : vector<8x16xbf16>, vector<16x8xbf16>, vector<8x8xf32> -> vector<8x8xf32>
    %97 = arith.truncf %96 : vector<8x8xf32> to vector<8x8xbf16>
    %c3_63 = arith.constant 3 : index
    %c0_64 = arith.constant 0 : index
    %c0_65 = arith.constant 0 : index
    %98 = vector.load %arg18[%c3_63, %c0_64, %c0_65] : memref<4x8x8xbf16, #tpu.memory_space<vmem>>, vector<1x8x8xbf16>
    %99 = vector.shape_cast %98 : vector<1x8x8xbf16> to vector<8x8xbf16>
    %cst_66 = arith.constant dense<0.000000e+00> : vector<8x8xf32>
    %100 = tpu.matmul %97, %99, %cst_66 {dimension_numbers = #tpu.dot_dimension_numbers<[1], [1], [0], [0], [0, 0, 1, 0], [], []>} : vector<8x8xbf16>, vector<8x8xbf16>, vector<8x8xf32> -> vector<8x8xf32>
    %cst_67 = arith.constant dense<0xFF800000> : vector<8xf32>
    %101 = vector.multi_reduction <maximumf>, %100, %cst_67 [1] : vector<8x8xf32> to vector<8xf32>
    %102 = vector.shape_cast %101 : vector<8xf32> to vector<8x1xf32>
    %103 = vector.broadcast %102 : vector<8x1xf32> to vector<8x8xf32>
    %104 = arith.subf %100, %103 : vector<8x8xf32>
    %105 = math.exp %104 : vector<8x8xf32>
    %cst_68 = arith.constant dense<0.000000e+00> : vector<8xf32>
    %106 = vector.multi_reduction <add>, %105, %cst_68 [1] : vector<8x8xf32> to vector<8xf32>
    %107 = vector.shape_cast %106 : vector<8xf32> to vector<8x1xf32>
    %108 = arith.truncf %105 : vector<8x8xf32> to vector<8x8xbf16>
    %c3_69 = arith.constant 3 : index
    %c0_70 = arith.constant 0 : index
    %c0_71 = arith.constant 0 : index
    %109 = vector.load %arg19[%c3_69, %c0_70, %c0_71] : memref<4x8x8xbf16, #tpu.memory_space<vmem>>, vector<1x8x8xbf16>
    %110 = vector.shape_cast %109 : vector<1x8x8xbf16> to vector<8x8xbf16>
    %cst_72 = arith.constant dense<0.000000e+00> : vector<8x8xf32>
    %111 = tpu.matmul %108, %110, %cst_72 {dimension_numbers = #tpu.dot_dimension_numbers<[1], [0], [0], [1], [0, 0, 1, 1], [], []>} : vector<8x8xbf16>, vector<8x8xbf16>, vector<8x8xf32> -> vector<8x8xf32>
    %112 = tpu.reciprocal %107 {approx = true} : vector<8x1xf32> -> vector<8x1xf32>
    %113 = vector.broadcast %112 : vector<8x1xf32> to vector<8x8xf32>
    %114 = arith.mulf %111, %113 : vector<8x8xf32>
    %115 = arith.truncf %114 : vector<8x8xf32> to vector<8x8xbf16>
    %c3_73 = arith.constant 3 : index
    %c0_74 = arith.constant 0 : index
    %c0_75 = arith.constant 0 : index
    %116 = vector.load %arg11[%c3_73, %c0_74, %c0_75] : memref<4x8x32xbf16, #tpu.memory_space<vmem>>, vector<1x8x32xbf16>
    %117 = vector.shape_cast %116 : vector<1x8x32xbf16> to vector<8x32xbf16>
    %cst_76 = arith.constant dense<0.000000e+00> : vector<8x32xf32>
    %118 = tpu.matmul %115, %117, %cst_76 {dimension_numbers = #tpu.dot_dimension_numbers<[1], [0], [0], [1], [0, 0, 1, 1], [], []>} : vector<8x8xbf16>, vector<8x32xbf16>, vector<8x32xf32> -> vector<8x32xf32>
    %119 = arith.addf %93, %118 : vector<8x32xf32>
    %c0_77 = arith.constant 0 : index
    %c0_78 = arith.constant 0 : index
    %120 = vector.load %arg12[%c0_77, %c0_78] : memref<1x32xf32, #tpu.memory_space<vmem>>, vector<1x32xf32>
    %121 = vector.broadcast %120 : vector<1x32xf32> to vector<8x32xf32>
    %122 = arith.addf %119, %121 : vector<8x32xf32>
    %c0_79 = arith.constant 0 : index
    %c0_80 = arith.constant 0 : index
    %123 = vector.load %arg7[%c0_79, %c0_80] : memref<1x32xf32, #tpu.memory_space<vmem>>, vector<1x32xf32>
    %124 = vector.broadcast %2 : f32 to vector<8x32xf32>
    %125 = arith.mulf %124, %122 : vector<8x32xf32>
    %126 = math.tanh %125 : vector<8x32xf32>
    %127 = vector.broadcast %123 : vector<1x32xf32> to vector<8x32xf32>
    %128 = arith.mulf %127, %126 : vector<8x32xf32>
    %129 = arith.truncf %128 : vector<8x32xf32> to vector<8x32xbf16>
    %c0_81 = arith.constant 0 : index
    %c0_82 = arith.constant 0 : index
    %130 = vector.load %arg13[%c0_81, %c0_82] : memref<32x64xbf16, #tpu.memory_space<vmem>>, vector<32x64xbf16>
    %cst_83 = arith.constant dense<0.000000e+00> : vector<8x64xf32>
    %131 = tpu.matmul %129, %130, %cst_83 {dimension_numbers = #tpu.dot_dimension_numbers<[1], [0], [0], [1], [0, 0, 1, 1], [], []>} : vector<8x32xbf16>, vector<32x64xbf16>, vector<8x64xf32> -> vector<8x64xf32>
    %c0_84 = arith.constant 0 : index
    %c0_85 = arith.constant 0 : index
    %132 = vector.load %arg14[%c0_84, %c0_85] : memref<1x64xf32, #tpu.memory_space<vmem>>, vector<1x64xf32>
    %133 = vector.broadcast %132 : vector<1x64xf32> to vector<8x64xf32>
    %134 = arith.addf %131, %133 : vector<8x64xf32>
    %cst_86 = arith.constant 5.000000e-01 : f32
    %135 = vector.broadcast %cst_86 : f32 to vector<8x64xf32>
    %136 = arith.mulf %135, %134 : vector<8x64xf32>
    %cst_87 = arith.constant 0.707106769 : f32
    %137 = vector.broadcast %cst_87 : f32 to vector<8x64xf32>
    %138 = arith.mulf %134, %137 : vector<8x64xf32>
    %cst_88 = arith.constant -4.000000e+00 : f32
    %cst_89 = arith.constant 4.000000e+00 : f32
    %139 = vector.broadcast %cst_88 : f32 to vector<8x64xf32>
    %140 = arith.maximumf %139, %138 : vector<8x64xf32>
    %141 = vector.broadcast %cst_89 : f32 to vector<8x64xf32>
    %142 = arith.minimumf %141, %140 : vector<8x64xf32>
    %143 = arith.mulf %142, %142 : vector<8x64xf32>
    %cst_90 = arith.constant -2.72614237E-10 : f32
    %144 = vector.broadcast %cst_90 : f32 to vector<8x64xf32>
    %145 = arith.mulf %144, %143 : vector<8x64xf32>
    %cst_91 = arith.constant 2.77068146E-8 : f32
    %146 = vector.broadcast %cst_91 : f32 to vector<8x64xf32>
    %147 = arith.addf %145, %146 : vector<8x64xf32>
    %148 = arith.mulf %147, %143 : vector<8x64xf32>
    %cst_92 = arith.constant -2.10102394E-6 : f32
    %149 = vector.broadcast %cst_92 : f32 to vector<8x64xf32>
    %150 = arith.addf %148, %149 : vector<8x64xf32>
    %151 = arith.mulf %150, %143 : vector<8x64xf32>
    %cst_93 = arith.constant -5.69250624E-5 : f32
    %152 = vector.broadcast %cst_93 : f32 to vector<8x64xf32>
    %153 = arith.addf %151, %152 : vector<8x64xf32>
    %154 = arith.mulf %153, %143 : vector<8x64xf32>
    %cst_94 = arith.constant -7.34990637E-4 : f32
    %155 = vector.broadcast %cst_94 : f32 to vector<8x64xf32>
    %156 = arith.addf %154, %155 : vector<8x64xf32>
    %157 = arith.mulf %156, %143 : vector<8x64xf32>
    %cst_95 = arith.constant -2.954600e-03 : f32
    %158 = vector.broadcast %cst_95 : f32 to vector<8x64xf32>
    %159 = arith.addf %157, %158 : vector<8x64xf32>
    %160 = arith.mulf %159, %143 : vector<8x64xf32>
    %cst_96 = arith.constant -0.0160960332 : f32
    %161 = vector.broadcast %cst_96 : f32 to vector<8x64xf32>
    %162 = arith.addf %160, %161 : vector<8x64xf32>
    %163 = arith.mulf %162, %142 : vector<8x64xf32>
    %cst_97 = arith.constant -1.45660715E-5 : f32
    %164 = vector.broadcast %cst_97 : f32 to vector<8x64xf32>
    %165 = arith.mulf %164, %143 : vector<8x64xf32>
    %cst_98 = arith.constant -2.13374049E-4 : f32
    %166 = vector.broadcast %cst_98 : f32 to vector<8x64xf32>
    %167 = arith.addf %165, %166 : vector<8x64xf32>
    %168 = arith.mulf %167, %143 : vector<8x64xf32>
    %cst_99 = arith.constant -0.00168282702 : f32
    %169 = vector.broadcast %cst_99 : f32 to vector<8x64xf32>
    %170 = arith.addf %168, %169 : vector<8x64xf32>
    %171 = arith.mulf %170, %143 : vector<8x64xf32>
    %cst_100 = arith.constant -0.00737332925 : f32
    %172 = vector.broadcast %cst_100 : f32 to vector<8x64xf32>
    %173 = arith.addf %171, %172 : vector<8x64xf32>
    %174 = arith.mulf %173, %143 : vector<8x64xf32>
    %cst_101 = arith.constant -0.0142647391 : f32
    %175 = vector.broadcast %cst_101 : f32 to vector<8x64xf32>
    %176 = arith.addf %174, %175 : vector<8x64xf32>
    %177 = arith.divf %163, %176 : vector<8x64xf32>
    %cst_102 = arith.constant 1.000000e+00 : f32
    %178 = vector.broadcast %cst_102 : f32 to vector<8x64xf32>
    %179 = arith.addf %178, %177 : vector<8x64xf32>
    %180 = arith.mulf %136, %179 : vector<8x64xf32>
    %181 = arith.truncf %180 : vector<8x64xf32> to vector<8x64xbf16>
    %c0_103 = arith.constant 0 : index
    %c0_104 = arith.constant 0 : index
    %182 = vector.load %arg15[%c0_103, %c0_104] : memref<64x32xbf16, #tpu.memory_space<vmem>>, vector<64x32xbf16>
    %cst_105 = arith.constant dense<0.000000e+00> : vector<8x32xf32>
    %183 = tpu.matmul %181, %182, %cst_105 {dimension_numbers = #tpu.dot_dimension_numbers<[1], [0], [0], [1], [0, 0, 1, 1], [], []>} : vector<8x64xbf16>, vector<64x32xbf16>, vector<8x32xf32> -> vector<8x32xf32>
    %c0_106 = arith.constant 0 : index
    %c0_107 = arith.constant 0 : index
    %184 = vector.load %arg16[%c0_106, %c0_107] : memref<1x32xf32, #tpu.memory_space<vmem>>, vector<1x32xf32>
    %185 = vector.broadcast %184 : vector<1x32xf32> to vector<8x32xf32>
    %186 = arith.addf %183, %185 : vector<8x32xf32>
    %187 = arith.addf %122, %186 : vector<8x32xf32>
    %c0_108 = arith.constant 0 : index
    %c0_109 = arith.constant 0 : index
    %c0_110 = arith.constant 0 : index
    %188 = vector.load %arg17[%c0_108, %c0_109, %c0_110] : memref<1x8x32xf32, #tpu.memory_space<vmem>>, vector<1x8x32xf32>
    %189 = vector.shape_cast %188 : vector<1x8x32xf32> to vector<8x32xf32>
    %190 = vector.shape_cast %187 : vector<8x32xf32> to vector<1x8x32xf32>
    tpu.vector_store %arg17[%c0_108, %c0_109, %c0_110], %190 {strides = array<i32>} : memref<1x8x32xf32, #tpu.memory_space<vmem>>, vector<1x8x32xf32>,
    return
  }
  func.func @transform_0(%arg0: i32, %arg1: i32) -> i32 {
    %c0_i32 = arith.constant 0 : i32
    %c0_i32_0 = arith.constant 0 : i32
    return %c0_i32 : i32
  }
  func.func @transform_1(%arg0: i32, %arg1: i32) -> (i32, i32, i32) {
    %c0_i32 = arith.constant 0 : i32
    %c0_i32_0 = arith.constant 0 : i32
    %c0_i32_1 = arith.constant 0 : i32
    return %arg0, %c0_i32, %c0_i32_0 : i32, i32, i32
  }
  func.func @transform_2(%arg0: i32, %arg1: i32) -> (i32, i32, i32) {
    %c0_i32 = arith.constant 0 : i32
    %c0_i32_0 = arith.constant 0 : i32
    return %arg0, %arg1, %c0_i32 : i32, i32, i32
  }
  func.func @transform_3(%arg0: i32, %arg1: i32) -> (i32, i32) {
    %c0_i32 = arith.constant 0 : i32
    %c0_i32_0 = arith.constant 0 : i32
    %c0_i32_1 = arith.constant 0 : i32
    return %c0_i32, %c0_i32_0 : i32, i32
  }
  func.func @transform_4(%arg0: i32, %arg1: i32) -> (i32, i32) {
    %c0_i32 = arith.constant 0 : i32
    %c0_i32_0 = arith.constant 0 : i32
    %c0_i32_1 = arith.constant 0 : i32
    return %c0_i32, %c0_i32_0 : i32, i32
  }
  func.func @transform_5(%arg0: i32, %arg1: i32) -> (i32, i32) {
    %c0_i32 = arith.constant 0 : i32
    %c0_i32_0 = arith.constant 0 : i32
    %c0_i32_1 = arith.constant 0 : i32
    return %c0_i32, %c0_i32_0 : i32, i32
  }
  func.func @transform_6(%arg0: i32, %arg1: i32) -> (i32, i32, i32) {
    %c0_i32 = arith.constant 0 : i32
    %c0_i32_0 = arith.constant 0 : i32
    %c0_i32_1 = arith.constant 0 : i32
    %c0_i32_2 = arith.constant 0 : i32
    return %c0_i32, %c0_i32_0, %c0_i32_1 : i32, i32, i32
  }
  func.func @transform_7(%arg0: i32, %arg1: i32) -> (i32, i32, i32) {
    %c0_i32 = arith.constant 0 : i32
    %c0_i32_0 = arith.constant 0 : i32
    %c0_i32_1 = arith.constant 0 : i32
    %c0_i32_2 = arith.constant 0 : i32
    return %c0_i32, %c0_i32_0, %c0_i32_1 : i32, i32, i32
  }
  func.func @transform_8(%arg0: i32, %arg1: i32) -> (i32, i32, i32) {
    %c0_i32 = arith.constant 0 : i32
    %c0_i32_0 = arith.constant 0 : i32
    %c0_i32_1 = arith.constant 0 : i32
    %c0_i32_2 = arith.constant 0 : i32
    return %c0_i32, %c0_i32_0, %c0_i32_1 : i32, i32, i32
  }
  func.func @transform_9(%arg0: i32, %arg1: i32) -> (i32, i32, i32) {
    %c0_i32 = arith.constant 0 : i32
    %c0_i32_0 = arith.constant 0 : i32
    %c0_i32_1 = arith.constant 0 : i32
    %c0_i32_2 = arith.constant 0 : i32
    return %c0_i32, %c0_i32_0, %c0_i32_1 : i32, i32, i32
  }
  func.func @transform_10(%arg0: i32, %arg1: i32) -> (i32, i32) {
    %c0_i32 = arith.constant 0 : i32
    %c0_i32_0 = arith.constant 0 : i32
    %c0_i32_1 = arith.constant 0 : i32
    return %c0_i32, %c0_i32_0 : i32, i32
  }
  func.func @transform_11(%arg0: i32, %arg1: i32) -> (i32, i32) {
    %c0_i32 = arith.constant 0 : i32
    %c0_i32_0 = arith.constant 0 : i32
    %c0_i32_1 = arith.constant 0 : i32
    return %c0_i32, %c0_i32_0 : i32, i32
  }
  func.func @transform_12(%arg0: i32, %arg1: i32) -> (i32, i32) {
    %c0_i32 = arith.constant 0 : i32
    %c0_i32_0 = arith.constant 0 : i32
    %c0_i32_1 = arith.constant 0 : i32
    return %c0_i32, %c0_i32_0 : i32, i32
  }
  func.func @transform_13(%arg0: i32, %arg1: i32) -> (i32, i32) {
    %c0_i32 = arith.constant 0 : i32
    %c0_i32_0 = arith.constant 0 : i32
    %c0_i32_1 = arith.constant 0 : i32
    return %c0_i32, %c0_i32_0 : i32, i32
  }
  func.func @transform_14(%arg0: i32, %arg1: i32) -> (i32, i32) {
    %c0_i32 = arith.constant 0 : i32
    %c0_i32_0 = arith.constant 0 : i32
    %c0_i32_1 = arith.constant 0 : i32
    return %c0_i32, %c0_i32_0 : i32, i32
  }
  func.func @transform_15(%arg0: i32, %arg1: i32) -> (i32, i32, i32) {
    %c0_i32 = arith.constant 0 : i32
    %c0_i32_0 = arith.constant 0 : i32
    return %arg0, %arg1, %c0_i32 : i32, i32, i32
  }
}

</mosaic_0001>

<llo_original>
// kernel: tpu_custom_call.1
$region0: #{tpu_custom_call.1}
  #allocation0 [shape = 'u32[]', space=smem, size = 0x4, offset = 0x4, fixed_abs, tag = 'smem constant byte address 0x4 - core index']
  #allocation1 [shape = 'u32[144,128]{1,0:T(1,128)}', space=vmem, size = 0x12000, scoped, tag = 'internal scratch']
  #allocation2 [shape = 'bf16[4,8,8]{2,1,0:T(8,128)(2,1)}', space=vmem, size = 0x2000, scoped, tag = 'scratch operand']
  #allocation3 [shape = 'bf16[4,8,8]{2,1,0:T(8,128)(2,1)}', space=vmem, size = 0x2000, scoped, tag = 'scratch operand']
  %s0 = inlined_call_operand.vmem [shape: f32[3], index: 0, kind: input, shape index: {}]
  %s1 = inlined_call_operand.vmem [shape: f32[2,8,16], index: 1, kind: input, shape index: {}]
  %s2 = inlined_call_operand.vmem [shape: f32[2,8,16], index: 2, kind: input, shape index: {}]
  %s3 = inlined_call_operand.vmem [shape: f32[1,16], index: 3, kind: input, shape index: {}]
  %s4 = inlined_call_operand.vmem [shape: f32[1,16], index: 4, kind: input, shape index: {}]
  %s5 = inlined_call_operand.vmem [shape: f32[1,32], index: 5, kind: input, shape index: {}]
  %s6 = inlined_call_operand.vmem [shape: bf16[4,16,8], index: 6, kind: input, shape index: {}]
  %s7 = inlined_call_operand.vmem [shape: bf16[4,16,8], index: 7, kind: input, shape index: {}]
  %s8 = inlined_call_operand.vmem [shape: bf16[4,16,8], index: 8, kind: input, shape index: {}]
  %s9 = inlined_call_operand.vmem [shape: bf16[4,8,32], index: 9, kind: input, shape index: {}]
  %s10 = inlined_call_operand.vmem [shape: f32[1,32], index: 10, kind: input, shape index: {}]
  %s11 = inlined_call_operand.vmem [shape: bf16[32,64], index: 11, kind: input, shape index: {}]
  %s12 = inlined_call_operand.vmem [shape: f32[1,64], index: 12, kind: input, shape index: {}]
  %s13 = inlined_call_operand.vmem [shape: bf16[64,32], index: 13, kind: input, shape index: {}]
  %s14 = inlined_call_operand.vmem [shape: f32[1,32], index: 14, kind: input, shape index: {}]
  %s15 = inlined_call_operand.hbm [shape: f32[2,8,32], index: 15, kind: output, shape index: {}]
  %s16 = sld [smem:[#allocation0]]
  $region101: #{tpu_custom_call.1} parent=0
    _
  %s18 = ssub.s32 1, %s16
  %s19 = scalar_select 0, %s18, %s16
  $region1: #{tpu_custom_call.1} parent=0
    #allocation4 [shape = 'u8[512]{0}', space=smem, size = 0x200, scoped, tag = 'input window, operand 0, single buffered']
    #allocation5 [shape = 's32[2]{0}', space=sflag, size = 0x8, scoped, tag = 'scoped memory for tpu_custom_call.1']
    #allocation6 [shape = 's32[2]{0}', space=sflag, size = 0x8, scoped, tag = 'scoped memory for tpu_custom_call.1']
    #allocation7 [shape = 'u8[8192]{0}', space=vmem, size = 0x2000, scoped, tag = 'output window, operand 0']
    %20 = vsyncpa [#allocation6], 0
    %21 = vsyncpa [#allocation5], 0
    %s22 = scalar_lea.sflag [#allocation5], 1
    %23 = vsyncpa %s22, 0
    loop: start=0, step=1, limit=4
    $region2: #{tpu_custom_call.1} parent=1 // loop_pre_header
      _
    $region3: #{tpu_custom_call.1} parent=1 // loop_header
      %s25 = sphi 0, %s29
      %p26 = scmp.ge.s32.totalorder %s25, 4
      %s32 = sphi 0, %s44
      %s33 = sphi 0, %s40
      %s34 = sphi 0, %s32
      %s35 = sphi 0, %s33
      %s36 = sphi 0, %s34
      %s37 = sphi 0, %s35
      %s45 = sphi 0, %s45
      %s47 = sphi 0, %s45
      %s48 = sphi 0, %s47
      %s62 = sphi 0, %s48
      %s68 = sphi 0, %s70
      %s71 = sphi 0, %s68
      %s72 = sphi 0, %s71
      %s88 = sphi 0, %s72
      %s96 = sphi 0, %s98
      %s99 = sphi 0, %s96
      %s100 = sphi 0, %s99
      %s116 = sphi 0, %s100
      %s120 = sphi 0, %s120
      %s122 = sphi 0, %s120
      %s123 = sphi 0, %s122
      %s137 = sphi 0, %s123
      %s141 = sphi 0, %s141
      %s143 = sphi 0, %s141
      %s144 = sphi 0, %s143
      %s158 = sphi 0, %s144
      %s162 = sphi 0, %s162
      %s164 = sphi 0, %s162
      %s165 = sphi 0, %s164
      %s179 = sphi 0, %s165
      %s183 = sphi 0, %s183
      %s185 = sphi 0, %s183
      %s186 = sphi 0, %s185
      %s200 = sphi 0, %s186
      %s204 = sphi 0, %s204
      %s206 = sphi 0, %s204
      %s207 = sphi 0, %s206
      %s221 = sphi 0, %s207
      %s225 = sphi 0, %s225
      %s227 = sphi 0, %s225
      %s228 = sphi 0, %s227
      %s242 = sphi 0, %s228
      %s246 = sphi 0, %s246
      %s248 = sphi 0, %s246
      %s249 = sphi 0, %s248
      %s263 = sphi 0, %s249
      %s267 = sphi 0, %s267
      %s269 = sphi 0, %s267
      %s270 = sphi 0, %s269
      %s284 = sphi 0, %s270
      %s288 = sphi 0, %s288
      %s290 = sphi 0, %s288
      %s291 = sphi 0, %s290
      %s305 = sphi 0, %s291
      %s309 = sphi 0, %s309
      %s311 = sphi 0, %s309
      %s312 = sphi 0, %s311
      %s326 = sphi 0, %s312
      %s330 = sphi 0, %s330
      %s332 = sphi 0, %s330
      %s333 = sphi 0, %s332
      %s347 = sphi 0, %s333
      %s351 = sphi 0, %s351
      %s353 = sphi 0, %s351
      %s354 = sphi 0, %s353
      %s368 = sphi 0, %s354
      %s376 = sphi 0, %s378
      %s379 = sphi 0, %s376
      %s380 = sphi 0, %s379
      %s396 = sphi 0, %s380
    $region4: #{tpu_custom_call.1} parent=1 // loop_header_branch
      %28 = sbr.rel (%p26) target = $region8
    $region5: #{tpu_custom_call.1} parent=1 // loop_body
      %s30 = ssub.s32 %s25, 1
      %s31 = ssub.s32 %s25, 2
      %s38 = sadd.s32 1, %s33
      %p39 = scmp.ge.s32.totalorder %s38, 1
      %s40 = scalar_select %p39, 0, %s38
      %s41 = sadd.s32 1, %s32
      %s42 = scalar_select %p39, %s41, %s32
      %p43 = scmp.ge.s32.totalorder %s42, 2
      %s44 = scalar_select %p43, 0, %s42
      %s46 = sadd.s32 %s45, 1
      %p49 = scmp.eq.s32.totalorder %s25, 1
      %p50 = scmp.ne.s32.totalorder %s45, %s47
      %p51 = scmp.eq.s32.totalorder %s25, 0
      %p52 = por %p50, %p51
      %p53 = scmp.ne.s32.totalorder %s45, %s47
      %p54 = scmp.eq.s32.totalorder %s30, 1
      %p55 = por %p53, %p54
      %p56 = scmp.ne.s32.totalorder %s47, %s48
      %p57 = scmp.eq.s32.totalorder %s30, 0
      %p58 = por %p56, %p57
      %p59 = scmp.ne.s32.totalorder %s47, %s48
      %p60 = scmp.eq.s32.totalorder %s31, 1
      %p61 = por %p59, %p60
      %p63 = scmp.ne.s32.totalorder %s48, %s62
      %p64 = scmp.eq.s32.totalorder %s31, 0
      %p65 = por %p63, %p64
      %s66 = ssub.s32 %s32, %s44
      %p67 = scmp.eq.s32.totalorder %s66, 0
      %s69 = sadd.s32 %s68, 1
      %s70 = scalar_select %p67, %s68, %s69
      %p73 = pneg %p67
      %p74 = scmp.eq.s32.totalorder %s25, 1
      %p75 = por %p73, %p74
      %p76 = scmp.ne.s32.totalorder %s68, %s71
      %p77 = scmp.eq.s32.totalorder %s25, 0
      %p78 = por %p76, %p77
      %p79 = scmp.ne.s32.totalorder %s68, %s71
      %p80 = scmp.eq.s32.totalorder %s30, 1
      %p81 = por %p79, %p80
      %p82 = scmp.ne.s32.totalorder %s71, %s72
      %p83 = scmp.eq.s32.totalorder %s30, 0
      %p84 = por %p82, %p83
      %p85 = scmp.ne.s32.totalorder %s71, %s72
      %p86 = scmp.eq.s32.totalorder %s31, 1
      %p87 = por %p85, %p86
      %p89 = scmp.ne.s32.totalorder %s72, %s88
      %p90 = scmp.eq.s32.totalorder %s31, 0
      %p91 = por %p89, %p90
      %s92 = ssub.s32 %s32, %s44
      %s93 = ssub.s32 %s33, %s40
      %s94 = sor.u32 %s92, %s93
      %p95 = scmp.eq.s32.totalorder %s94, 0
      %s97 = sadd.s32 %s96, 1
      %s98 = scalar_select %p95, %s96, %s97
      %p101 = pneg %p95
      %p102 = scmp.eq.s32.totalorder %s25, 1
      %p103 = por %p101, %p102
      %p104 = scmp.ne.s32.totalorder %s96, %s99
      %p105 = scmp.eq.s32.totalorder %s25, 0
      %p106 = por %p104, %p105
      %p107 = scmp.ne.s32.totalorder %s96, %s99
      %p108 = scmp.eq.s32.totalorder %s30, 1
      %p109 = por %p107, %p108
      %p110 = scmp.ne.s32.totalorder %s99, %s100
      %p111 = scmp.eq.s32.totalorder %s30, 0
      %p112 = por %p110, %p111
      %p113 = scmp.ne.s32.totalorder %s99, %s100
      %p114 = scmp.eq.s32.totalorder %s31, 1
      %p115 = por %p113, %p114
      %p117 = scmp.ne.s32.totalorder %s100, %s116
      %p118 = scmp.eq.s32.totalorder %s31, 0
      %p119 = por %p117, %p118
      %s121 = sadd.s32 %s120, 1
      %p124 = scmp.eq.s32.totalorder %s25, 1
      %p125 = scmp.ne.s32.totalorder %s120, %s122
      %p126 = scmp.eq.s32.totalorder %s25, 0
      %p127 = por %p125, %p126
      %p128 = scmp.ne.s32.totalorder %s120, %s122
      %p129 = scmp.eq.s32.totalorder %s30, 1
      %p130 = por %p128, %p129
      %p131 = scmp.ne.s32.totalorder %s122, %s123
      %p132 = scmp.eq.s32.totalorder %s30, 0
      %p133 = por %p131, %p132
      %p134 = scmp.ne.s32.totalorder %s122, %s123
      %p135 = scmp.eq.s32.totalorder %s31, 1
      %p136 = por %p134, %p135
      %p138 = scmp.ne.s32.totalorder %s123, %s137
      %p139 = scmp.eq.s32.totalorder %s31, 0
      %p140 = por %p138, %p139
      %s142 = sadd.s32 %s141, 1
      %p145 = scmp.eq.s32.totalorder %s25, 1
      %p146 = scmp.ne.s32.totalorder %s141, %s143
      %p147 = scmp.eq.s32.totalorder %s25, 0
      %p148 = por %p146, %p147
      %p149 = scmp.ne.s32.totalorder %s141, %s143
      %p150 = scmp.eq.s32.totalorder %s30, 1
      %p151 = por %p149, %p150
      %p152 = scmp.ne.s32.totalorder %s143, %s144
      %p153 = scmp.eq.s32.totalorder %s30, 0
      %p154 = por %p152, %p153
      %p155 = scmp.ne.s32.totalorder %s143, %s144
      %p156 = scmp.eq.s32.totalorder %s31, 1
      %p157 = por %p155, %p156
      %p159 = scmp.ne.s32.totalorder %s144, %s158
      %p160 = scmp.eq.s32.totalorder %s31, 0
      %p161 = por %p159, %p160
      %s163 = sadd.s32 %s162, 1
      %p166 = scmp.eq.s32.totalorder %s25, 1
      %p167 = scmp.ne.s32.totalorder %s162, %s164
      %p168 = scmp.eq.s32.totalorder %s25, 0
      %p169 = por %p167, %p168
      %p170 = scmp.ne.s32.totalorder %s162, %s164
      %p171 = scmp.eq.s32.totalorder %s30, 1
      %p172 = por %p170, %p171
      %p173 = scmp.ne.s32.totalorder %s164, %s165
      %p174 = scmp.eq.s32.totalorder %s30, 0
      %p175 = por %p173, %p174
      %p176 = scmp.ne.s32.totalorder %s164, %s165
      %p177 = scmp.eq.s32.totalorder %s31, 1
      %p178 = por %p176, %p177
      %p180 = scmp.ne.s32.totalorder %s165, %s179
      %p181 = scmp.eq.s32.totalorder %s31, 0
      %p182 = por %p180, %p181
      %s184 = sadd.s32 %s183, 1
      %p187 = scmp.eq.s32.totalorder %s25, 1
      %p188 = scmp.ne.s32.totalorder %s183, %s185
      %p189 = scmp.eq.s32.totalorder %s25, 0
      %p190 = por %p188, %p189
      %p191 = scmp.ne.s32.totalorder %s183, %s185
      %p192 = scmp.eq.s32.totalorder %s30, 1
      %p193 = por %p191, %p192
      %p194 = scmp.ne.s32.totalorder %s185, %s186
      %p195 = scmp.eq.s32.totalorder %s30, 0
      %p196 = por %p194, %p195
      %p197 = scmp.ne.s32.totalorder %s185, %s186
      %p198 = scmp.eq.s32.totalorder %s31, 1
      %p199 = por %p197, %p198
      %p201 = scmp.ne.s32.totalorder %s186, %s200
      %p202 = scmp.eq.s32.totalorder %s31, 0
      %p203 = por %p201, %p202
      %s205 = sadd.s32 %s204, 1
      %p208 = scmp.eq.s32.totalorder %s25, 1
      %p209 = scmp.ne.s32.totalorder %s204, %s206
      %p210 = scmp.eq.s32.totalorder %s25, 0
      %p211 = por %p209, %p210
      %p212 = scmp.ne.s32.totalorder %s204, %s206
      %p213 = scmp.eq.s32.totalorder %s30, 1
      %p214 = por %p212, %p213
      %p215 = scmp.ne.s32.totalorder %s206, %s207
      %p216 = scmp.eq.s32.totalorder %s30, 0
      %p217 = por %p215, %p216
      %p218 = scmp.ne.s32.totalorder %s206, %s207
      %p219 = scmp.eq.s32.totalorder %s31, 1
      %p220 = por %p218, %p219
      %p222 = scmp.ne.s32.totalorder %s207, %s221
      %p223 = scmp.eq.s32.totalorder %s31, 0
      %p224 = por %p222, %p223
      %s226 = sadd.s32 %s225, 1
      %p229 = scmp.eq.s32.totalorder %s25, 1
      %p230 = scmp.ne.s32.totalorder %s225, %s227
      %p231 = scmp.eq.s32.totalorder %s25, 0
      %p232 = por %p230, %p231
      %p233 = scmp.ne.s32.totalorder %s225, %s227
      %p234 = scmp.eq.s32.totalorder %s30, 1
      %p235 = por %p233, %p234
      %p236 = scmp.ne.s32.totalorder %s227, %s228
      %p237 = scmp.eq.s32.totalorder %s30, 0
      %p238 = por %p236, %p237
      %p239 = scmp.ne.s32.totalorder %s227, %s228
      %p240 = scmp.eq.s32.totalorder %s31, 1
      %p241 = por %p239, %p240
      %p243 = scmp.ne.s32.totalorder %s228, %s242
      %p244 = scmp.eq.s32.totalorder %s31, 0
      %p245 = por %p243, %p244
      %s247 = sadd.s32 %s246, 1
      %p250 = scmp.eq.s32.totalorder %s25, 1
      %p251 = scmp.ne.s32.totalorder %s246, %s248
      %p252 = scmp.eq.s32.totalorder %s25, 0
      %p253 = por %p251, %p252
      %p254 = scmp.ne.s32.totalorder %s246, %s248
      %p255 = scmp.eq.s32.totalorder %s30, 1
      %p256 = por %p254, %p255
      %p257 = scmp.ne.s32.totalorder %s248, %s249
      %p258 = scmp.eq.s32.totalorder %s30, 0
      %p259 = por %p257, %p258
      %p260 = scmp.ne.s32.totalorder %s248, %s249
      %p261 = scmp.eq.s32.totalorder %s31, 1
      %p262 = por %p260, %p261
      %p264 = scmp.ne.s32.totalorder %s249, %s263
      %p265 = scmp.eq.s32.totalorder %s31, 0
      %p266 = por %p264, %p265
      %s268 = sadd.s32 %s267, 1
      %p271 = scmp.eq.s32.totalorder %s25, 1
      %p272 = scmp.ne.s32.totalorder %s267, %s269
      %p273 = scmp.eq.s32.totalorder %s25, 0
      %p274 = por %p272, %p273
      %p275 = scmp.ne.s32.totalorder %s267, %s269
      %p276 = scmp.eq.s32.totalorder %s30, 1
      %p277 = por %p275, %p276
      %p278 = scmp.ne.s32.totalorder %s269, %s270
      %p279 = scmp.eq.s32.totalorder %s30, 0
      %p280 = por %p278, %p279
      %p281 = scmp.ne.s32.totalorder %s269, %s270
      %p282 = scmp.eq.s32.totalorder %s31, 1
      %p283 = por %p281, %p282
      %p285 = scmp.ne.s32.totalorder %s270, %s284
      %p286 = scmp.eq.s32.totalorder %s31, 0
      %p287 = por %p285, %p286
      %s289 = sadd.s32 %s288, 1
      %p292 = scmp.eq.s32.totalorder %s25, 1
      %p293 = scmp.ne.s32.totalorder %s288, %s290
      %p294 = scmp.eq.s32.totalorder %s25, 0
      %p295 = por %p293, %p294
      %p296 = scmp.ne.s32.totalorder %s288, %s290
      %p297 = scmp.eq.s32.totalorder %s30, 1
      %p298 = por %p296, %p297
      %p299 = scmp.ne.s32.totalorder %s290, %s291
      %p300 = scmp.eq.s32.totalorder %s30, 0
      %p301 = por %p299, %p300
      %p302 = scmp.ne.s32.totalorder %s290, %s291
      %p303 = scmp.eq.s32.totalorder %s31, 1
      %p304 = por %p302, %p303
      %p306 = scmp.ne.s32.totalorder %s291, %s305
      %p307 = scmp.eq.s32.totalorder %s31, 0
      %p308 = por %p306, %p307
      %s310 = sadd.s32 %s309, 1
      %p313 = scmp.eq.s32.totalorder %s25, 1
      %p314 = scmp.ne.s32.totalorder %s309, %s311
      %p315 = scmp.eq.s32.totalorder %s25, 0
      %p316 = por %p314, %p315
      %p317 = scmp.ne.s32.totalorder %s309, %s311
      %p318 = scmp.eq.s32.totalorder %s30, 1
      %p319 = por %p317, %p318
      %p320 = scmp.ne.s32.totalorder %s311, %s312
      %p321 = scmp.eq.s32.totalorder %s30, 0
      %p322 = por %p320, %p321
      %p323 = scmp.ne.s32.totalorder %s311, %s312
      %p324 = scmp.eq.s32.totalorder %s31, 1
      %p325 = por %p323, %p324
      %p327 = scmp.ne.s32.totalorder %s312, %s326
      %p328 = scmp.eq.s32.totalorder %s31, 0
      %p329 = por %p327, %p328
      %s331 = sadd.s32 %s330, 1
      %p334 = scmp.eq.s32.totalorder %s25, 1
      %p335 = scmp.ne.s32.totalorder %s330, %s332
      %p336 = scmp.eq.s32.totalorder %s25, 0
      %p337 = por %p335, %p336
      %p338 = scmp.ne.s32.totalorder %s330, %s332
      %p339 = scmp.eq.s32.totalorder %s30, 1
      %p340 = por %p338, %p339
      %p341 = scmp.ne.s32.totalorder %s332, %s333
      %p342 = scmp.eq.s32.totalorder %s30, 0
      %p343 = por %p341, %p342
      %p344 = scmp.ne.s32.totalorder %s332, %s333
      %p345 = scmp.eq.s32.totalorder %s31, 1
      %p346 = por %p344, %p345
      %p348 = scmp.ne.s32.totalorder %s333, %s347
      %p349 = scmp.eq.s32.totalorder %s31, 0
      %p350 = por %p348, %p349
      %s352 = sadd.s32 %s351, 1
      %p355 = scmp.eq.s32.totalorder %s25, 1
      %p356 = scmp.ne.s32.totalorder %s351, %s353
      %p357 = scmp.eq.s32.totalorder %s25, 0
      %p358 = por %p356, %p357
      %p359 = scmp.ne.s32.totalorder %s351, %s353
      %p360 = scmp.eq.s32.totalorder %s30, 1
      %p361 = por %p359, %p360
      %p362 = scmp.ne.s32.totalorder %s353, %s354
      %p363 = scmp.eq.s32.totalorder %s30, 0
      %p364 = por %p362, %p363
      %p365 = scmp.ne.s32.totalorder %s353, %s354
      %p366 = scmp.eq.s32.totalorder %s31, 1
      %p367 = por %p365, %p366
      %p369 = scmp.ne.s32.totalorder %s354, %s368
      %p370 = scmp.eq.s32.totalorder %s31, 0
      %p371 = por %p369, %p370
      %s372 = ssub.s32 %s32, %s44
      %s373 = ssub.s32 %s33, %s40
      %s374 = sor.u32 %s372, %s373
      %p375 = scmp.eq.s32.totalorder %s374, 0
      %s377 = sadd.s32 %s376, 1
      %s378 = scalar_select %p375, %s376, %s377
      %p381 = pneg %p375
      %p382 = scmp.eq.s32.totalorder %s25, 1
      %p383 = por %p381, %p382
      %p384 = scmp.ne.s32.totalorder %s376, %s379
      %p385 = scmp.eq.s32.totalorder %s25, 0
      %p386 = por %p384, %p385
      %p387 = scmp.ne.s32.totalorder %s376, %s379
      %p388 = scmp.eq.s32.totalorder %s30, 1
      %p389 = por %p387, %p388
      %p390 = scmp.ne.s32.totalorder %s379, %s380
      %p391 = scmp.eq.s32.totalorder %s30, 0
      %p392 = por %p390, %p391
      %p393 = scmp.ne.s32.totalorder %s379, %s380
      %p394 = scmp.eq.s32.totalorder %s31, 1
      %p395 = por %p393, %p394
      %p397 = scmp.ne.s32.totalorder %s380, %s396
      %p398 = scmp.eq.s32.totalorder %s31, 0
      %p399 = por %p397, %p398
      %p400 = scmp.le.s32.totalorder 1, %s25
      %p401 = scmp.lt.s32.totalorder %s25, 3
      %p402 = pnand %p400, %p401
      %p403 = pneg %p402
      // Predicated region
      $region9: #{tpu_custom_call.1} parent=5 // pred_check
        _
      $region10: #{tpu_custom_call.1} parent=5 // pred_check_branch
        %405 = sbr.rel (%p402) target = $region12
      $region11: #{tpu_custom_call.1} parent=5 // pred_region
        %s406 = ssub.s32 %s25, 1
        // Predicated region
        $region13: #{tpu_custom_call.1} parent=11 // pred_check
          %p407 = pneg %p58
        $region14: #{tpu_custom_call.1} parent=11 // pred_check_branch
          %409 = sbr.rel (%p407) target = $region16
        $region15: #{tpu_custom_call.1} parent=11 // pred_region
          %s411 = ssub.s32 16, 16
          %412 = vsyncadd [#allocation6], %s411
          %s414 = sshll.u32 %s0, 4
          %s415 = int_to_ptr.vmem [resolvable:$true] %s414
          %417 = dma.vmem_to_smem %s415, 16, [#allocation4], [#allocation6]
        $region16: #{tpu_custom_call.1} parent=11 // pred_fallthru
          _
        // Predicated region
        $region17: #{tpu_custom_call.1} parent=11 // pred_check
          %p418 = pneg %p133
        $region18: #{tpu_custom_call.1} parent=11 // pred_check_branch
          %420 = sbr.rel (%p418) target = $region20
        $region19: #{tpu_custom_call.1} parent=11 // pred_region
          _
        $region20: #{tpu_custom_call.1} parent=11 // pred_fallthru
          _
        // Predicated region
        $region21: #{tpu_custom_call.1} parent=11 // pred_check
          %p421 = pneg %p154
        $region22: #{tpu_custom_call.1} parent=11 // pred_check_branch
          %423 = sbr.rel (%p421) target = $region24
        $region23: #{tpu_custom_call.1} parent=11 // pred_region
          _
        $region24: #{tpu_custom_call.1} parent=11 // pred_fallthru
          _
        // Predicated region
        $region25: #{tpu_custom_call.1} parent=11 // pred_check
          %p424 = pneg %p175
        $region26: #{tpu_custom_call.1} parent=11 // pred_check_branch
          %426 = sbr.rel (%p424) target = $region28
        $region27: #{tpu_custom_call.1} parent=11 // pred_region
          _
        $region28: #{tpu_custom_call.1} parent=11 // pred_fallthru
          _
        // Predicated region
        $region29: #{tpu_custom_call.1} parent=11 // pred_check
          %p427 = pneg %p196
        $region30: #{tpu_custom_call.1} parent=11 // pred_check_branch
          %429 = sbr.rel (%p427) target = $region32
        $region31: #{tpu_custom_call.1} parent=11 // pred_region
          _
        $region32: #{tpu_custom_call.1} parent=11 // pred_fallthru
          _
        // Predicated region
        $region33: #{tpu_custom_call.1} parent=11 // pred_check
          %p430 = pneg %p217
        $region34: #{tpu_custom_call.1} parent=11 // pred_check_branch
          %432 = sbr.rel (%p430) target = $region36
        $region35: #{tpu_custom_call.1} parent=11 // pred_region
          _
        $region36: #{tpu_custom_call.1} parent=11 // pred_fallthru
          _
        // Predicated region
        $region37: #{tpu_custom_call.1} parent=11 // pred_check
          %p433 = pneg %p238
        $region38: #{tpu_custom_call.1} parent=11 // pred_check_branch
          %435 = sbr.rel (%p433) target = $region40
        $region39: #{tpu_custom_call.1} parent=11 // pred_region
          _
        $region40: #{tpu_custom_call.1} parent=11 // pred_fallthru
          _
        // Predicated region
        $region41: #{tpu_custom_call.1} parent=11 // pred_check
          %p436 = pneg %p259
        $region42: #{tpu_custom_call.1} parent=11 // pred_check_branch
          %438 = sbr.rel (%p436) target = $region44
        $region43: #{tpu_custom_call.1} parent=11 // pred_region
          _
        $region44: #{tpu_custom_call.1} parent=11 // pred_fallthru
          _
        // Predicated region
        $region45: #{tpu_custom_call.1} parent=11 // pred_check
          %p439 = pneg %p280
        $region46: #{tpu_custom_call.1} parent=11 // pred_check_branch
          %441 = sbr.rel (%p439) target = $region48
        $region47: #{tpu_custom_call.1} parent=11 // pred_region
          _
        $region48: #{tpu_custom_call.1} parent=11 // pred_fallthru
          _
        // Predicated region
        $region49: #{tpu_custom_call.1} parent=11 // pred_check
          %p442 = pneg %p301
        $region50: #{tpu_custom_call.1} parent=11 // pred_check_branch
          %444 = sbr.rel (%p442) target = $region52
        $region51: #{tpu_custom_call.1} parent=11 // pred_region
          _
        $region52: #{tpu_custom_call.1} parent=11 // pred_fallthru
          _
        // Predicated region
        $region53: #{tpu_custom_call.1} parent=11 // pred_check
          %p445 = pneg %p322
        $region54: #{tpu_custom_call.1} parent=11 // pred_check_branch
          %447 = sbr.rel (%p445) target = $region56
        $region55: #{tpu_custom_call.1} parent=11 // pred_region
          _
        $region56: #{tpu_custom_call.1} parent=11 // pred_fallthru
          _
        // Predicated region
        $region57: #{tpu_custom_call.1} parent=11 // pred_check
          %p448 = pneg %p343
        $region58: #{tpu_custom_call.1} parent=11 // pred_check_branch
          %450 = sbr.rel (%p448) target = $region60
        $region59: #{tpu_custom_call.1} parent=11 // pred_region
          _
        $region60: #{tpu_custom_call.1} parent=11 // pred_fallthru
          _
        // Predicated region
        $region61: #{tpu_custom_call.1} parent=11 // pred_check
          %p451 = pneg %p364
        $region62: #{tpu_custom_call.1} parent=11 // pred_check_branch
          %453 = sbr.rel (%p451) target = $region64
        $region63: #{tpu_custom_call.1} parent=11 // pred_region
          _
        $region64: #{tpu_custom_call.1} parent=11 // pred_fallthru
          _
      $region12: #{tpu_custom_call.1} parent=5 // pred_fallthru
        _
      %p454 = scmp.lt.s32.totalorder %s25, 2
      // Predicated region
      $region65: #{tpu_custom_call.1} parent=5 // pred_check
        %p455 = pneg %p454
      $region66: #{tpu_custom_call.1} parent=5 // pred_check_branch
        %457 = sbr.rel (%p455) target = $region68
      $region67: #{tpu_custom_call.1} parent=5 // pred_region
        // Predicated region
        $region69: #{tpu_custom_call.1} parent=67 // pred_check
          %p458 = pneg %p78
        $region70: #{tpu_custom_call.1} parent=67 // pred_check_branch
          %460 = sbr.rel (%p458) target = $region72
        $region71: #{tpu_custom_call.1} parent=67 // pred_region
          %p461 = scmp.lt.s32.totalorder %s32, 1
          %s462 = scalar_select %p461, %s32, 1
          %s463 = smul.addr %s462, 8
          %s464 = scalar_lea.vmem %s1, %s463
        $region72: #{tpu_custom_call.1} parent=67 // pred_fallthru
          _
        // Predicated region
        $region73: #{tpu_custom_call.1} parent=67 // pred_check
          %p465 = pneg %p106
        $region74: #{tpu_custom_call.1} parent=67 // pred_check_branch
          %467 = sbr.rel (%p465) target = $region76
        $region75: #{tpu_custom_call.1} parent=67 // pred_region
          %p468 = scmp.lt.s32.totalorder %s32, 1
          %s469 = scalar_select %p468, %s32, 1
          %p470 = scmp.lt.s32.totalorder %s33, 0
          %s471 = scalar_select %p470, %s33, 0
          %s472 = sadd.s32 %s471, %s469
          %s473 = smul.addr %s472, 8
          %s474 = scalar_lea.vmem %s2, %s473
        $region76: #{tpu_custom_call.1} parent=67 // pred_fallthru
          _
      $region68: #{tpu_custom_call.1} parent=5 // pred_fallthru
        _
      %p475 = scmp.le.s32.totalorder 1, %s25
      %p476 = scmp.lt.s32.totalorder %s25, 3
      %p477 = pnand %p475, %p476
      %p478 = pneg %p477
      // Predicated region
      $region77: #{tpu_custom_call.1} parent=5 // pred_check
        _
      $region78: #{tpu_custom_call.1} parent=5 // pred_check_branch
        %480 = sbr.rel (%p477) target = $region80
      $region79: #{tpu_custom_call.1} parent=5 // pred_region
        %s481 = ssub.s32 %s25, 1
        // Predicated region
        $region81: #{tpu_custom_call.1} parent=79 // pred_check
          %p482 = pneg %p58
        $region82: #{tpu_custom_call.1} parent=79 // pred_check_branch
          %484 = sbr.rel (%p482) target = $region84
        $region83: #{tpu_custom_call.1} parent=79 // pred_region
          %485 = dma.done [#allocation6], 16
        $region84: #{tpu_custom_call.1} parent=79 // pred_fallthru
          _
        %486 = sfence
        %p487 = pneg %p58
        %p488 = pneg %p55
        %p489 = scmp.lt.s32.totalorder %s34, 1
        %s490 = scalar_select %p489, %s34, 1
        %s491 = smul.addr %s490, 8
        %s492 = scalar_lea.vmem %s1, %s491
        %p493 = pneg %p84
        %p494 = pneg %p81
        %p495 = scmp.lt.s32.totalorder %s34, 1
        %s496 = scalar_select %p495, %s34, 1
        %p497 = scmp.lt.s32.totalorder %s35, 0
        %s498 = scalar_select %p497, %s35, 0
        %s499 = sadd.s32 %s498, %s496
        %s500 = smul.addr %s499, 8
        %s501 = scalar_lea.vmem %s2, %s500
        %p502 = pneg %p112
        %p503 = pneg %p109
        %p504 = pneg %p133
        %p505 = pneg %p130
        %p506 = pneg %p154
        %p507 = pneg %p151
        %p508 = pneg %p175
        %p509 = pneg %p172
        %p510 = pneg %p196
        %p511 = pneg %p193
        %p512 = pneg %p217
        %p513 = pneg %p214
        %p514 = pneg %p238
        %p515 = pneg %p235
        %p516 = pneg %p259
        %p517 = pneg %p256
        %p518 = pneg %p280
        %p519 = pneg %p277
        %p520 = pneg %p301
        %p521 = pneg %p298
        %p522 = pneg %p322
        %p523 = pneg %p319
        %p524 = pneg %p343
        %p525 = pneg %p340
        %p526 = pneg %p364
        %p527 = pneg %p361
        %p528 = pneg %p392
        %p529 = pneg %p389
        %s530 = sand.u32 %s379, 1
        %s531 = scalar_lea.sflag [#allocation5], %s530
        %s532 = sand.u32 %s379, 1
        %s533 = smul.addr %s532, 8
        %s534 = scalar_lea.vmem [#allocation7], %s533
        %p535 = scmp.lt.s32.totalorder %s34, 1
        %s536 = scalar_select %p535, %s34, 1
        %s537 = smul.addr %s536, 8
        %s538 = scalar_lea.vmem %s1, %s537
        %p539 = scmp.lt.s32.totalorder %s34, 1
        %s540 = scalar_select %p539, %s34, 1
        %p541 = scmp.lt.s32.totalorder %s35, 0
        %s542 = scalar_select %p541, %s35, 0
        %s543 = sadd.s32 %s542, %s540
        %s544 = smul.addr %s543, 8
        %s545 = scalar_lea.vmem %s2, %s544
        %s547 = sld [smem:[#allocation4]]
        %s548 = sld [smem:[#allocation4 + $0x1]]
        %s549 = sld [smem:[#allocation4 + $0x2]]
        %p550 = scmp.eq.s32.totalorder %s35, 0
        // Predicated region
        $region85: #{tpu_custom_call.1} parent=79 // pred_check
          %p551 = pneg %p550
        $region86: #{tpu_custom_call.1} parent=79 // pred_check_branch
          %553 = sbr.rel (%p551) target = $region88
        $region87: #{tpu_custom_call.1} parent=79 // pred_region
          %v554 = vld [vmem:[%s3] sm:$0x1]
          %v555 = vld [vmem:[%s538] sm:$0xff]
          %v556 = vstv %s547
          %v557 = vmul.f32 %v556, %v555
          %v558 = vtanh.pop %v557
          %v560 = vlaneseq
          %v561 = vshrl.u32 %v560, 7
          %v562 = vsub.s32 0, %v561
          %v563 = vrot.slane %v554, %v562
          %v565 = vmul.f32 %v563, %v558
          %v566 = vpack.c.bf16 %v565, %v565
          %v567 = vld [vmem:[%s7] sm:$0xf]
          %v568 = vld [vmem:[%s7 + $0x4] sm:$0xf]
          %v571 = vunpack.c.l.b16 %v567
          %v572 = vunpack.c.l.b16 %v568
          %v573 = vpack.c.b16 %v572, %v571
          %vm575 = vcmask 130048
          %v577 = vsel %vm575, %v566, 0
          %579 = vmatprep.subr.bf16.mxu0 0
          %580 = vmatpush1.bf16.msra.mxu0 %v573
          %581 = vmatprep.subr.bf16.mxu0 0
          %582 = vmatpush1.bf16.msra.mxu0 0
          %583 = vmatprep.subr.bf16.mxu0 0
          %584 = vmatpush1.bf16.msra.mxu0 0
          %585 = vmatprep.subr.bf16.mxu0 0
          %586 = vmatpush1.bf16.msra.mxu0 0
          %587 = vmatprep.subr.bf16.mxu0 0
          %588 = vmatpush1.bf16.msra.mxu0 0
          %589 = vmatprep.subr.bf16.mxu0 0
          %590 = vmatpush1.bf16.msra.mxu0 0
          %591 = vmatprep.subr.bf16.mxu0 0
          %592 = vmatpush1.bf16.msra.mxu0 0
          %593 = vmatprep.subr.bf16.mxu0 0
          %594 = vmatpush1.bf16.msra.mxu0 0
          %595 = vmatprep.subr.bf16.mxu0 0
          %596 = vmatpush1.bf16.msra.mxu0 0
          %597 = vmatprep.subr.bf16.mxu0 0
          %598 = vmatpush1.bf16.msra.mxu0 0
          %599 = vmatprep.subr.bf16.mxu0 0
          %600 = vmatpush1.bf16.msra.mxu0 0
          %601 = vmatprep.subr.bf16.mxu0 0
          %602 = vmatpush1.bf16.msra.mxu0 0
          %603 = vmatprep.subr.bf16.mxu0 0
          %604 = vmatpush1.bf16.msra.mxu0 0
          %605 = vmatprep.subr.bf16.mxu0 0
          %606 = vmatpush1.bf16.msra.mxu0 0
          %607 = vmatprep.subr.bf16.mxu0 0
          %608 = vmatpush1.bf16.msra.mxu0 0
          %609 = vmatprep.subr.bf16.mxu0 0
          %610 = vmatpush1.bf16.msra.mxu0 0
          %611 = vmatprep.mubr.bf16.mxu0 0
          %612 = vmatmul.mubr.bf16.gmra.mrb[0].mxu0 %v577
          %v613 = vpop.f32.mrb[0].mxu0
          %v614 = vadd.f32 0.0, %v613
          %v615 = vpop.f32.mrb[0].mxu0
          %v616 = vpop.f32.mrb[0].mxu0
          %v617 = vpop.f32.mrb[0].mxu0
          %618 = vdwg.mxu0
          %v619 = vpack.c.bf16 %v614, %v614
          %vm620 = vcmask 60416
          %621 = vst.msk [vmem:[#allocation2] sm:$0xf] %vm620, %v619
          %v622 = vld [vmem:[%s8] sm:$0xf]
          %v623 = vld [vmem:[%s8 + $0x4] sm:$0xf]
          %v626 = vunpack.c.l.b16 %v622
          %v627 = vunpack.c.l.b16 %v623
          %v628 = vpack.c.b16 %v627, %v626
          %630 = vmatprep.subr.bf16.mxu0 0
          %631 = vmatpush1.bf16.msra.mxu0 %v628
          %632 = vmatprep.subr.bf16.mxu0 0
          %633 = vmatpush1.bf16.msra.mxu0 0
          %634 = vmatprep.subr.bf16.mxu0 0
          %635 = vmatpush1.bf16.msra.mxu0 0
          %636 = vmatprep.subr.bf16.mxu0 0
          %637 = vmatpush1.bf16.msra.mxu0 0
          %638 = vmatprep.subr.bf16.mxu0 0
          %639 = vmatpush1.bf16.msra.mxu0 0
          %640 = vmatprep.subr.bf16.mxu0 0
          %641 = vmatpush1.bf16.msra.mxu0 0
          %642 = vmatprep.subr.bf16.mxu0 0
          %643 = vmatpush1.bf16.msra.mxu0 0
          %644 = vmatprep.subr.bf16.mxu0 0
          %645 = vmatpush1.bf16.msra.mxu0 0
          %646 = vmatprep.subr.bf16.mxu0 0
          %647 = vmatpush1.bf16.msra.mxu0 0
          %648 = vmatprep.subr.bf16.mxu0 0
          %649 = vmatpush1.bf16.msra.mxu0 0
          %650 = vmatprep.subr.bf16.mxu0 0
          %651 = vmatpush1.bf16.msra.mxu0 0
          %652 = vmatprep.subr.bf16.mxu0 0
          %653 = vmatpush1.bf16.msra.mxu0 0
          %654 = vmatprep.subr.bf16.mxu0 0
          %655 = vmatpush1.bf16.msra.mxu0 0
          %656 = vmatprep.subr.bf16.mxu0 0
          %657 = vmatpush1.bf16.msra.mxu0 0
          %658 = vmatprep.subr.bf16.mxu0 0
          %659 = vmatpush1.bf16.msra.mxu0 0
          %660 = vmatprep.subr.bf16.mxu0 0
          %661 = vmatpush1.bf16.msra.mxu0 0
          %662 = vmatprep.mubr.bf16.mxu0 0
          %663 = vmatmul.mubr.bf16.gmra.mrb[0].mxu0 %v577
          %v664 = vpop.f32.mrb[0].mxu0
          %v665 = vadd.f32 0.0, %v664
          %v666 = vpop.f32.mrb[0].mxu0
          %v667 = vpop.f32.mrb[0].mxu0
          %v668 = vpop.f32.mrb[0].mxu0
          %669 = vdwg.mxu0
          %v670 = vpack.c.bf16 %v665, %v665
          %671 = vst.msk [vmem:[#allocation3] sm:$0xf] %vm620, %v670
          %s672 = scalar_lea.vmem %s7, 8
          %v673 = vld [vmem:[%s672] sm:$0xf]
          %v674 = vld [vmem:[%s672 + $0x4] sm:$0xf]
          %v677 = vunpack.c.l.b16 %v673
          %v678 = vunpack.c.l.b16 %v674
          %v679 = vpack.c.b16 %v678, %v677
          %681 = vmatprep.subr.bf16.mxu0 0
          %682 = vmatpush1.bf16.msra.mxu0 %v679
          %683 = vmatprep.subr.bf16.mxu0 0
          %684 = vmatpush1.bf16.msra.mxu0 0
          %685 = vmatprep.subr.bf16.mxu0 0
          %686 = vmatpush1.bf16.msra.mxu0 0
          %687 = vmatprep.subr.bf16.mxu0 0
          %688 = vmatpush1.bf16.msra.mxu0 0
          %689 = vmatprep.subr.bf16.mxu0 0
          %690 = vmatpush1.bf16.msra.mxu0 0
          %691 = vmatprep.subr.bf16.mxu0 0
          %692 = vmatpush1.bf16.msra.mxu0 0
          %693 = vmatprep.subr.bf16.mxu0 0
          %694 = vmatpush1.bf16.msra.mxu0 0
          %695 = vmatprep.subr.bf16.mxu0 0
          %696 = vmatpush1.bf16.msra.mxu0 0
          %697 = vmatprep.subr.bf16.mxu0 0
          %698 = vmatpush1.bf16.msra.mxu0 0
          %699 = vmatprep.subr.bf16.mxu0 0
          %700 = vmatpush1.bf16.msra.mxu0 0
          %701 = vmatprep.subr.bf16.mxu0 0
          %702 = vmatpush1.bf16.msra.mxu0 0
          %703 = vmatprep.subr.bf16.mxu0 0
          %704 = vmatpush1.bf16.msra.mxu0 0
          %705 = vmatprep.subr.bf16.mxu0 0
          %706 = vmatpush1.bf16.msra.mxu0 0
          %707 = vmatprep.subr.bf16.mxu0 0
          %708 = vmatpush1.bf16.msra.mxu0 0
          %709 = vmatprep.subr.bf16.mxu0 0
          %710 = vmatpush1.bf16.msra.mxu0 0
          %711 = vmatprep.subr.bf16.mxu0 0
          %712 = vmatpush1.bf16.msra.mxu0 0
          %713 = vmatprep.mubr.bf16.mxu0 0
          %714 = vmatmul.mubr.bf16.gmra.mrb[0].mxu0 %v577
          %v715 = vpop.f32.mrb[0].mxu0
          %v716 = vadd.f32 0.0, %v715
          %v717 = vpop.f32.mrb[0].mxu0
          %v718 = vpop.f32.mrb[0].mxu0
          %v719 = vpop.f32.mrb[0].mxu0
          %720 = vdwg.mxu0
          %v721 = vpack.c.bf16 %v716, %v716
          %s722 = scalar_lea.vmem [#allocation2], 4
          %723 = vst.msk [vmem:[%s722] sm:$0xf] %vm620, %v721
          %s724 = scalar_lea.vmem %s8, 8
          %v725 = vld [vmem:[%s724] sm:$0xf]
          %v726 = vld [vmem:[%s724 + $0x4] sm:$0xf]
          %v729 = vunpack.c.l.b16 %v725
          %v730 = vunpack.c.l.b16 %v726
          %v731 = vpack.c.b16 %v730, %v729
          %733 = vmatprep.subr.bf16.mxu0 0
          %734 = vmatpush1.bf16.msra.mxu0 %v731
          %735 = vmatprep.subr.bf16.mxu0 0
          %736 = vmatpush1.bf16.msra.mxu0 0
          %737 = vmatprep.subr.bf16.mxu0 0
          %738 = vmatpush1.bf16.msra.mxu0 0
          %739 = vmatprep.subr.bf16.mxu0 0
          %740 = vmatpush1.bf16.msra.mxu0 0
          %741 = vmatprep.subr.bf16.mxu0 0
          %742 = vmatpush1.bf16.msra.mxu0 0
          %743 = vmatprep.subr.bf16.mxu0 0
          %744 = vmatpush1.bf16.msra.mxu0 0
          %745 = vmatprep.subr.bf16.mxu0 0
          %746 = vmatpush1.bf16.msra.mxu0 0
          %747 = vmatprep.subr.bf16.mxu0 0
          %748 = vmatpush1.bf16.msra.mxu0 0
          %749 = vmatprep.subr.bf16.mxu0 0
          %750 = vmatpush1.bf16.msra.mxu0 0
          %751 = vmatprep.subr.bf16.mxu0 0
          %752 = vmatpush1.bf16.msra.mxu0 0
          %753 = vmatprep.subr.bf16.mxu0 0
          %754 = vmatpush1.bf16.msra.mxu0 0
          %755 = vmatprep.subr.bf16.mxu0 0
          %756 = vmatpush1.bf16.msra.mxu0 0
          %757 = vmatprep.subr.bf16.mxu0 0
          %758 = vmatpush1.bf16.msra.mxu0 0
          %759 = vmatprep.subr.bf16.mxu0 0
          %760 = vmatpush1.bf16.msra.mxu0 0
          %761 = vmatprep.subr.bf16.mxu0 0
          %762 = vmatpush1.bf16.msra.mxu0 0
          %763 = vmatprep.subr.bf16.mxu0 0
          %764 = vmatpush1.bf16.msra.mxu0 0
          %765 = vmatprep.mubr.bf16.mxu0 0
          %766 = vmatmul.mubr.bf16.gmra.mrb[0].mxu0 %v577
          %v767 = vpop.f32.mrb[0].mxu0
          %v768 = vadd.f32 0.0, %v767
          %v769 = vpop.f32.mrb[0].mxu0
          %v770 = vpop.f32.mrb[0].mxu0
          %v771 = vpop.f32.mrb[0].mxu0
          %772 = vdwg.mxu0
          %v773 = vpack.c.bf16 %v768, %v768
          %s774 = scalar_lea.vmem [#allocation3], 4
          %775 = vst.msk [vmem:[%s774] sm:$0xf] %vm620, %v773
          %s776 = scalar_lea.vmem %s7, 16
          %v777 = vld [vmem:[%s776] sm:$0xf]
          %v778 = vld [vmem:[%s776 + $0x4] sm:$0xf]
          %v781 = vunpack.c.l.b16 %v777
          %v782 = vunpack.c.l.b16 %v778
          %v783 = vpack.c.b16 %v782, %v781
          %785 = vmatprep.subr.bf16.mxu0 0
          %786 = vmatpush1.bf16.msra.mxu0 %v783
          %787 = vmatprep.subr.bf16.mxu0 0
          %788 = vmatpush1.bf16.msra.mxu0 0
          %789 = vmatprep.subr.bf16.mxu0 0
          %790 = vmatpush1.bf16.msra.mxu0 0
          %791 = vmatprep.subr.bf16.mxu0 0
          %792 = vmatpush1.bf16.msra.mxu0 0
          %793 = vmatprep.subr.bf16.mxu0 0
          %794 = vmatpush1.bf16.msra.mxu0 0
          %795 = vmatprep.subr.bf16.mxu0 0
          %796 = vmatpush1.bf16.msra.mxu0 0
          %797 = vmatprep.subr.bf16.mxu0 0
          %798 = vmatpush1.bf16.msra.mxu0 0
          %799 = vmatprep.subr.bf16.mxu0 0
          %800 = vmatpush1.bf16.msra.mxu0 0
          %801 = vmatprep.subr.bf16.mxu0 0
          %802 = vmatpush1.bf16.msra.mxu0 0
          %803 = vmatprep.subr.bf16.mxu0 0
          %804 = vmatpush1.bf16.msra.mxu0 0
          %805 = vmatprep.subr.bf16.mxu0 0
          %806 = vmatpush1.bf16.msra.mxu0 0
          %807 = vmatprep.subr.bf16.mxu0 0
          %808 = vmatpush1.bf16.msra.mxu0 0
          %809 = vmatprep.subr.bf16.mxu0 0
          %810 = vmatpush1.bf16.msra.mxu0 0
          %811 = vmatprep.subr.bf16.mxu0 0
          %812 = vmatpush1.bf16.msra.mxu0 0
          %813 = vmatprep.subr.bf16.mxu0 0
          %814 = vmatpush1.bf16.msra.mxu0 0
          %815 = vmatprep.subr.bf16.mxu0 0
          %816 = vmatpush1.bf16.msra.mxu0 0
          %817 = vmatprep.mubr.bf16.mxu0 0
          %818 = vmatmul.mubr.bf16.gmra.mrb[0].mxu0 %v577
          %v819 = vpop.f32.mrb[0].mxu0
          %v820 = vadd.f32 0.0, %v819
          %v821 = vpop.f32.mrb[0].mxu0
          %v822 = vpop.f32.mrb[0].mxu0
          %v823 = vpop.f32.mrb[0].mxu0
          %824 = vdwg.mxu0
          %v825 = vpack.c.bf16 %v820, %v820
          %s826 = scalar_lea.vmem [#allocation2], 8
          %827 = vst.msk [vmem:[%s826] sm:$0xf] %vm620, %v825
          %s828 = scalar_lea.vmem %s8, 16
          %v829 = vld [vmem:[%s828] sm:$0xf]
          %v830 = vld [vmem:[%s828 + $0x4] sm:$0xf]
          %v833 = vunpack.c.l.b16 %v829
          %v834 = vunpack.c.l.b16 %v830
          %v835 = vpack.c.b16 %v834, %v833
          %837 = vmatprep.subr.bf16.mxu0 0
          %838 = vmatpush1.bf16.msra.mxu0 %v835
          %839 = vmatprep.subr.bf16.mxu0 0
          %840 = vmatpush1.bf16.msra.mxu0 0
          %841 = vmatprep.subr.bf16.mxu0 0
          %842 = vmatpush1.bf16.msra.mxu0 0
          %843 = vmatprep.subr.bf16.mxu0 0
          %844 = vmatpush1.bf16.msra.mxu0 0
          %845 = vmatprep.subr.bf16.mxu0 0
          %846 = vmatpush1.bf16.msra.mxu0 0
          %847 = vmatprep.subr.bf16.mxu0 0
          %848 = vmatpush1.bf16.msra.mxu0 0
          %849 = vmatprep.subr.bf16.mxu0 0
          %850 = vmatpush1.bf16.msra.mxu0 0
          %851 = vmatprep.subr.bf16.mxu0 0
          %852 = vmatpush1.bf16.msra.mxu0 0
          %853 = vmatprep.subr.bf16.mxu0 0
          %854 = vmatpush1.bf16.msra.mxu0 0
          %855 = vmatprep.subr.bf16.mxu0 0
          %856 = vmatpush1.bf16.msra.mxu0 0
          %857 = vmatprep.subr.bf16.mxu0 0
          %858 = vmatpush1.bf16.msra.mxu0 0
          %859 = vmatprep.subr.bf16.mxu0 0
          %860 = vmatpush1.bf16.msra.mxu0 0
          %861 = vmatprep.subr.bf16.mxu0 0
          %862 = vmatpush1.bf16.msra.mxu0 0
          %863 = vmatprep.subr.bf16.mxu0 0
          %864 = vmatpush1.bf16.msra.mxu0 0
          %865 = vmatprep.subr.bf16.mxu0 0
          %866 = vmatpush1.bf16.msra.mxu0 0
          %867 = vmatprep.subr.bf16.mxu0 0
          %868 = vmatpush1.bf16.msra.mxu0 0
          %869 = vmatprep.mubr.bf16.mxu0 0
          %870 = vmatmul.mubr.bf16.gmra.mrb[0].mxu0 %v577
          %v871 = vpop.f32.mrb[0].mxu0
          %v872 = vadd.f32 0.0, %v871
          %v873 = vpop.f32.mrb[0].mxu0
          %v874 = vpop.f32.mrb[0].mxu0
          %v875 = vpop.f32.mrb[0].mxu0
          %876 = vdwg.mxu0
          %v877 = vpack.c.bf16 %v872, %v872
          %s878 = scalar_lea.vmem [#allocation3], 8
          %879 = vst.msk [vmem:[%s878] sm:$0xf] %vm620, %v877
          %s880 = scalar_lea.vmem %s7, 24
          %v881 = vld [vmem:[%s880] sm:$0xf]
          %v882 = vld [vmem:[%s880 + $0x4] sm:$0xf]
          %v885 = vunpack.c.l.b16 %v881
          %v886 = vunpack.c.l.b16 %v882
          %v887 = vpack.c.b16 %v886, %v885
          %889 = vmatprep.subr.bf16.mxu0 0
          %890 = vmatpush1.bf16.msra.mxu0 %v887
          %891 = vmatprep.subr.bf16.mxu0 0
          %892 = vmatpush1.bf16.msra.mxu0 0
          %893 = vmatprep.subr.bf16.mxu0 0
          %894 = vmatpush1.bf16.msra.mxu0 0
          %895 = vmatprep.subr.bf16.mxu0 0
          %896 = vmatpush1.bf16.msra.mxu0 0
          %897 = vmatprep.subr.bf16.mxu0 0
          %898 = vmatpush1.bf16.msra.mxu0 0
          %899 = vmatprep.subr.bf16.mxu0 0
          %900 = vmatpush1.bf16.msra.mxu0 0
          %901 = vmatprep.subr.bf16.mxu0 0
          %902 = vmatpush1.bf16.msra.mxu0 0
          %903 = vmatprep.subr.bf16.mxu0 0
          %904 = vmatpush1.bf16.msra.mxu0 0
          %905 = vmatprep.subr.bf16.mxu0 0
          %906 = vmatpush1.bf16.msra.mxu0 0
          %907 = vmatprep.subr.bf16.mxu0 0
          %908 = vmatpush1.bf16.msra.mxu0 0
          %909 = vmatprep.subr.bf16.mxu0 0
          %910 = vmatpush1.bf16.msra.mxu0 0
          %911 = vmatprep.subr.bf16.mxu0 0
          %912 = vmatpush1.bf16.msra.mxu0 0
          %913 = vmatprep.subr.bf16.mxu0 0
          %914 = vmatpush1.bf16.msra.mxu0 0
          %915 = vmatprep.subr.bf16.mxu0 0
          %916 = vmatpush1.bf16.msra.mxu0 0
          %917 = vmatprep.subr.bf16.mxu0 0
          %918 = vmatpush1.bf16.msra.mxu0 0
          %919 = vmatprep.subr.bf16.mxu0 0
          %920 = vmatpush1.bf16.msra.mxu0 0
          %921 = vmatprep.mubr.bf16.mxu0 0
          %922 = vmatmul.mubr.bf16.gmra.mrb[0].mxu0 %v577
          %v923 = vpop.f32.mrb[0].mxu0
          %v924 = vadd.f32 0.0, %v923
          %v925 = vpop.f32.mrb[0].mxu0
          %v926 = vpop.f32.mrb[0].mxu0
          %v927 = vpop.f32.mrb[0].mxu0
          %928 = vdwg.mxu0
          %v929 = vpack.c.bf16 %v924, %v924
          %s930 = scalar_lea.vmem [#allocation2], 12
          %931 = vst.msk [vmem:[%s930] sm:$0xf] %vm620, %v929
          %s932 = scalar_lea.vmem %s8, 24
          %v933 = vld [vmem:[%s932] sm:$0xf]
          %v934 = vld [vmem:[%s932 + $0x4] sm:$0xf]
          %v937 = vunpack.c.l.b16 %v933
          %v938 = vunpack.c.l.b16 %v934
          %v939 = vpack.c.b16 %v938, %v937
          %941 = vmatprep.subr.bf16.mxu0 0
          %942 = vmatpush1.bf16.msra.mxu0 %v939
          %943 = vmatprep.subr.bf16.mxu0 0
          %944 = vmatpush1.bf16.msra.mxu0 0
          %945 = vmatprep.subr.bf16.mxu0 0
          %946 = vmatpush1.bf16.msra.mxu0 0
          %947 = vmatprep.subr.bf16.mxu0 0
          %948 = vmatpush1.bf16.msra.mxu0 0
          %949 = vmatprep.subr.bf16.mxu0 0
          %950 = vmatpush1.bf16.msra.mxu0 0
          %951 = vmatprep.subr.bf16.mxu0 0
          %952 = vmatpush1.bf16.msra.mxu0 0
          %953 = vmatprep.subr.bf16.mxu0 0
          %954 = vmatpush1.bf16.msra.mxu0 0
          %955 = vmatprep.subr.bf16.mxu0 0
          %956 = vmatpush1.bf16.msra.mxu0 0
          %957 = vmatprep.subr.bf16.mxu0 0
          %958 = vmatpush1.bf16.msra.mxu0 0
          %959 = vmatprep.subr.bf16.mxu0 0
          %960 = vmatpush1.bf16.msra.mxu0 0
          %961 = vmatprep.subr.bf16.mxu0 0
          %962 = vmatpush1.bf16.msra.mxu0 0
          %963 = vmatprep.subr.bf16.mxu0 0
          %964 = vmatpush1.bf16.msra.mxu0 0
          %965 = vmatprep.subr.bf16.mxu0 0
          %966 = vmatpush1.bf16.msra.mxu0 0
          %967 = vmatprep.subr.bf16.mxu0 0
          %968 = vmatpush1.bf16.msra.mxu0 0
          %969 = vmatprep.subr.bf16.mxu0 0
          %970 = vmatpush1.bf16.msra.mxu0 0
          %971 = vmatprep.subr.bf16.mxu0 0
          %972 = vmatpush1.bf16.msra.mxu0 0
          %973 = vmatprep.mubr.bf16.mxu0 0
          %974 = vmatmul.mubr.bf16.gmra.mrb[0].mxu0 %v577
          %v975 = vpop.f32.mrb[0].mxu0
          %v976 = vadd.f32 0.0, %v975
          %v977 = vpop.f32.mrb[0].mxu0
          %v978 = vpop.f32.mrb[0].mxu0
          %v979 = vpop.f32.mrb[0].mxu0
          %980 = vdwg.mxu0
          %v981 = vpack.c.bf16 %v976, %v976
          %s982 = scalar_lea.vmem [#allocation3], 12
          %983 = vst.msk [vmem:[%s982] sm:$0xf] %vm620, %v981
        $region88: #{tpu_custom_call.1} parent=79 // pred_fallthru
          _
        %v984 = vld [vmem:[%s4] sm:$0x1]
        %v985 = vld [vmem:[%s545] sm:$0xff]
        %v986 = vstv %s548
        %v987 = vmul.f32 %v986, %v985
        %v988 = vtanh.pop %v987
        %v990 = vlaneseq
        %v991 = vshrl.u32 %v990, 7
        %v992 = vsub.s32 0, %v991
        %v993 = vrot.slane %v984, %v992
        %v995 = vmul.f32 %v993, %v988
        %v996 = vpack.c.bf16 %v995, %v995
        %v997 = vld [vmem:[%s6] sm:$0xf]
        %v998 = vld [vmem:[%s6 + $0x4] sm:$0xf]
        %v1001 = vunpack.c.l.b16 %v997
        %v1002 = vunpack.c.l.b16 %v998
        %v1003 = vpack.c.b16 %v1002, %v1001
        %vm1005 = vcmask 130048
        %v1007 = vsel %vm1005, %v996, 0
        %1009 = vmatprep.subr.bf16.mxu0 0
        %1010 = vmatpush1.bf16.msra.mxu0 %v1003
        %1011 = vmatprep.subr.bf16.mxu0 0
        %1012 = vmatpush1.bf16.msra.mxu0 0
        %1013 = vmatprep.subr.bf16.mxu0 0
        %1014 = vmatpush1.bf16.msra.mxu0 0
        %1015 = vmatprep.subr.bf16.mxu0 0
        %1016 = vmatpush1.bf16.msra.mxu0 0
        %1017 = vmatprep.subr.bf16.mxu0 0
        %1018 = vmatpush1.bf16.msra.mxu0 0
        %1019 = vmatprep.subr.bf16.mxu0 0
        %1020 = vmatpush1.bf16.msra.mxu0 0
        %1021 = vmatprep.subr.bf16.mxu0 0
        %1022 = vmatpush1.bf16.msra.mxu0 0
        %1023 = vmatprep.subr.bf16.mxu0 0
        %1024 = vmatpush1.bf16.msra.mxu0 0
        %1025 = vmatprep.subr.bf16.mxu0 0
        %1026 = vmatpush1.bf16.msra.mxu0 0
        %1027 = vmatprep.subr.bf16.mxu0 0
        %1028 = vmatpush1.bf16.msra.mxu0 0
        %1029 = vmatprep.subr.bf16.mxu0 0
        %1030 = vmatpush1.bf16.msra.mxu0 0
        %1031 = vmatprep.subr.bf16.mxu0 0
        %1032 = vmatpush1.bf16.msra.mxu0 0
        %1033 = vmatprep.subr.bf16.mxu0 0
        %1034 = vmatpush1.bf16.msra.mxu0 0
        %1035 = vmatprep.subr.bf16.mxu0 0
        %1036 = vmatpush1.bf16.msra.mxu0 0
        %1037 = vmatprep.subr.bf16.mxu0 0
        %1038 = vmatpush1.bf16.msra.mxu0 0
        %1039 = vmatprep.subr.bf16.mxu0 0
        %1040 = vmatpush1.bf16.msra.mxu0 0
        %1041 = vmatprep.mubr.bf16.mxu0 0
        %1042 = vmatmul.mubr.bf16.gmra.mrb[0].mxu0 %v1007
        %v1043 = vpop.f32.mrb[0].mxu0
        %v1044 = vadd.f32 0.0, %v1043
        %v1045 = vpop.f32.mrb[0].mxu0
        %v1046 = vpop.f32.mrb[0].mxu0
        %v1047 = vpop.f32.mrb[0].mxu0
        %1048 = vdwg.mxu0
        %v1049 = vpack.c.bf16 %v1044, %v1044
        %v1050 = vld [vmem:[#allocation2] sm:$0xf]
        %vm1051 = vcmask 64512
        %v1053 = vsel %vm1051, %v1049, 0
        %v1056 = vsel %vm1051, %v1050, 0
        %1058 = vmatprep.subr.bf16.mxu0 0
        %1059 = vmatpush1.bf16.xpose.msra.mxu0 %v1056
        %1060 = vmatprep.subr.bf16.mxu0 0
        %1061 = vmatpush1.bf16.xpose.msra.mxu0 0
        %1062 = vmatprep.subr.bf16.mxu0 0
        %1063 = vmatpush1.bf16.xpose.msra.mxu0 0
        %1064 = vmatprep.subr.bf16.mxu0 0
        %1065 = vmatpush1.bf16.xpose.msra.mxu0 0
        %1066 = vmatprep.subr.bf16.mxu0 0
        %1067 = vmatpush1.bf16.xpose.msra.mxu0 0
        %1068 = vmatprep.subr.bf16.mxu0 0
        %1069 = vmatpush1.bf16.xpose.msra.mxu0 0
        %1070 = vmatprep.subr.bf16.mxu0 0
        %1071 = vmatpush1.bf16.xpose.msra.mxu0 0
        %1072 = vmatprep.subr.bf16.mxu0 0
        %1073 = vmatpush1.bf16.xpose.msra.mxu0 0
        %1074 = vmatprep.subr.bf16.mxu0 0
        %1075 = vmatpush1.bf16.xpose.msra.mxu0 0
        %1076 = vmatprep.subr.bf16.mxu0 0
        %1077 = vmatpush1.bf16.xpose.msra.mxu0 0
        %1078 = vmatprep.subr.bf16.mxu0 0
        %1079 = vmatpush1.bf16.xpose.msra.mxu0 0
        %1080 = vmatprep.subr.bf16.mxu0 0
        %1081 = vmatpush1.bf16.xpose.msra.mxu0 0
        %1082 = vmatprep.subr.bf16.mxu0 0
        %1083 = vmatpush1.bf16.xpose.msra.mxu0 0
        %1084 = vmatprep.subr.bf16.mxu0 0
        %1085 = vmatpush1.bf16.xpose.msra.mxu0 0
        %1086 = vmatprep.subr.bf16.mxu0 0
        %1087 = vmatpush1.bf16.xpose.msra.mxu0 0
        %1088 = vmatprep.subr.bf16.mxu0 0
        %1089 = vmatpush1.bf16.xpose.msra.mxu0 0
        %1090 = vmatprep.mubr.bf16.mxu0 0
        %1091 = vmatmul.mubr.bf16.gmra.mrb[0].mxu0 %v1053
        %v1092 = vpop.f32.mrb[0].mxu0
        %v1093 = vadd.f32 0.0, %v1092
        %v1094 = vpop.f32.mrb[0].mxu0
        %v1095 = vpop.f32.mrb[0].mxu0
        %v1096 = vpop.f32.mrb[0].mxu0
        %1097 = vdwg.mxu0
        %v1098 = vsel %vm1051, %v1093, -inf
        %1099 = vmax.xlane.f32.xlu0 %v1098
        %v1100 = vpop.xlane.xlu0 %1099
        %v1101 = vsub.f32 %v1093, %v1100
        %v1102 = vmul.f32 %v1101, 1.442695
        %v1103 = vpow.pop %v1102
        %v1104 = vsel %vm1051, %v1103, 0.0
        %1105 = vadd.xlane.f32.xlu0 %v1104
        %v1106 = vpop.xlane.xlu0 %1105
        %v1107 = vpack.c.bf16 %v1103, %v1103
        %v1108 = vld [vmem:[#allocation3] sm:$0xf]
        %v1110 = vsel %vm1051, %v1107, 0
        %vm1112 = vcmask 1043456
        %v1114 = vsel %vm1112, %v1108, 0
        %1116 = vmatprep.subr.bf16.mxu0 0
        %1117 = vmatpush1.bf16.msra.mxu0 %v1114
        %1118 = vmatprep.subr.bf16.mxu0 0
        %1119 = vmatpush1.bf16.msra.mxu0 0
        %1120 = vmatprep.subr.bf16.mxu0 0
        %1121 = vmatpush1.bf16.msra.mxu0 0
        %1122 = vmatprep.subr.bf16.mxu0 0
        %1123 = vmatpush1.bf16.msra.mxu0 0
        %1124 = vmatprep.subr.bf16.mxu0 0
        %1125 = vmatpush1.bf16.msra.mxu0 0
        %1126 = vmatprep.subr.bf16.mxu0 0
        %1127 = vmatpush1.bf16.msra.mxu0 0
        %1128 = vmatprep.subr.bf16.mxu0 0
        %1129 = vmatpush1.bf16.msra.mxu0 0
        %1130 = vmatprep.subr.bf16.mxu0 0
        %1131 = vmatpush1.bf16.msra.mxu0 0
        %1132 = vmatprep.subr.bf16.mxu0 0
        %1133 = vmatpush1.bf16.msra.mxu0 0
        %1134 = vmatprep.subr.bf16.mxu0 0
        %1135 = vmatpush1.bf16.msra.mxu0 0
        %1136 = vmatprep.subr.bf16.mxu0 0
        %1137 = vmatpush1.bf16.msra.mxu0 0
        %1138 = vmatprep.subr.bf16.mxu0 0
        %1139 = vmatpush1.bf16.msra.mxu0 0
        %1140 = vmatprep.subr.bf16.mxu0 0
        %1141 = vmatpush1.bf16.msra.mxu0 0
        %1142 = vmatprep.subr.bf16.mxu0 0
        %1143 = vmatpush1.bf16.msra.mxu0 0
        %1144 = vmatprep.subr.bf16.mxu0 0
        %1145 = vmatpush1.bf16.msra.mxu0 0
        %1146 = vmatprep.subr.bf16.mxu0 0
        %1147 = vmatpush1.bf16.msra.mxu0 0
        %1148 = vmatprep.mubr.bf16.mxu0 0
        %1149 = vmatmul.mubr.bf16.gmra.mrb[0].mxu0 %v1110
        %v1150 = vpop.f32.mrb[0].mxu0
        %v1151 = vadd.f32 0.0, %v1150
        %v1152 = vpop.f32.mrb[0].mxu0
        %v1153 = vpop.f32.mrb[0].mxu0
        %v1154 = vpop.f32.mrb[0].mxu0
        %1155 = vdwg.mxu0
        %v1156 = vrcp.pop %v1106
        %v1157 = vmul.f32 %v1151, %v1156
        %v1158 = vpack.c.bf16 %v1157, %v1157
        %v1159 = vld [vmem:[%s9] sm:$0xf]
        %s1160 = scalar_lea.vmem %s6, 8
        %v1161 = vld [vmem:[%s1160] sm:$0xf]
        %v1162 = vld [vmem:[%s1160 + $0x4] sm:$0xf]
        %v1165 = vunpack.c.l.b16 %v1161
        %v1166 = vunpack.c.l.b16 %v1162
        %v1167 = vpack.c.b16 %v1166, %v1165
        %1169 = vmatprep.subr.bf16.mxu0 0
        %1170 = vmatpush1.bf16.msra.mxu0 %v1167
        %1171 = vmatprep.subr.bf16.mxu0 0
        %1172 = vmatpush1.bf16.msra.mxu0 0
        %1173 = vmatprep.subr.bf16.mxu0 0
        %1174 = vmatpush1.bf16.msra.mxu0 0
        %1175 = vmatprep.subr.bf16.mxu0 0
        %1176 = vmatpush1.bf16.msra.mxu0 0
        %1177 = vmatprep.subr.bf16.mxu0 0
        %1178 = vmatpush1.bf16.msra.mxu0 0
        %1179 = vmatprep.subr.bf16.mxu0 0
        %1180 = vmatpush1.bf16.msra.mxu0 0
        %1181 = vmatprep.subr.bf16.mxu0 0
        %1182 = vmatpush1.bf16.msra.mxu0 0
        %1183 = vmatprep.subr.bf16.mxu0 0
        %1184 = vmatpush1.bf16.msra.mxu0 0
        %1185 = vmatprep.subr.bf16.mxu0 0
        %1186 = vmatpush1.bf16.msra.mxu0 0
        %1187 = vmatprep.subr.bf16.mxu0 0
        %1188 = vmatpush1.bf16.msra.mxu0 0
        %1189 = vmatprep.subr.bf16.mxu0 0
        %1190 = vmatpush1.bf16.msra.mxu0 0
        %1191 = vmatprep.subr.bf16.mxu0 0
        %1192 = vmatpush1.bf16.msra.mxu0 0
        %1193 = vmatprep.subr.bf16.mxu0 0
        %1194 = vmatpush1.bf16.msra.mxu0 0
        %1195 = vmatprep.subr.bf16.mxu0 0
        %1196 = vmatpush1.bf16.msra.mxu0 0
        %1197 = vmatprep.subr.bf16.mxu0 0
        %1198 = vmatpush1.bf16.msra.mxu0 0
        %1199 = vmatprep.subr.bf16.mxu0 0
        %1200 = vmatpush1.bf16.msra.mxu0 0
        %1201 = vmatprep.mubr.bf16.mxu0 0
        %1202 = vmatmul.mubr.bf16.gmra.mrb[0].mxu0 %v1007
        %v1203 = vpop.f32.mrb[0].mxu0
        %v1204 = vadd.f32 0.0, %v1203
        %v1205 = vpop.f32.mrb[0].mxu0
        %v1206 = vpop.f32.mrb[0].mxu0
        %v1207 = vpop.f32.mrb[0].mxu0
        %1208 = vdwg.mxu0
        %v1209 = vpack.c.bf16 %v1204, %v1204
        %s1210 = scalar_lea.vmem [#allocation2], 4
        %v1211 = vld [vmem:[%s1210] sm:$0xf]
        %v1213 = vsel %vm1051, %v1209, 0
        %v1216 = vsel %vm1051, %v1211, 0
        %1218 = vmatprep.subr.bf16.mxu0 0
        %1219 = vmatpush1.bf16.xpose.msra.mxu0 %v1216
        %1220 = vmatprep.subr.bf16.mxu0 0
        %1221 = vmatpush1.bf16.xpose.msra.mxu0 0
        %1222 = vmatprep.subr.bf16.mxu0 0
        %1223 = vmatpush1.bf16.xpose.msra.mxu0 0
        %1224 = vmatprep.subr.bf16.mxu0 0
        %1225 = vmatpush1.bf16.xpose.msra.mxu0 0
        %1226 = vmatprep.subr.bf16.mxu0 0
        %1227 = vmatpush1.bf16.xpose.msra.mxu0 0
        %1228 = vmatprep.subr.bf16.mxu0 0
        %1229 = vmatpush1.bf16.xpose.msra.mxu0 0
        %1230 = vmatprep.subr.bf16.mxu0 0
        %1231 = vmatpush1.bf16.xpose.msra.mxu0 0
        %1232 = vmatprep.subr.bf16.mxu0 0
        %1233 = vmatpush1.bf16.xpose.msra.mxu0 0
        %1234 = vmatprep.subr.bf16.mxu0 0
        %1235 = vmatpush1.bf16.xpose.msra.mxu0 0
        %1236 = vmatprep.subr.bf16.mxu0 0
        %1237 = vmatpush1.bf16.xpose.msra.mxu0 0
        %1238 = vmatprep.subr.bf16.mxu0 0
        %1239 = vmatpush1.bf16.xpose.msra.mxu0 0
        %1240 = vmatprep.subr.bf16.mxu0 0
        %1241 = vmatpush1.bf16.xpose.msra.mxu0 0
        %1242 = vmatprep.subr.bf16.mxu0 0
        %1243 = vmatpush1.bf16.xpose.msra.mxu0 0
        %1244 = vmatprep.subr.bf16.mxu0 0
        %1245 = vmatpush1.bf16.xpose.msra.mxu0 0
        %1246 = vmatprep.subr.bf16.mxu0 0
        %1247 = vmatpush1.bf16.xpose.msra.mxu0 0
        %1248 = vmatprep.subr.bf16.mxu0 0
        %1249 = vmatpush1.bf16.xpose.msra.mxu0 0
        %1250 = vmatprep.mubr.bf16.mxu0 0
        %1251 = vmatmul.mubr.bf16.gmra.mrb[0].mxu0 %v1213
        %v1252 = vpop.f32.mrb[0].mxu0
        %v1253 = vadd.f32 0.0, %v1252
        %v1254 = vpop.f32.mrb[0].mxu0
        %v1255 = vpop.f32.mrb[0].mxu0
        %v1256 = vpop.f32.mrb[0].mxu0
        %1257 = vdwg.mxu0
        %v1258 = vsel %vm1051, %v1253, -inf
        %1259 = vmax.xlane.f32.xlu0 %v1258
        %v1260 = vpop.xlane.xlu0 %1259
        %v1261 = vsub.f32 %v1253, %v1260
        %v1262 = vmul.f32 %v1261, 1.442695
        %v1263 = vpow.pop %v1262
        %v1264 = vsel %vm1051, %v1263, 0.0
        %1265 = vadd.xlane.f32.xlu0 %v1264
        %v1266 = vpop.xlane.xlu0 %1265
        %v1267 = vpack.c.bf16 %v1263, %v1263
        %s1268 = scalar_lea.vmem [#allocation3], 4
        %v1269 = vld [vmem:[%s1268] sm:$0xf]
        %v1271 = vsel %vm1051, %v1267, 0
        %v1274 = vsel %vm1112, %v1269, 0
        %1276 = vmatprep.subr.bf16.mxu0 0
        %1277 = vmatpush1.bf16.msra.mxu0 %v1274
        %1278 = vmatprep.subr.bf16.mxu0 0
        %1279 = vmatpush1.bf16.msra.mxu0 0
        %1280 = vmatprep.subr.bf16.mxu0 0
        %1281 = vmatpush1.bf16.msra.mxu0 0
        %1282 = vmatprep.subr.bf16.mxu0 0
        %1283 = vmatpush1.bf16.msra.mxu0 0
        %1284 = vmatprep.subr.bf16.mxu0 0
        %1285 = vmatpush1.bf16.msra.mxu0 0
        %1286 = vmatprep.subr.bf16.mxu0 0
        %1287 = vmatpush1.bf16.msra.mxu0 0
        %1288 = vmatprep.subr.bf16.mxu0 0
        %1289 = vmatpush1.bf16.msra.mxu0 0
        %1290 = vmatprep.subr.bf16.mxu0 0
        %1291 = vmatpush1.bf16.msra.mxu0 0
        %1292 = vmatprep.subr.bf16.mxu0 0
        %1293 = vmatpush1.bf16.msra.mxu0 0
        %1294 = vmatprep.subr.bf16.mxu0 0
        %1295 = vmatpush1.bf16.msra.mxu0 0
        %1296 = vmatprep.subr.bf16.mxu0 0
        %1297 = vmatpush1.bf16.msra.mxu0 0
        %1298 = vmatprep.subr.bf16.mxu0 0
        %1299 = vmatpush1.bf16.msra.mxu0 0
        %1300 = vmatprep.subr.bf16.mxu0 0
        %1301 = vmatpush1.bf16.msra.mxu0 0
        %1302 = vmatprep.subr.bf16.mxu0 0
        %1303 = vmatpush1.bf16.msra.mxu0 0
        %1304 = vmatprep.subr.bf16.mxu0 0
        %1305 = vmatpush1.bf16.msra.mxu0 0
        %1306 = vmatprep.subr.bf16.mxu0 0
        %1307 = vmatpush1.bf16.msra.mxu0 0
        %1308 = vmatprep.mubr.bf16.mxu0 0
        %1309 = vmatmul.mubr.bf16.gmra.mrb[0].mxu0 %v1271
        %v1310 = vpop.f32.mrb[0].mxu0
        %v1311 = vadd.f32 0.0, %v1310
        %v1312 = vpop.f32.mrb[0].mxu0
        %v1313 = vpop.f32.mrb[0].mxu0
        %v1314 = vpop.f32.mrb[0].mxu0
        %1315 = vdwg.mxu0
        %v1316 = vrcp.pop %v1266
        %v1317 = vmul.f32 %v1311, %v1316
        %v1318 = vpack.c.bf16 %v1317, %v1317
        %s1319 = scalar_lea.vmem %s9, 4
        %v1320 = vld [vmem:[%s1319] sm:$0xf]
        %v1322 = vsel %vm1051, %v1318, 0
        %v1325 = vsel %vm1112, %v1320, 0
        %1327 = vmatprep.subr.bf16.mxu0 0
        %1328 = vmatpush1.bf16.msra.mxu0 %v1325
        %1329 = vmatprep.subr.bf16.mxu0 0
        %1330 = vmatpush1.bf16.msra.mxu0 0
        %1331 = vmatprep.subr.bf16.mxu0 0
        %1332 = vmatpush1.bf16.msra.mxu0 0
        %1333 = vmatprep.subr.bf16.mxu0 0
        %1334 = vmatpush1.bf16.msra.mxu0 0
        %1335 = vmatprep.subr.bf16.mxu0 0
        %1336 = vmatpush1.bf16.msra.mxu0 0
        %1337 = vmatprep.subr.bf16.mxu0 0
        %1338 = vmatpush1.bf16.msra.mxu0 0
        %1339 = vmatprep.subr.bf16.mxu0 0
        %1340 = vmatpush1.bf16.msra.mxu0 0
        %1341 = vmatprep.subr.bf16.mxu0 0
        %1342 = vmatpush1.bf16.msra.mxu0 0
        %1343 = vmatprep.subr.bf16.mxu0 0
        %1344 = vmatpush1.bf16.msra.mxu0 0
        %1345 = vmatprep.subr.bf16.mxu0 0
        %1346 = vmatpush1.bf16.msra.mxu0 0
        %1347 = vmatprep.subr.bf16.mxu0 0
        %1348 = vmatpush1.bf16.msra.mxu0 0
        %1349 = vmatprep.subr.bf16.mxu0 0
        %1350 = vmatpush1.bf16.msra.mxu0 0
        %1351 = vmatprep.subr.bf16.mxu0 0
        %1352 = vmatpush1.bf16.msra.mxu0 0
        %1353 = vmatprep.subr.bf16.mxu0 0
        %1354 = vmatpush1.bf16.msra.mxu0 0
        %1355 = vmatprep.subr.bf16.mxu0 0
        %1356 = vmatpush1.bf16.msra.mxu0 0
        %1357 = vmatprep.subr.bf16.mxu0 0
        %1358 = vmatpush1.bf16.msra.mxu0 0
        %1359 = vmatprep.mubr.bf16.mxu0 0
        %1360 = vmatmul.mubr.bf16.gmra.mrb[0].mxu0 %v1322
        %v1361 = vpop.f32.mrb[0].mxu0
        %v1362 = vadd.f32 0.0, %v1361
        %v1363 = vpop.f32.mrb[0].mxu0
        %v1364 = vpop.f32.mrb[0].mxu0
        %v1365 = vpop.f32.mrb[0].mxu0
        %1366 = vdwg.mxu0
        %v1368 = vsel %vm1051, %v1158, 0
        %v1371 = vsel %vm1112, %v1159, 0
        %1373 = vmatprep.subr.bf16.mxu0 0
        %1374 = vmatpush1.bf16.msra.mxu0 %v1371
        %1375 = vmatprep.subr.bf16.mxu0 0
        %1376 = vmatpush1.bf16.msra.mxu0 0
        %1377 = vmatprep.subr.bf16.mxu0 0
        %1378 = vmatpush1.bf16.msra.mxu0 0
        %1379 = vmatprep.subr.bf16.mxu0 0
        %1380 = vmatpush1.bf16.msra.mxu0 0
        %1381 = vmatprep.subr.bf16.mxu0 0
        %1382 = vmatpush1.bf16.msra.mxu0 0
        %1383 = vmatprep.subr.bf16.mxu0 0
        %1384 = vmatpush1.bf16.msra.mxu0 0
        %1385 = vmatprep.subr.bf16.mxu0 0
        %1386 = vmatpush1.bf16.msra.mxu0 0
        %1387 = vmatprep.subr.bf16.mxu0 0
        %1388 = vmatpush1.bf16.msra.mxu0 0
        %1389 = vmatprep.subr.bf16.mxu0 0
        %1390 = vmatpush1.bf16.msra.mxu0 0
        %1391 = vmatprep.subr.bf16.mxu0 0
        %1392 = vmatpush1.bf16.msra.mxu0 0
        %1393 = vmatprep.subr.bf16.mxu0 0
        %1394 = vmatpush1.bf16.msra.mxu0 0
        %1395 = vmatprep.subr.bf16.mxu0 0
        %1396 = vmatpush1.bf16.msra.mxu0 0
        %1397 = vmatprep.subr.bf16.mxu0 0
        %1398 = vmatpush1.bf16.msra.mxu0 0
        %1399 = vmatprep.subr.bf16.mxu0 0
        %1400 = vmatpush1.bf16.msra.mxu0 0
        %1401 = vmatprep.subr.bf16.mxu0 0
        %1402 = vmatpush1.bf16.msra.mxu0 0
        %1403 = vmatprep.subr.bf16.mxu0 0
        %1404 = vmatpush1.bf16.msra.mxu0 0
        %1405 = vmatprep.mubr.bf16.mxu0 0
        %1406 = vmatmul.mubr.bf16.gmra.mrb[0].mxu0 %v1368
        %v1407 = vpop.f32.mrb[0].mxu0
        %v1408 = vadd.f32 %v1362, %v1407
        %v1409 = vpop.f32.mrb[0].mxu0
        %v1410 = vpop.f32.mrb[0].mxu0
        %v1411 = vpop.f32.mrb[0].mxu0
        %1412 = vdwg.mxu0
        %s1413 = scalar_lea.vmem %s6, 16
        %v1414 = vld [vmem:[%s1413] sm:$0xf]
        %v1415 = vld [vmem:[%s1413 + $0x4] sm:$0xf]
        %v1418 = vunpack.c.l.b16 %v1414
        %v1419 = vunpack.c.l.b16 %v1415
        %v1420 = vpack.c.b16 %v1419, %v1418
        %1422 = vmatprep.subr.bf16.mxu0 0
        %1423 = vmatpush1.bf16.msra.mxu0 %v1420
        %1424 = vmatprep.subr.bf16.mxu0 0
        %1425 = vmatpush1.bf16.msra.mxu0 0
        %1426 = vmatprep.subr.bf16.mxu0 0
        %1427 = vmatpush1.bf16.msra.mxu0 0
        %1428 = vmatprep.subr.bf16.mxu0 0
        %1429 = vmatpush1.bf16.msra.mxu0 0
        %1430 = vmatprep.subr.bf16.mxu0 0
        %1431 = vmatpush1.bf16.msra.mxu0 0
        %1432 = vmatprep.subr.bf16.mxu0 0
        %1433 = vmatpush1.bf16.msra.mxu0 0
        %1434 = vmatprep.subr.bf16.mxu0 0
        %1435 = vmatpush1.bf16.msra.mxu0 0
        %1436 = vmatprep.subr.bf16.mxu0 0
        %1437 = vmatpush1.bf16.msra.mxu0 0
        %1438 = vmatprep.subr.bf16.mxu0 0
        %1439 = vmatpush1.bf16.msra.mxu0 0
        %1440 = vmatprep.subr.bf16.mxu0 0
        %1441 = vmatpush1.bf16.msra.mxu0 0
        %1442 = vmatprep.subr.bf16.mxu0 0
        %1443 = vmatpush1.bf16.msra.mxu0 0
        %1444 = vmatprep.subr.bf16.mxu0 0
        %1445 = vmatpush1.bf16.msra.mxu0 0
        %1446 = vmatprep.subr.bf16.mxu0 0
        %1447 = vmatpush1.bf16.msra.mxu0 0
        %1448 = vmatprep.subr.bf16.mxu0 0
        %1449 = vmatpush1.bf16.msra.mxu0 0
        %1450 = vmatprep.subr.bf16.mxu0 0
        %1451 = vmatpush1.bf16.msra.mxu0 0
        %1452 = vmatprep.subr.bf16.mxu0 0
        %1453 = vmatpush1.bf16.msra.mxu0 0
        %1454 = vmatprep.mubr.bf16.mxu0 0
        %1455 = vmatmul.mubr.bf16.gmra.mrb[0].mxu0 %v1007
        %v1456 = vpop.f32.mrb[0].mxu0
        %v1457 = vadd.f32 0.0, %v1456
        %v1458 = vpop.f32.mrb[0].mxu0
        %v1459 = vpop.f32.mrb[0].mxu0
        %v1460 = vpop.f32.mrb[0].mxu0
        %1461 = vdwg.mxu0
        %v1462 = vpack.c.bf16 %v1457, %v1457
        %s1463 = scalar_lea.vmem [#allocation2], 8
        %v1464 = vld [vmem:[%s1463] sm:$0xf]
        %v1466 = vsel %vm1051, %v1462, 0
        %v1469 = vsel %vm1051, %v1464, 0
        %1471 = vmatprep.subr.bf16.mxu0 0
        %1472 = vmatpush1.bf16.xpose.msra.mxu0 %v1469
        %1473 = vmatprep.subr.bf16.mxu0 0
        %1474 = vmatpush1.bf16.xpose.msra.mxu0 0
        %1475 = vmatprep.subr.bf16.mxu0 0
        %1476 = vmatpush1.bf16.xpose.msra.mxu0 0
        %1477 = vmatprep.subr.bf16.mxu0 0
        %1478 = vmatpush1.bf16.xpose.msra.mxu0 0
        %1479 = vmatprep.subr.bf16.mxu0 0
        %1480 = vmatpush1.bf16.xpose.msra.mxu0 0
        %1481 = vmatprep.subr.bf16.mxu0 0
        %1482 = vmatpush1.bf16.xpose.msra.mxu0 0
        %1483 = vmatprep.subr.bf16.mxu0 0
        %1484 = vmatpush1.bf16.xpose.msra.mxu0 0
        %1485 = vmatprep.subr.bf16.mxu0 0
        %1486 = vmatpush1.bf16.xpose.msra.mxu0 0
        %1487 = vmatprep.subr.bf16.mxu0 0
        %1488 = vmatpush1.bf16.xpose.msra.mxu0 0
        %1489 = vmatprep.subr.bf16.mxu0 0
        %1490 = vmatpush1.bf16.xpose.msra.mxu0 0
        %1491 = vmatprep.subr.bf16.mxu0 0
        %1492 = vmatpush1.bf16.xpose.msra.mxu0 0
        %1493 = vmatprep.subr.bf16.mxu0 0
        %1494 = vmatpush1.bf16.xpose.msra.mxu0 0
        %1495 = vmatprep.subr.bf16.mxu0 0
        %1496 = vmatpush1.bf16.xpose.msra.mxu0 0
        %1497 = vmatprep.subr.bf16.mxu0 0
        %1498 = vmatpush1.bf16.xpose.msra.mxu0 0
        %1499 = vmatprep.subr.bf16.mxu0 0
        %1500 = vmatpush1.bf16.xpose.msra.mxu0 0
        %1501 = vmatprep.subr.bf16.mxu0 0
        %1502 = vmatpush1.bf16.xpose.msra.mxu0 0
        %1503 = vmatprep.mubr.bf16.mxu0 0
        %1504 = vmatmul.mubr.bf16.gmra.mrb[0].mxu0 %v1466
        %v1505 = vpop.f32.mrb[0].mxu0
        %v1506 = vadd.f32 0.0, %v1505
        %v1507 = vpop.f32.mrb[0].mxu0
        %v1508 = vpop.f32.mrb[0].mxu0
        %v1509 = vpop.f32.mrb[0].mxu0
        %1510 = vdwg.mxu0
        %v1511 = vsel %vm1051, %v1506, -inf
        %1512 = vmax.xlane.f32.xlu0 %v1511
        %v1513 = vpop.xlane.xlu0 %1512
        %v1514 = vsub.f32 %v1506, %v1513
        %v1515 = vmul.f32 %v1514, 1.442695
        %v1516 = vpow.pop %v1515
        %v1517 = vsel %vm1051, %v1516, 0.0
        %1518 = vadd.xlane.f32.xlu0 %v1517
        %v1519 = vpop.xlane.xlu0 %1518
        %v1520 = vpack.c.bf16 %v1516, %v1516
        %s1521 = scalar_lea.vmem [#allocation3], 8
        %v1522 = vld [vmem:[%s1521] sm:$0xf]
        %v1524 = vsel %vm1051, %v1520, 0
        %v1527 = vsel %vm1112, %v1522, 0
        %1529 = vmatprep.subr.bf16.mxu0 0
        %1530 = vmatpush1.bf16.msra.mxu0 %v1527
        %1531 = vmatprep.subr.bf16.mxu0 0
        %1532 = vmatpush1.bf16.msra.mxu0 0
        %1533 = vmatprep.subr.bf16.mxu0 0
        %1534 = vmatpush1.bf16.msra.mxu0 0
        %1535 = vmatprep.subr.bf16.mxu0 0
        %1536 = vmatpush1.bf16.msra.mxu0 0
        %1537 = vmatprep.subr.bf16.mxu0 0
        %1538 = vmatpush1.bf16.msra.mxu0 0
        %1539 = vmatprep.subr.bf16.mxu0 0
        %1540 = vmatpush1.bf16.msra.mxu0 0
        %1541 = vmatprep.subr.bf16.mxu0 0
        %1542 = vmatpush1.bf16.msra.mxu0 0
        %1543 = vmatprep.subr.bf16.mxu0 0
        %1544 = vmatpush1.bf16.msra.mxu0 0
        %1545 = vmatprep.subr.bf16.mxu0 0
        %1546 = vmatpush1.bf16.msra.mxu0 0
        %1547 = vmatprep.subr.bf16.mxu0 0
        %1548 = vmatpush1.bf16.msra.mxu0 0
        %1549 = vmatprep.subr.bf16.mxu0 0
        %1550 = vmatpush1.bf16.msra.mxu0 0
        %1551 = vmatprep.subr.bf16.mxu0 0
        %1552 = vmatpush1.bf16.msra.mxu0 0
        %1553 = vmatprep.subr.bf16.mxu0 0
        %1554 = vmatpush1.bf16.msra.mxu0 0
        %1555 = vmatprep.subr.bf16.mxu0 0
        %1556 = vmatpush1.bf16.msra.mxu0 0
        %1557 = vmatprep.subr.bf16.mxu0 0
        %1558 = vmatpush1.bf16.msra.mxu0 0
        %1559 = vmatprep.subr.bf16.mxu0 0
        %1560 = vmatpush1.bf16.msra.mxu0 0
        %1561 = vmatprep.mubr.bf16.mxu0 0
        %1562 = vmatmul.mubr.bf16.gmra.mrb[0].mxu0 %v1524
        %v1563 = vpop.f32.mrb[0].mxu0
        %v1564 = vadd.f32 0.0, %v1563
        %v1565 = vpop.f32.mrb[0].mxu0
        %v1566 = vpop.f32.mrb[0].mxu0
        %v1567 = vpop.f32.mrb[0].mxu0
        %1568 = vdwg.mxu0
        %v1569 = vrcp.pop %v1519
        %v1570 = vmul.f32 %v1564, %v1569
        %v1571 = vpack.c.bf16 %v1570, %v1570
        %s1572 = scalar_lea.vmem %s9, 8
        %v1573 = vld [vmem:[%s1572] sm:$0xf]
        %v1575 = vsel %vm1051, %v1571, 0
        %v1578 = vsel %vm1112, %v1573, 0
        %1580 = vmatprep.subr.bf16.mxu0 0
        %1581 = vmatpush1.bf16.msra.mxu0 %v1578
        %1582 = vmatprep.subr.bf16.mxu0 0
        %1583 = vmatpush1.bf16.msra.mxu0 0
        %1584 = vmatprep.subr.bf16.mxu0 0
        %1585 = vmatpush1.bf16.msra.mxu0 0
        %1586 = vmatprep.subr.bf16.mxu0 0
        %1587 = vmatpush1.bf16.msra.mxu0 0
        %1588 = vmatprep.subr.bf16.mxu0 0
        %1589 = vmatpush1.bf16.msra.mxu0 0
        %1590 = vmatprep.subr.bf16.mxu0 0
        %1591 = vmatpush1.bf16.msra.mxu0 0
        %1592 = vmatprep.subr.bf16.mxu0 0
        %1593 = vmatpush1.bf16.msra.mxu0 0
        %1594 = vmatprep.subr.bf16.mxu0 0
        %1595 = vmatpush1.bf16.msra.mxu0 0
        %1596 = vmatprep.subr.bf16.mxu0 0
        %1597 = vmatpush1.bf16.msra.mxu0 0
        %1598 = vmatprep.subr.bf16.mxu0 0
        %1599 = vmatpush1.bf16.msra.mxu0 0
        %1600 = vmatprep.subr.bf16.mxu0 0
        %1601 = vmatpush1.bf16.msra.mxu0 0
        %1602 = vmatprep.subr.bf16.mxu0 0
        %1603 = vmatpush1.bf16.msra.mxu0 0
        %1604 = vmatprep.subr.bf16.mxu0 0
        %1605 = vmatpush1.bf16.msra.mxu0 0
        %1606 = vmatprep.subr.bf16.mxu0 0
        %1607 = vmatpush1.bf16.msra.mxu0 0
        %1608 = vmatprep.subr.bf16.mxu0 0
        %1609 = vmatpush1.bf16.msra.mxu0 0
        %1610 = vmatprep.subr.bf16.mxu0 0
        %1611 = vmatpush1.bf16.msra.mxu0 0
        %1612 = vmatprep.mubr.bf16.mxu0 0
        %1613 = vmatmul.mubr.bf16.gmra.mrb[0].mxu0 %v1575
        %v1614 = vpop.f32.mrb[0].mxu0
        %v1615 = vadd.f32 0.0, %v1614
        %v1616 = vpop.f32.mrb[0].mxu0
        %v1617 = vpop.f32.mrb[0].mxu0
        %v1618 = vpop.f32.mrb[0].mxu0
        %1619 = vdwg.mxu0
        %v1620 = vadd.f32 %v1408, %v1615
        %s1621 = scalar_lea.vmem %s6, 24
        %v1622 = vld [vmem:[%s1621] sm:$0xf]
        %v1623 = vld [vmem:[%s1621 + $0x4] sm:$0xf]
        %v1626 = vunpack.c.l.b16 %v1622
        %v1627 = vunpack.c.l.b16 %v1623
        %v1628 = vpack.c.b16 %v1627, %v1626
        %1630 = vmatprep.subr.bf16.mxu0 0
        %1631 = vmatpush1.bf16.msra.mxu0 %v1628
        %1632 = vmatprep.subr.bf16.mxu0 0
        %1633 = vmatpush1.bf16.msra.mxu0 0
        %1634 = vmatprep.subr.bf16.mxu0 0
        %1635 = vmatpush1.bf16.msra.mxu0 0
        %1636 = vmatprep.subr.bf16.mxu0 0
        %1637 = vmatpush1.bf16.msra.mxu0 0
        %1638 = vmatprep.subr.bf16.mxu0 0
        %1639 = vmatpush1.bf16.msra.mxu0 0
        %1640 = vmatprep.subr.bf16.mxu0 0
        %1641 = vmatpush1.bf16.msra.mxu0 0
        %1642 = vmatprep.subr.bf16.mxu0 0
        %1643 = vmatpush1.bf16.msra.mxu0 0
        %1644 = vmatprep.subr.bf16.mxu0 0
        %1645 = vmatpush1.bf16.msra.mxu0 0
        %1646 = vmatprep.subr.bf16.mxu0 0
        %1647 = vmatpush1.bf16.msra.mxu0 0
        %1648 = vmatprep.subr.bf16.mxu0 0
        %1649 = vmatpush1.bf16.msra.mxu0 0
        %1650 = vmatprep.subr.bf16.mxu0 0
        %1651 = vmatpush1.bf16.msra.mxu0 0
        %1652 = vmatprep.subr.bf16.mxu0 0
        %1653 = vmatpush1.bf16.msra.mxu0 0
        %1654 = vmatprep.subr.bf16.mxu0 0
        %1655 = vmatpush1.bf16.msra.mxu0 0
        %1656 = vmatprep.subr.bf16.mxu0 0
        %1657 = vmatpush1.bf16.msra.mxu0 0
        %1658 = vmatprep.subr.bf16.mxu0 0
        %1659 = vmatpush1.bf16.msra.mxu0 0
        %1660 = vmatprep.subr.bf16.mxu0 0
        %1661 = vmatpush1.bf16.msra.mxu0 0
        %1662 = vmatprep.mubr.bf16.mxu0 0
        %1663 = vmatmul.mubr.bf16.gmra.mrb[0].mxu0 %v1007
        %v1664 = vpop.f32.mrb[0].mxu0
        %v1665 = vadd.f32 0.0, %v1664
        %v1666 = vpop.f32.mrb[0].mxu0
        %v1667 = vpop.f32.mrb[0].mxu0
        %v1668 = vpop.f32.mrb[0].mxu0
        %1669 = vdwg.mxu0
        %v1670 = vpack.c.bf16 %v1665, %v1665
        %s1671 = scalar_lea.vmem [#allocation2], 12
        %v1672 = vld [vmem:[%s1671] sm:$0xf]
        %v1674 = vsel %vm1051, %v1670, 0
        %v1677 = vsel %vm1051, %v1672, 0
        %1679 = vmatprep.subr.bf16.mxu0 0
        %1680 = vmatpush1.bf16.xpose.msra.mxu0 %v1677
        %1681 = vmatprep.subr.bf16.mxu0 0
        %1682 = vmatpush1.bf16.xpose.msra.mxu0 0
        %1683 = vmatprep.subr.bf16.mxu0 0
        %1684 = vmatpush1.bf16.xpose.msra.mxu0 0
        %1685 = vmatprep.subr.bf16.mxu0 0
        %1686 = vmatpush1.bf16.xpose.msra.mxu0 0
        %1687 = vmatprep.subr.bf16.mxu0 0
        %1688 = vmatpush1.bf16.xpose.msra.mxu0 0
        %1689 = vmatprep.subr.bf16.mxu0 0
        %1690 = vmatpush1.bf16.xpose.msra.mxu0 0
        %1691 = vmatprep.subr.bf16.mxu0 0
        %1692 = vmatpush1.bf16.xpose.msra.mxu0 0
        %1693 = vmatprep.subr.bf16.mxu0 0
        %1694 = vmatpush1.bf16.xpose.msra.mxu0 0
        %1695 = vmatprep.subr.bf16.mxu0 0
        %1696 = vmatpush1.bf16.xpose.msra.mxu0 0
        %1697 = vmatprep.subr.bf16.mxu0 0
        %1698 = vmatpush1.bf16.xpose.msra.mxu0 0
        %1699 = vmatprep.subr.bf16.mxu0 0
        %1700 = vmatpush1.bf16.xpose.msra.mxu0 0
        %1701 = vmatprep.subr.bf16.mxu0 0
        %1702 = vmatpush1.bf16.xpose.msra.mxu0 0
        %1703 = vmatprep.subr.bf16.mxu0 0
        %1704 = vmatpush1.bf16.xpose.msra.mxu0 0
        %1705 = vmatprep.subr.bf16.mxu0 0
        %1706 = vmatpush1.bf16.xpose.msra.mxu0 0
        %1707 = vmatprep.subr.bf16.mxu0 0
        %1708 = vmatpush1.bf16.xpose.msra.mxu0 0
        %1709 = vmatprep.subr.bf16.mxu0 0
        %1710 = vmatpush1.bf16.xpose.msra.mxu0 0
        %1711 = vmatprep.mubr.bf16.mxu0 0
        %1712 = vmatmul.mubr.bf16.gmra.mrb[0].mxu0 %v1674
        %v1713 = vpop.f32.mrb[0].mxu0
        %v1714 = vadd.f32 0.0, %v1713
        %v1715 = vpop.f32.mrb[0].mxu0
        %v1716 = vpop.f32.mrb[0].mxu0
        %v1717 = vpop.f32.mrb[0].mxu0
        %1718 = vdwg.mxu0
        %v1719 = vsel %vm1051, %v1714, -inf
        %1720 = vmax.xlane.f32.xlu0 %v1719
        %v1721 = vpop.xlane.xlu0 %1720
        %v1722 = vsub.f32 %v1714, %v1721
        %v1723 = vmul.f32 %v1722, 1.442695
        %v1724 = vpow.pop %v1723
        %v1725 = vsel %vm1051, %v1724, 0.0
        %1726 = vadd.xlane.f32.xlu0 %v1725
        %v1727 = vpop.xlane.xlu0 %1726
        %v1728 = vpack.c.bf16 %v1724, %v1724
        %s1729 = scalar_lea.vmem [#allocation3], 12
        %v1730 = vld [vmem:[%s1729] sm:$0xf]
        %v1732 = vsel %vm1051, %v1728, 0
        %v1735 = vsel %vm1112, %v1730, 0
        %1737 = vmatprep.subr.bf16.mxu0 0
        %1738 = vmatpush1.bf16.msra.mxu0 %v1735
        %1739 = vmatprep.subr.bf16.mxu0 0
        %1740 = vmatpush1.bf16.msra.mxu0 0
        %1741 = vmatprep.subr.bf16.mxu0 0
        %1742 = vmatpush1.bf16.msra.mxu0 0
        %1743 = vmatprep.subr.bf16.mxu0 0
        %1744 = vmatpush1.bf16.msra.mxu0 0
        %1745 = vmatprep.subr.bf16.mxu0 0
        %1746 = vmatpush1.bf16.msra.mxu0 0
        %1747 = vmatprep.subr.bf16.mxu0 0
        %1748 = vmatpush1.bf16.msra.mxu0 0
        %1749 = vmatprep.subr.bf16.mxu0 0
        %1750 = vmatpush1.bf16.msra.mxu0 0
        %1751 = vmatprep.subr.bf16.mxu0 0
        %1752 = vmatpush1.bf16.msra.mxu0 0
        %1753 = vmatprep.subr.bf16.mxu0 0
        %1754 = vmatpush1.bf16.msra.mxu0 0
        %1755 = vmatprep.subr.bf16.mxu0 0
        %1756 = vmatpush1.bf16.msra.mxu0 0
        %1757 = vmatprep.subr.bf16.mxu0 0
        %1758 = vmatpush1.bf16.msra.mxu0 0
        %1759 = vmatprep.subr.bf16.mxu0 0
        %1760 = vmatpush1.bf16.msra.mxu0 0
        %1761 = vmatprep.subr.bf16.mxu0 0
        %1762 = vmatpush1.bf16.msra.mxu0 0
        %1763 = vmatprep.subr.bf16.mxu0 0
        %1764 = vmatpush1.bf16.msra.mxu0 0
        %1765 = vmatprep.subr.bf16.mxu0 0
        %1766 = vmatpush1.bf16.msra.mxu0 0
        %1767 = vmatprep.subr.bf16.mxu0 0
        %1768 = vmatpush1.bf16.msra.mxu0 0
        %1769 = vmatprep.mubr.bf16.mxu0 0
        %1770 = vmatmul.mubr.bf16.gmra.mrb[0].mxu0 %v1732
        %v1771 = vpop.f32.mrb[0].mxu0
        %v1772 = vadd.f32 0.0, %v1771
        %v1773 = vpop.f32.mrb[0].mxu0
        %v1774 = vpop.f32.mrb[0].mxu0
        %v1775 = vpop.f32.mrb[0].mxu0
        %1776 = vdwg.mxu0
        %v1777 = vrcp.pop %v1727
        %v1778 = vmul.f32 %v1772, %v1777
        %v1779 = vpack.c.bf16 %v1778, %v1778
        %s1780 = scalar_lea.vmem %s9, 12
        %v1781 = vld [vmem:[%s1780] sm:$0xf]
        %v1783 = vsel %vm1051, %v1779, 0
        %v1786 = vsel %vm1112, %v1781, 0
        %1788 = vmatprep.subr.bf16.mxu0 0
        %1789 = vmatpush1.bf16.msra.mxu0 %v1786
        %1790 = vmatprep.subr.bf16.mxu0 0
        %1791 = vmatpush1.bf16.msra.mxu0 0
        %1792 = vmatprep.subr.bf16.mxu0 0
        %1793 = vmatpush1.bf16.msra.mxu0 0
        %1794 = vmatprep.subr.bf16.mxu0 0
        %1795 = vmatpush1.bf16.msra.mxu0 0
        %1796 = vmatprep.subr.bf16.mxu0 0
        %1797 = vmatpush1.bf16.msra.mxu0 0
        %1798 = vmatprep.subr.bf16.mxu0 0
        %1799 = vmatpush1.bf16.msra.mxu0 0
        %1800 = vmatprep.subr.bf16.mxu0 0
        %1801 = vmatpush1.bf16.msra.mxu0 0
        %1802 = vmatprep.subr.bf16.mxu0 0
        %1803 = vmatpush1.bf16.msra.mxu0 0
        %1804 = vmatprep.subr.bf16.mxu0 0
        %1805 = vmatpush1.bf16.msra.mxu0 0
        %1806 = vmatprep.subr.bf16.mxu0 0
        %1807 = vmatpush1.bf16.msra.mxu0 0
        %1808 = vmatprep.subr.bf16.mxu0 0
        %1809 = vmatpush1.bf16.msra.mxu0 0
        %1810 = vmatprep.subr.bf16.mxu0 0
        %1811 = vmatpush1.bf16.msra.mxu0 0
        %1812 = vmatprep.subr.bf16.mxu0 0
        %1813 = vmatpush1.bf16.msra.mxu0 0
        %1814 = vmatprep.subr.bf16.mxu0 0
        %1815 = vmatpush1.bf16.msra.mxu0 0
        %1816 = vmatprep.subr.bf16.mxu0 0
        %1817 = vmatpush1.bf16.msra.mxu0 0
        %1818 = vmatprep.subr.bf16.mxu0 0
        %1819 = vmatpush1.bf16.msra.mxu0 0
        %1820 = vmatprep.mubr.bf16.mxu0 0
        %1821 = vmatmul.mubr.bf16.gmra.mrb[0].mxu0 %v1783
        %v1822 = vpop.f32.mrb[0].mxu0
        %v1823 = vadd.f32 0.0, %v1822
        %v1824 = vpop.f32.mrb[0].mxu0
        %v1825 = vpop.f32.mrb[0].mxu0
        %v1826 = vpop.f32.mrb[0].mxu0
        %1827 = vdwg.mxu0
        %v1828 = vadd.f32 %v1620, %v1823
        %v1829 = vld [vmem:[%s10] sm:$0x1]
        %v1831 = vlaneseq
        %v1832 = vshrl.u32 %v1831, 7
        %v1833 = vsub.s32 0, %v1832
        %v1834 = vrot.slane %v1829, %v1833
        %v1836 = vadd.f32 %v1828, %v1834
        %v1837 = vld [vmem:[%s5] sm:$0x1]
        %v1838 = vstv %s549
        %v1839 = vmul.f32 %v1838, %v1836
        %v1840 = vtanh.pop %v1839
        %v1842 = vlaneseq
        %v1843 = vshrl.u32 %v1842, 7
        %v1844 = vsub.s32 0, %v1843
        %v1845 = vrot.slane %v1837, %v1844
        %v1847 = vmul.f32 %v1845, %v1840
        %v1848 = vpack.c.bf16 %v1847, %v1847
        %v1849 = vld [vmem:[%s11] sm:$0xf]
        %v1850 = vld [vmem:[%s11 + $0x4] sm:$0xf]
        %v1851 = vld [vmem:[%s11 + $0x8] sm:$0xf]
        %v1852 = vld [vmem:[%s11 + $0xc] sm:$0xf]
        %v1853 = vld [vmem:[%s12] sm:$0x1]
        %v1855 = vlaneseq
        %v1856 = vshrl.u32 %v1855, 7
        %v1857 = vsub.s32 0, %v1856
        %v1858 = vrot.slane %v1853, %v1857
        %v1864 = vunpack.c.l.b16 %v1849
        %v1865 = vunpack.c.l.b16 %v1850
        %v1866 = vunpack.c.l.b16 %v1851
        %v1867 = vunpack.c.l.b16 %v1852
        %v1868 = vpack.c.b16 %v1865, %v1864
        %v1869 = vpack.c.b16 %v1867, %v1866
        %vm1872 = vcmask 261120
        %v1874 = vsel %vm1872, %v1848, 0
        %1876 = vmatprep.subr.bf16.mxu0 0
        %1877 = vmatpush1.bf16.msra.mxu0 %v1868
        %1878 = vmatprep.subr.bf16.mxu0 0
        %1879 = vmatpush1.bf16.msra.mxu0 %v1869
        %1880 = vmatprep.subr.bf16.mxu0 0
        %1881 = vmatpush1.bf16.msra.mxu0 0
        %1882 = vmatprep.subr.bf16.mxu0 0
        %1883 = vmatpush1.bf16.msra.mxu0 0
        %1884 = vmatprep.subr.bf16.mxu0 0
        %1885 = vmatpush1.bf16.msra.mxu0 0
        %1886 = vmatprep.subr.bf16.mxu0 0
        %1887 = vmatpush1.bf16.msra.mxu0 0
        %1888 = vmatprep.subr.bf16.mxu0 0
        %1889 = vmatpush1.bf16.msra.mxu0 0
        %1890 = vmatprep.subr.bf16.mxu0 0
        %1891 = vmatpush1.bf16.msra.mxu0 0
        %1892 = vmatprep.subr.bf16.mxu0 0
        %1893 = vmatpush1.bf16.msra.mxu0 0
        %1894 = vmatprep.subr.bf16.mxu0 0
        %1895 = vmatpush1.bf16.msra.mxu0 0
        %1896 = vmatprep.subr.bf16.mxu0 0
        %1897 = vmatpush1.bf16.msra.mxu0 0
        %1898 = vmatprep.subr.bf16.mxu0 0
        %1899 = vmatpush1.bf16.msra.mxu0 0
        %1900 = vmatprep.subr.bf16.mxu0 0
        %1901 = vmatpush1.bf16.msra.mxu0 0
        %1902 = vmatprep.subr.bf16.mxu0 0
        %1903 = vmatpush1.bf16.msra.mxu0 0
        %1904 = vmatprep.subr.bf16.mxu0 0
        %1905 = vmatpush1.bf16.msra.mxu0 0
        %1906 = vmatprep.subr.bf16.mxu0 0
        %1907 = vmatpush1.bf16.msra.mxu0 0
        %1908 = vmatprep.mubr.bf16.mxu0 0
        %1909 = vmatmul.mubr.bf16.gmra.mrb[0].mxu0 %v1874
        %v1910 = vpop.f32.mrb[0].mxu0
        %v1911 = vadd.f32 %v1858, %v1910
        %v1912 = vpop.f32.mrb[0].mxu0
        %v1913 = vpop.f32.mrb[0].mxu0
        %v1914 = vpop.f32.mrb[0].mxu0
        %1915 = vdwg.mxu0
        %v1916 = vmul.f32 %v1911, 0.5
        %v1917 = vmul.f32 %v1911, 0.70710677
        %v1918 = vmax.f32 %v1917, -4.0
        %v1919 = vmin.f32 %v1918, 4.0
        %v1920 = vmul.f32 %v1919, %v1919
        %v1921 = vmul.f32 %v1920, -2.7261424e-10
        %v1922 = vadd.f32 %v1921, 2.7706815e-08
        %v1923 = vmul.f32 %v1922, %v1920
        %v1924 = vadd.f32 %v1923, -2.101024e-06
        %v1925 = vmul.f32 %v1924, %v1920
        %v1926 = vadd.f32 %v1925, -5.6925062e-05
        %v1927 = vmul.f32 %v1926, %v1920
        %v1928 = vadd.f32 %v1927, -0.00073499064
        %v1929 = vmul.f32 %v1928, %v1920
        %v1930 = vadd.f32 %v1929, -0.0029546
        %v1931 = vmul.f32 %v1930, %v1920
        %v1932 = vadd.f32 %v1931, -0.016096033
        %v1933 = vmul.f32 %v1932, %v1919
        %v1934 = vmul.f32 %v1920, -1.45660715e-05
        %v1935 = vadd.f32 %v1934, -0.00021337405
        %v1936 = vmul.f32 %v1935, %v1920
        %v1937 = vadd.f32 %v1936, -0.001682827
        %v1938 = vmul.f32 %v1937, %v1920
        %v1939 = vadd.f32 %v1938, -0.0073733293
        %v1940 = vmul.f32 %v1939, %v1920
        %v1941 = vadd.f32 %v1940, -0.014264739
        %v1942 = vrcp.pop %v1941
        %v1943 = vmul.f32 %v1933, %v1942
        %v1944 = vadd.f32 %v1943, 1.0
        %v1945 = vmul.f32 %v1916, %v1944
        %v1946 = vpack.c.bf16 %v1945, %v1945
        %v1947 = vld [vmem:[%s13] sm:$0xf]
        %v1948 = vld [vmem:[%s13 + $0x4] sm:$0xf]
        %v1949 = vld [vmem:[%s13 + $0x8] sm:$0xf]
        %v1950 = vld [vmem:[%s13 + $0xc] sm:$0xf]
        %v1951 = vld [vmem:[%s13 + $0x10] sm:$0xf]
        %v1952 = vld [vmem:[%s13 + $0x14] sm:$0xf]
        %v1953 = vld [vmem:[%s13 + $0x18] sm:$0xf]
        %v1954 = vld [vmem:[%s13 + $0x1c] sm:$0xf]
        %v1955 = vld [vmem:[%s14] sm:$0x1]
        %v1957 = vlaneseq
        %v1958 = vshrl.u32 %v1957, 7
        %v1959 = vsub.s32 0, %v1958
        %v1960 = vrot.slane %v1955, %v1959
        %v1970 = vunpack.c.l.b16 %v1947
        %v1971 = vunpack.c.l.b16 %v1948
        %v1972 = vunpack.c.l.b16 %v1949
        %v1973 = vunpack.c.l.b16 %v1950
        %v1974 = vunpack.c.l.b16 %v1951
        %v1975 = vunpack.c.l.b16 %v1952
        %v1976 = vunpack.c.l.b16 %v1953
        %v1977 = vunpack.c.l.b16 %v1954
        %v1978 = vpack.c.b16 %v1971, %v1970
        %v1979 = vpack.c.b16 %v1973, %v1972
        %v1980 = vpack.c.b16 %v1975, %v1974
        %v1981 = vpack.c.b16 %v1977, %v1976
        %vm1986 = vcmask 523264
        %v1988 = vsel %vm1986, %v1946, 0
        %1990 = vmatprep.subr.bf16.mxu0 0
        %1991 = vmatpush1.bf16.msra.mxu0 %v1978
        %1992 = vmatprep.subr.bf16.mxu0 0
        %1993 = vmatpush1.bf16.msra.mxu0 %v1979
        %1994 = vmatprep.subr.bf16.mxu0 0
        %1995 = vmatpush1.bf16.msra.mxu0 %v1980
        %1996 = vmatprep.subr.bf16.mxu0 0
        %1997 = vmatpush1.bf16.msra.mxu0 %v1981
        %1998 = vmatprep.subr.bf16.mxu0 0
        %1999 = vmatpush1.bf16.msra.mxu0 0
        %2000 = vmatprep.subr.bf16.mxu0 0
        %2001 = vmatpush1.bf16.msra.mxu0 0
        %2002 = vmatprep.subr.bf16.mxu0 0
        %2003 = vmatpush1.bf16.msra.mxu0 0
        %2004 = vmatprep.subr.bf16.mxu0 0
        %2005 = vmatpush1.bf16.msra.mxu0 0
        %2006 = vmatprep.subr.bf16.mxu0 0
        %2007 = vmatpush1.bf16.msra.mxu0 0
        %2008 = vmatprep.subr.bf16.mxu0 0
        %2009 = vmatpush1.bf16.msra.mxu0 0
        %2010 = vmatprep.subr.bf16.mxu0 0
        %2011 = vmatpush1.bf16.msra.mxu0 0
        %2012 = vmatprep.subr.bf16.mxu0 0
        %2013 = vmatpush1.bf16.msra.mxu0 0
        %2014 = vmatprep.subr.bf16.mxu0 0
        %2015 = vmatpush1.bf16.msra.mxu0 0
        %2016 = vmatprep.subr.bf16.mxu0 0
        %2017 = vmatpush1.bf16.msra.mxu0 0
        %2018 = vmatprep.subr.bf16.mxu0 0
        %2019 = vmatpush1.bf16.msra.mxu0 0
        %2020 = vmatprep.subr.bf16.mxu0 0
        %2021 = vmatpush1.bf16.msra.mxu0 0
        %2022 = vmatprep.mubr.bf16.mxu0 0
        %2023 = vmatmul.mubr.bf16.gmra.mrb[0].mxu0 %v1988
        %v2024 = vpop.f32.mrb[0].mxu0
        %v2025 = vadd.f32 %v1960, %v2024
        %v2026 = vpop.f32.mrb[0].mxu0
        %v2027 = vpop.f32.mrb[0].mxu0
        %v2028 = vpop.f32.mrb[0].mxu0
        %2029 = vdwg.mxu0
        %v2030 = vadd.f32 %v1836, %v2025
        %2031 = vst.msk [vmem:[%s534] sm:$0xff] %vm1872, %v2030
        %s2032 = sand.u32 %s379, 1
        %s2033 = scalar_lea.sflag [#allocation5], %s2032
        %s2034 = sand.u32 %s379, 1
        %s2035 = smul.addr %s2034, 8
        %s2036 = scalar_lea.vmem [#allocation7], %s2035
        // Predicated region
        $region89: #{tpu_custom_call.1} parent=79 // pred_check
          %p2037 = pneg %p389
        $region90: #{tpu_custom_call.1} parent=79 // pred_check_branch
          %2039 = sbr.rel (%p2037) target = $region92
        $region91: #{tpu_custom_call.1} parent=79 // pred_region
          %s2041 = ssub.s32 128, 128
          %2042 = vsyncadd %s2033, %s2041
          %s2043 = sadd.s32 %s35, %s34
          %s2044 = smul.addr %s2043, 128
          %s2045 = scalar_lea.hbm %s15, %s2044
          %s2047 = sshll.u32 %s2036, 4
          %s2048 = int_to_ptr.vmem [resolvable:$true] %s2047
          %2050 = dma.vmem_to_hbm [thread:$0]  %s2048, 128, %s2045, %s2033
        $region92: #{tpu_custom_call.1} parent=79 // pred_fallthru
          _
      $region80: #{tpu_custom_call.1} parent=5 // pred_fallthru
        _
      %p2051 = scmp.le.s32.totalorder 2, %s25
      // Predicated region
      $region93: #{tpu_custom_call.1} parent=5 // pred_check
        %p2052 = pneg %p2051
      $region94: #{tpu_custom_call.1} parent=5 // pred_check_branch
        %2054 = sbr.rel (%p2052) target = $region96
      $region95: #{tpu_custom_call.1} parent=5 // pred_region
        %s2055 = ssub.s32 %s25, 2
        // Predicated region
        $region97: #{tpu_custom_call.1} parent=95 // pred_check
          %p2056 = pneg %p395
        $region98: #{tpu_custom_call.1} parent=95 // pred_check_branch
          %2058 = sbr.rel (%p2056) target = $region100
        $region99: #{tpu_custom_call.1} parent=95 // pred_region
          %s2059 = sand.u32 %s380, 1
          %s2060 = scalar_lea.sflag [#allocation5], %s2059
          %s2061 = sand.u32 %s380, 1
          %s2062 = smul.addr %s2061, 8
          %s2063 = scalar_lea.vmem [#allocation7], %s2062
          %2064 = dma.done %s2060, 128
        $region100: #{tpu_custom_call.1} parent=95 // pred_fallthru
          _
      $region96: #{tpu_custom_call.1} parent=5 // pred_fallthru
        _
    $region6: #{tpu_custom_call.1} parent=1 // loop_footer
      %s29 = sadd.s32 1, %s25
    $region7: #{tpu_custom_call.1} parent=1 // loop_footer_branch
      %24 = sbr.rel target = $region3
    $region8: #{tpu_custom_call.1} parent=1 // loop_exit
      _
    %2065 = vsyncpa [#allocation5], 1
    %s2066 = scalar_lea.sflag [#allocation5], 1
    %2067 = vsyncpa %s2066, 1
    %2068 = vsyncpa [#allocation6], 1
    %s2069 = scalar_lea.sflag [#allocation6], 1
    %2070 = vsyncpa %s2069, 1

// kernel: tpu_custom_call.1
$region0: #{tpu_custom_call.1}
  #allocation0 [shape = 'u32[]', space=smem, size = 0x4, offset = 0x4, fixed_abs, tag = 'smem constant byte address 0x4 - core index']
  #allocation1 [shape = 'u32[144,128]{1,0:T(1,128)}', space=vmem, size = 0x12000, scoped, tag = 'internal scratch']
  #allocation2 [shape = 'bf16[4,8,8]{2,1,0:T(8,128)(2,1)}', space=vmem, size = 0x2000, scoped, tag = 'scratch operand']
  #allocation3 [shape = 'bf16[4,8,8]{2,1,0:T(8,128)(2,1)}', space=vmem, size = 0x2000, scoped, tag = 'scratch operand']
  %s0 = inlined_call_operand.vmem [shape: f32[3], index: 0, kind: input, shape index: {}]
  %s1 = inlined_call_operand.vmem [shape: f32[2,8,16], index: 1, kind: input, shape index: {}]
  %s2 = inlined_call_operand.vmem [shape: f32[2,8,16], index: 2, kind: input, shape index: {}]
  %s3 = inlined_call_operand.vmem [shape: f32[1,16], index: 3, kind: input, shape index: {}]
  %s4 = inlined_call_operand.vmem [shape: f32[1,16], index: 4, kind: input, shape index: {}]
  %s5 = inlined_call_operand.vmem [shape: f32[1,32], index: 5, kind: input, shape index: {}]
  %s6 = inlined_call_operand.vmem [shape: bf16[4,16,8], index: 6, kind: input, shape index: {}]
  %s7 = inlined_call_operand.vmem [shape: bf16[4,16,8], index: 7, kind: input, shape index: {}]
  %s8 = inlined_call_operand.vmem [shape: bf16[4,16,8], index: 8, kind: input, shape index: {}]
  %s9 = inlined_call_operand.vmem [shape: bf16[4,8,32], index: 9, kind: input, shape index: {}]
  %s10 = inlined_call_operand.vmem [shape: f32[1,32], index: 10, kind: input, shape index: {}]
  %s11 = inlined_call_operand.vmem [shape: bf16[32,64], index: 11, kind: input, shape index: {}]
  %s12 = inlined_call_operand.vmem [shape: f32[1,64], index: 12, kind: input, shape index: {}]
  %s13 = inlined_call_operand.vmem [shape: bf16[64,32], index: 13, kind: input, shape index: {}]
  %s14 = inlined_call_operand.vmem [shape: f32[1,32], index: 14, kind: input, shape index: {}]
  %s15 = inlined_call_operand.hbm [shape: f32[2,8,32], index: 15, kind: output, shape index: {}]
  %s16 = sld [smem:[#allocation0]]
  $region101: #{tpu_custom_call.1} parent=0
    _
  %s18 = ssub.s32 1, %s16
  %s19 = scalar_select 0, %s18, %s16
  $region1: #{tpu_custom_call.1} parent=0
    #allocation4 [shape = 'u8[512]{0}', space=smem, size = 0x200, scoped, tag = 'input window, operand 0, single buffered']
    #allocation5 [shape = 's32[2]{0}', space=sflag, size = 0x8, scoped, tag = 'scoped memory for tpu_custom_call.1']
    #allocation6 [shape = 's32[2]{0}', space=sflag, size = 0x8, scoped, tag = 'scoped memory for tpu_custom_call.1']
    #allocation7 [shape = 'u8[8192]{0}', space=vmem, size = 0x2000, scoped, tag = 'output window, operand 0']
    %20 = vsyncpa [#allocation6], 0
    %21 = vsyncpa [#allocation5], 0
    %s22 = scalar_lea.sflag [#allocation5], 1
    %23 = vsyncpa %s22, 0
    loop: start=0, step=1, limit=4
    $region2: #{tpu_custom_call.1} parent=1 // loop_pre_header
      _
    $region3: #{tpu_custom_call.1} parent=1 // loop_header
      %s25 = sphi 0, %s29
      %p26 = scmp.ge.s32.totalorder %s25, 4
      %s32 = sphi 0, %s44
      %s33 = sphi 0, %s40
      %s34 = sphi 0, %s32
      %s35 = sphi 0, %s33
      %s36 = sphi 0, %s34
      %s37 = sphi 0, %s35
      %s45 = sphi 0, %s45
      %s47 = sphi 0, %s45
      %s48 = sphi 0, %s47
      %s62 = sphi 0, %s48
      %s68 = sphi 0, %s70
      %s71 = sphi 0, %s68
      %s72 = sphi 0, %s71
      %s88 = sphi 0, %s72
      %s96 = sphi 0, %s98
      %s99 = sphi 0, %s96
      %s100 = sphi 0, %s99
      %s116 = sphi 0, %s100
      %s120 = sphi 0, %s120
      %s122 = sphi 0, %s120
      %s123 = sphi 0, %s122
      %s137 = sphi 0, %s123
      %s141 = sphi 0, %s141
      %s143 = sphi 0, %s141
      %s144 = sphi 0, %s143
      %s158 = sphi 0, %s144
      %s162 = sphi 0, %s162
      %s164 = sphi 0, %s162
      %s165 = sphi 0, %s164
      %s179 = sphi 0, %s165
      %s183 = sphi 0, %s183
      %s185 = sphi 0, %s183
      %s186 = sphi 0, %s185
      %s200 = sphi 0, %s186
      %s204 = sphi 0, %s204
      %s206 = sphi 0, %s204
      %s207 = sphi 0, %s206
      %s221 = sphi 0, %s207
      %s225 = sphi 0, %s225
      %s227 = sphi 0, %s225
      %s228 = sphi 0, %s227
      %s242 = sphi 0, %s228
      %s246 = sphi 0, %s246
      %s248 = sphi 0, %s246
      %s249 = sphi 0, %s248
      %s263 = sphi 0, %s249
      %s267 = sphi 0, %s267
      %s269 = sphi 0, %s267
      %s270 = sphi 0, %s269
      %s284 = sphi 0, %s270
      %s288 = sphi 0, %s288
      %s290 = sphi 0, %s288
      %s291 = sphi 0, %s290
      %s305 = sphi 0, %s291
      %s309 = sphi 0, %s309
      %s311 = sphi 0, %s309
      %s312 = sphi 0, %s311
      %s326 = sphi 0, %s312
      %s330 = sphi 0, %s330
      %s332 = sphi 0, %s330
      %s333 = sphi 0, %s332
      %s347 = sphi 0, %s333
      %s351 = sphi 0, %s351
      %s353 = sphi 0, %s351
      %s354 = sphi 0, %s353
      %s368 = sphi 0, %s354
      %s376 = sphi 0, %s378
      %s379 = sphi 0, %s376
      %s380 = sphi 0, %s379
      %s396 = sphi 0, %s380
    $region4: #{tpu_custom_call.1} parent=1 // loop_header_branch
      %28 = sbr.rel (%p26) target = $region8
    $region5: #{tpu_custom_call.1} parent=1 // loop_body
      %s30 = ssub.s32 %s25, 1
      %s31 = ssub.s32 %s25, 2
      %s38 = sadd.s32 1, %s33
      %p39 = scmp.ge.s32.totalorder %s38, 1
      %s40 = scalar_select %p39, 0, %s38
      %s41 = sadd.s32 1, %s32
      %s42 = scalar_select %p39, %s41, %s32
      %p43 = scmp.ge.s32.totalorder %s42, 2
      %s44 = scalar_select %p43, 0, %s42
      %s46 = sadd.s32 %s45, 1
      %p49 = scmp.eq.s32.totalorder %s25, 1
      %p50 = scmp.ne.s32.totalorder %s45, %s47
      %p51 = scmp.eq.s32.totalorder %s25, 0
      %p52 = por %p50, %p51
      %p53 = scmp.ne.s32.totalorder %s45, %s47
      %p54 = scmp.eq.s32.totalorder %s30, 1
      %p55 = por %p53, %p54
      %p56 = scmp.ne.s32.totalorder %s47, %s48
      %p57 = scmp.eq.s32.totalorder %s30, 0
      %p58 = por %p56, %p57
      %p59 = scmp.ne.s32.totalorder %s47, %s48
      %p60 = scmp.eq.s32.totalorder %s31, 1
      %p61 = por %p59, %p60
      %p63 = scmp.ne.s32.totalorder %s48, %s62
      %p64 = scmp.eq.s32.totalorder %s31, 0
      %p65 = por %p63, %p64
      %s66 = ssub.s32 %s32, %s44
      %p67 = scmp.eq.s32.totalorder %s66, 0
      %s69 = sadd.s32 %s68, 1
      %s70 = scalar_select %p67, %s68, %s69
      %p73 = pneg %p67
      %p74 = scmp.eq.s32.totalorder %s25, 1
      %p75 = por %p73, %p74
      %p76 = scmp.ne.s32.totalorder %s68, %s71
      %p77 = scmp.eq.s32.totalorder %s25, 0
      %p78 = por %p76, %p77
      %p79 = scmp.ne.s32.totalorder %s68, %s71
      %p80 = scmp.eq.s32.totalorder %s30, 1
      %p81 = por %p79, %p80
      %p82 = scmp.ne.s32.totalorder %s71, %s72
      %p83 = scmp.eq.s32.totalorder %s30, 0
      %p84 = por %p82, %p83
      %p85 = scmp.ne.s32.totalorder %s71, %s72
      %p86 = scmp.eq.s32.totalorder %s31, 1
      %p87 = por %p85, %p86
      %p89 = scmp.ne.s32.totalorder %s72, %s88
      %p90 = scmp.eq.s32.totalorder %s31, 0
      %p91 = por %p89, %p90
      %s92 = ssub.s32 %s32, %s44
      %s93 = ssub.s32 %s33, %s40
      %s94 = sor.u32 %s92, %s93
      %p95 = scmp.eq.s32.totalorder %s94, 0
      %s97 = sadd.s32 %s96, 1
      %s98 = scalar_select %p95, %s96, %s97
      %p101 = pneg %p95
      %p102 = scmp.eq.s32.totalorder %s25, 1
      %p103 = por %p101, %p102
      %p104 = scmp.ne.s32.totalorder %s96, %s99
      %p105 = scmp.eq.s32.totalorder %s25, 0
      %p106 = por %p104, %p105
      %p107 = scmp.ne.s32.totalorder %s96, %s99
      %p108 = scmp.eq.s32.totalorder %s30, 1
      %p109 = por %p107, %p108
      %p110 = scmp.ne.s32.totalorder %s99, %s100
      %p111 = scmp.eq.s32.totalorder %s30, 0
      %p112 = por %p110, %p111
      %p113 = scmp.ne.s32.totalorder %s99, %s100
      %p114 = scmp.eq.s32.totalorder %s31, 1
      %p115 = por %p113, %p114
      %p117 = scmp.ne.s32.totalorder %s100, %s116
      %p118 = scmp.eq.s32.totalorder %s31, 0
      %p119 = por %p117, %p118
      %s121 = sadd.s32 %s120, 1
      %p124 = scmp.eq.s32.totalorder %s25, 1
      %p125 = scmp.ne.s32.totalorder %s120, %s122
      %p126 = scmp.eq.s32.totalorder %s25, 0
      %p127 = por %p125, %p126
      %p128 = scmp.ne.s32.totalorder %s120, %s122
      %p129 = scmp.eq.s32.totalorder %s30, 1
      %p130 = por %p128, %p129
      %p131 = scmp.ne.s32.totalorder %s122, %s123
      %p132 = scmp.eq.s32.totalorder %s30, 0
      %p133 = por %p131, %p132
      %p134 = scmp.ne.s32.totalorder %s122, %s123
      %p135 = scmp.eq.s32.totalorder %s31, 1
      %p136 = por %p134, %p135
      %p138 = scmp.ne.s32.totalorder %s123, %s137
      %p139 = scmp.eq.s32.totalorder %s31, 0
      %p140 = por %p138, %p139
      %s142 = sadd.s32 %s141, 1
      %p145 = scmp.eq.s32.totalorder %s25, 1
      %p146 = scmp.ne.s32.totalorder %s141, %s143
      %p147 = scmp.eq.s32.totalorder %s25, 0
      %p148 = por %p146, %p147
      %p149 = scmp.ne.s32.totalorder %s141, %s143
      %p150 = scmp.eq.s32.totalorder %s30, 1
      %p151 = por %p149, %p150
      %p152 = scmp.ne.s32.totalorder %s143, %s144
      %p153 = scmp.eq.s32.totalorder %s30, 0
      %p154 = por %p152, %p153
      %p155 = scmp.ne.s32.totalorder %s143, %s144
      %p156 = scmp.eq.s32.totalorder %s31, 1
      %p157 = por %p155, %p156
      %p159 = scmp.ne.s32.totalorder %s144, %s158
      %p160 = scmp.eq.s32.totalorder %s31, 0
      %p161 = por %p159, %p160
      %s163 = sadd.s32 %s162, 1
      %p166 = scmp.eq.s32.totalorder %s25, 1
      %p167 = scmp.ne.s32.totalorder %s162, %s164
      %p168 = scmp.eq.s32.totalorder %s25, 0
      %p169 = por %p167, %p168
      %p170 = scmp.ne.s32.totalorder %s162, %s164
      %p171 = scmp.eq.s32.totalorder %s30, 1
      %p172 = por %p170, %p171
      %p173 = scmp.ne.s32.totalorder %s164, %s165
      %p174 = scmp.eq.s32.totalorder %s30, 0
      %p175 = por %p173, %p174
      %p176 = scmp.ne.s32.totalorder %s164, %s165
      %p177 = scmp.eq.s32.totalorder %s31, 1
      %p178 = por %p176, %p177
      %p180 = scmp.ne.s32.totalorder %s165, %s179
      %p181 = scmp.eq.s32.totalorder %s31, 0
      %p182 = por %p180, %p181
      %s184 = sadd.s32 %s183, 1
      %p187 = scmp.eq.s32.totalorder %s25, 1
      %p188 = scmp.ne.s32.totalorder %s183, %s185
      %p189 = scmp.eq.s32.totalorder %s25, 0
      %p190 = por %p188, %p189
      %p191 = scmp.ne.s32.totalorder %s183, %s185
      %p192 = scmp.eq.s32.totalorder %s30, 1
      %p193 = por %p191, %p192
      %p194 = scmp.ne.s32.totalorder %s185, %s186
      %p195 = scmp.eq.s32.totalorder %s30, 0
      %p196 = por %p194, %p195
      %p197 = scmp.ne.s32.totalorder %s185, %s186
      %p198 = scmp.eq.s32.totalorder %s31, 1
      %p199 = por %p197, %p198
      %p201 = scmp.ne.s32.totalorder %s186, %s200
      %p202 = scmp.eq.s32.totalorder %s31, 0
      %p203 = por %p201, %p202
      %s205 = sadd.s32 %s204, 1
      %p208 = scmp.eq.s32.totalorder %s25, 1
      %p209 = scmp.ne.s32.totalorder %s204, %s206
      %p210 = scmp.eq.s32.totalorder %s25, 0
      %p211 = por %p209, %p210
      %p212 = scmp.ne.s32.totalorder %s204, %s206
      %p213 = scmp.eq.s32.totalorder %s30, 1
      %p214 = por %p212, %p213
      %p215 = scmp.ne.s32.totalorder %s206, %s207
      %p216 = scmp.eq.s32.totalorder %s30, 0
      %p217 = por %p215, %p216
      %p218 = scmp.ne.s32.totalorder %s206, %s207
      %p219 = scmp.eq.s32.totalorder %s31, 1
      %p220 = por %p218, %p219
      %p222 = scmp.ne.s32.totalorder %s207, %s221
      %p223 = scmp.eq.s32.totalorder %s31, 0
      %p224 = por %p222, %p223
      %s226 = sadd.s32 %s225, 1
      %p229 = scmp.eq.s32.totalorder %s25, 1
      %p230 = scmp.ne.s32.totalorder %s225, %s227
      %p231 = scmp.eq.s32.totalorder %s25, 0
      %p232 = por %p230, %p231
      %p233 = scmp.ne.s32.totalorder %s225, %s227
      %p234 = scmp.eq.s32.totalorder %s30, 1
      %p235 = por %p233, %p234
      %p236 = scmp.ne.s32.totalorder %s227, %s228
      %p237 = scmp.eq.s32.totalorder %s30, 0
      %p238 = por %p236, %p237
      %p239 = scmp.ne.s32.totalorder %s227, %s228
      %p240 = scmp.eq.s32.totalorder %s31, 1
      %p241 = por %p239, %p240
      %p243 = scmp.ne.s32.totalorder %s228, %s242
      %p244 = scmp.eq.s32.totalorder %s31, 0
      %p245 = por %p243, %p244
      %s247 = sadd.s32 %s246, 1
      %p250 = scmp.eq.s32.totalorder %s25, 1
      %p251 = scmp.ne.s32.totalorder %s246, %s248
      %p252 = scmp.eq.s32.totalorder %s25, 0
      %p253 = por %p251, %p252
      %p254 = scmp.ne.s32.totalorder %s246, %s248
      %p255 = scmp.eq.s32.totalorder %s30, 1
      %p256 = por %p254, %p255
      %p257 = scmp.ne.s32.totalorder %s248, %s249
      %p258 = scmp.eq.s32.totalorder %s30, 0
      %p259 = por %p257, %p258
      %p260 = scmp.ne.s32.totalorder %s248, %s249
      %p261 = scmp.eq.s32.totalorder %s31, 1
      %p262 = por %p260, %p261
      %p264 = scmp.ne.s32.totalorder %s249, %s263
      %p265 = scmp.eq.s32.totalorder %s31, 0
      %p266 = por %p264, %p265
      %s268 = sadd.s32 %s267, 1
      %p271 = scmp.eq.s32.totalorder %s25, 1
      %p272 = scmp.ne.s32.totalorder %s267, %s269
      %p273 = scmp.eq.s32.totalorder %s25, 0
      %p274 = por %p272, %p273
      %p275 = scmp.ne.s32.totalorder %s267, %s269
      %p276 = scmp.eq.s32.totalorder %s30, 1
      %p277 = por %p275, %p276
      %p278 = scmp.ne.s32.totalorder %s269, %s270
      %p279 = scmp.eq.s32.totalorder %s30, 0
      %p280 = por %p278, %p279
      %p281 = scmp.ne.s32.totalorder %s269, %s270
      %p282 = scmp.eq.s32.totalorder %s31, 1
      %p283 = por %p281, %p282
      %p285 = scmp.ne.s32.totalorder %s270, %s284
      %p286 = scmp.eq.s32.totalorder %s31, 0
      %p287 = por %p285, %p286
      %s289 = sadd.s32 %s288, 1
      %p292 = scmp.eq.s32.totalorder %s25, 1
      %p293 = scmp.ne.s32.totalorder %s288, %s290
      %p294 = scmp.eq.s32.totalorder %s25, 0
      %p295 = por %p293, %p294
      %p296 = scmp.ne.s32.totalorder %s288, %s290
      %p297 = scmp.eq.s32.totalorder %s30, 1
      %p298 = por %p296, %p297
      %p299 = scmp.ne.s32.totalorder %s290, %s291
      %p300 = scmp.eq.s32.totalorder %s30, 0
      %p301 = por %p299, %p300
      %p302 = scmp.ne.s32.totalorder %s290, %s291
      %p303 = scmp.eq.s32.totalorder %s31, 1
      %p304 = por %p302, %p303
      %p306 = scmp.ne.s32.totalorder %s291, %s305
      %p307 = scmp.eq.s32.totalorder %s31, 0
      %p308 = por %p306, %p307
      %s310 = sadd.s32 %s309, 1
      %p313 = scmp.eq.s32.totalorder %s25, 1
      %p314 = scmp.ne.s32.totalorder %s309, %s311
      %p315 = scmp.eq.s32.totalorder %s25, 0
      %p316 = por %p314, %p315
      %p317 = scmp.ne.s32.totalorder %s309, %s311
      %p318 = scmp.eq.s32.totalorder %s30, 1
      %p319 = por %p317, %p318
      %p320 = scmp.ne.s32.totalorder %s311, %s312
      %p321 = scmp.eq.s32.totalorder %s30, 0
      %p322 = por %p320, %p321
      %p323 = scmp.ne.s32.totalorder %s311, %s312
      %p324 = scmp.eq.s32.totalorder %s31, 1
      %p325 = por %p323, %p324
      %p327 = scmp.ne.s32.totalorder %s312, %s326
      %p328 = scmp.eq.s32.totalorder %s31, 0
      %p329 = por %p327, %p328
      %s331 = sadd.s32 %s330, 1
      %p334 = scmp.eq.s32.totalorder %s25, 1
      %p335 = scmp.ne.s32.totalorder %s330, %s332
      %p336 = scmp.eq.s32.totalorder %s25, 0
      %p337 = por %p335, %p336
      %p338 = scmp.ne.s32.totalorder %s330, %s332
      %p339 = scmp.eq.s32.totalorder %s30, 1
      %p340 = por %p338, %p339
      %p341 = scmp.ne.s32.totalorder %s332, %s333
      %p342 = scmp.eq.s32.totalorder %s30, 0
      %p343 = por %p341, %p342
      %p344 = scmp.ne.s32.totalorder %s332, %s333
      %p345 = scmp.eq.s32.totalorder %s31, 1
      %p346 = por %p344, %p345
      %p348 = scmp.ne.s32.totalorder %s333, %s347
      %p349 = scmp.eq.s32.totalorder %s31, 0
      %p350 = por %p348, %p349
      %s352 = sadd.s32 %s351, 1
      %p355 = scmp.eq.s32.totalorder %s25, 1
      %p356 = scmp.ne.s32.totalorder %s351, %s353
      %p357 = scmp.eq.s32.totalorder %s25, 0
      %p358 = por %p356, %p357
      %p359 = scmp.ne.s32.totalorder %s351, %s353
      %p360 = scmp.eq.s32.totalorder %s30, 1
      %p361 = por %p359, %p360
      %p362 = scmp.ne.s32.totalorder %s353, %s354
      %p363 = scmp.eq.s32.totalorder %s30, 0
      %p364 = por %p362, %p363
      %p365 = scmp.ne.s32.totalorder %s353, %s354
      %p366 = scmp.eq.s32.totalorder %s31, 1
      %p367 = por %p365, %p366
      %p369 = scmp.ne.s32.totalorder %s354, %s368
      %p370 = scmp.eq.s32.totalorder %s31, 0
      %p371 = por %p369, %p370
      %s372 = ssub.s32 %s32, %s44
      %s373 = ssub.s32 %s33, %s40
      %s374 = sor.u32 %s372, %s373
      %p375 = scmp.eq.s32.totalorder %s374, 0
      %s377 = sadd.s32 %s376, 1
      %s378 = scalar_select %p375, %s376, %s377
      %p381 = pneg %p375
      %p382 = scmp.eq.s32.totalorder %s25, 1
      %p383 = por %p381, %p382
      %p384 = scmp.ne.s32.totalorder %s376, %s379
      %p385 = scmp.eq.s32.totalorder %s25, 0
      %p386 = por %p384, %p385
      %p387 = scmp.ne.s32.totalorder %s376, %s379
      %p388 = scmp.eq.s32.totalorder %s30, 1
      %p389 = por %p387, %p388
      %p390 = scmp.ne.s32.totalorder %s379, %s380
      %p391 = scmp.eq.s32.totalorder %s30, 0
      %p392 = por %p390, %p391
      %p393 = scmp.ne.s32.totalorder %s379, %s380
      %p394 = scmp.eq.s32.totalorder %s31, 1
      %p395 = por %p393, %p394
      %p397 = scmp.ne.s32.totalorder %s380, %s396
      %p398 = scmp.eq.s32.totalorder %s31, 0
      %p399 = por %p397, %p398
      %p400 = scmp.le.s32.totalorder 1, %s25
      %p401 = scmp.lt.s32.totalorder %s25, 3
      %p402 = pnand %p400, %p401
      %p403 = pneg %p402
      // Predicated region
      $region9: #{tpu_custom_call.1} parent=5 // pred_check
        _
      $region10: #{tpu_custom_call.1} parent=5 // pred_check_branch
        %405 = sbr.rel (%p402) target = $region12
      $region11: #{tpu_custom_call.1} parent=5 // pred_region
        %s406 = ssub.s32 %s25, 1
        // Predicated region
        $region13: #{tpu_custom_call.1} parent=11 // pred_check
          %p407 = pneg %p58
        $region14: #{tpu_custom_call.1} parent=11 // pred_check_branch
          %409 = sbr.rel (%p407) target = $region16
        $region15: #{tpu_custom_call.1} parent=11 // pred_region
          %s411 = ssub.s32 16, 16
          %412 = vsyncadd [#allocation6], %s411
          %s414 = sshll.u32 %s0, 4
          %s415 = int_to_ptr.vmem [resolvable:$true] %s414
          %417 = dma.vmem_to_smem %s415, 16, [#allocation4], [#allocation6]
        $region16: #{tpu_custom_call.1} parent=11 // pred_fallthru
          _
        // Predicated region
        $region17: #{tpu_custom_call.1} parent=11 // pred_check
          %p418 = pneg %p133
        $region18: #{tpu_custom_call.1} parent=11 // pred_check_branch
          %420 = sbr.rel (%p418) target = $region20
        $region19: #{tpu_custom_call.1} parent=11 // pred_region
          _
        $region20: #{tpu_custom_call.1} parent=11 // pred_fallthru
          _
        // Predicated region
        $region21: #{tpu_custom_call.1} parent=11 // pred_check
          %p421 = pneg %p154
        $region22: #{tpu_custom_call.1} parent=11 // pred_check_branch
          %423 = sbr.rel (%p421) target = $region24
        $region23: #{tpu_custom_call.1} parent=11 // pred_region
          _
        $region24: #{tpu_custom_call.1} parent=11 // pred_fallthru
          _
        // Predicated region
        $region25: #{tpu_custom_call.1} parent=11 // pred_check
          %p424 = pneg %p175
        $region26: #{tpu_custom_call.1} parent=11 // pred_check_branch
          %426 = sbr.rel (%p424) target = $region28
        $region27: #{tpu_custom_call.1} parent=11 // pred_region
          _
        $region28: #{tpu_custom_call.1} parent=11 // pred_fallthru
          _
        // Predicated region
        $region29: #{tpu_custom_call.1} parent=11 // pred_check
          %p427 = pneg %p196
        $region30: #{tpu_custom_call.1} parent=11 // pred_check_branch
          %429 = sbr.rel (%p427) target = $region32
        $region31: #{tpu_custom_call.1} parent=11 // pred_region
          _
        $region32: #{tpu_custom_call.1} parent=11 // pred_fallthru
          _
        // Predicated region
        $region33: #{tpu_custom_call.1} parent=11 // pred_check
          %p430 = pneg %p217
        $region34: #{tpu_custom_call.1} parent=11 // pred_check_branch
          %432 = sbr.rel (%p430) target = $region36
        $region35: #{tpu_custom_call.1} parent=11 // pred_region
          _
        $region36: #{tpu_custom_call.1} parent=11 // pred_fallthru
          _
        // Predicated region
        $region37: #{tpu_custom_call.1} parent=11 // pred_check
          %p433 = pneg %p238
        $region38: #{tpu_custom_call.1} parent=11 // pred_check_branch
          %435 = sbr.rel (%p433) target = $region40
        $region39: #{tpu_custom_call.1} parent=11 // pred_region
          _
        $region40: #{tpu_custom_call.1} parent=11 // pred_fallthru
          _
        // Predicated region
        $region41: #{tpu_custom_call.1} parent=11 // pred_check
          %p436 = pneg %p259
        $region42: #{tpu_custom_call.1} parent=11 // pred_check_branch
          %438 = sbr.rel (%p436) target = $region44
        $region43: #{tpu_custom_call.1} parent=11 // pred_region
          _
        $region44: #{tpu_custom_call.1} parent=11 // pred_fallthru
          _
        // Predicated region
        $region45: #{tpu_custom_call.1} parent=11 // pred_check
          %p439 = pneg %p280
        $region46: #{tpu_custom_call.1} parent=11 // pred_check_branch
          %441 = sbr.rel (%p439) target = $region48
        $region47: #{tpu_custom_call.1} parent=11 // pred_region
          _
        $region48: #{tpu_custom_call.1} parent=11 // pred_fallthru
          _
        // Predicated region
        $region49: #{tpu_custom_call.1} parent=11 // pred_check
          %p442 = pneg %p301
        $region50: #{tpu_custom_call.1} parent=11 // pred_check_branch
          %444 = sbr.rel (%p442) target = $region52
        $region51: #{tpu_custom_call.1} parent=11 // pred_region
          _
        $region52: #{tpu_custom_call.1} parent=11 // pred_fallthru
          _
        // Predicated region
        $region53: #{tpu_custom_call.1} parent=11 // pred_check
          %p445 = pneg %p322
        $region54: #{tpu_custom_call.1} parent=11 // pred_check_branch
          %447 = sbr.rel (%p445) target = $region56
        $region55: #{tpu_custom_call.1} parent=11 // pred_region
          _
        $region56: #{tpu_custom_call.1} parent=11 // pred_fallthru
          _
        // Predicated region
        $region57: #{tpu_custom_call.1} parent=11 // pred_check
          %p448 = pneg %p343
        $region58: #{tpu_custom_call.1} parent=11 // pred_check_branch
          %450 = sbr.rel (%p448) target = $region60
        $region59: #{tpu_custom_call.1} parent=11 // pred_region
          _
        $region60: #{tpu_custom_call.1} parent=11 // pred_fallthru
          _
        // Predicated region
        $region61: #{tpu_custom_call.1} parent=11 // pred_check
          %p451 = pneg %p364
        $region62: #{tpu_custom_call.1} parent=11 // pred_check_branch
          %453 = sbr.rel (%p451) target = $region64
        $region63: #{tpu_custom_call.1} parent=11 // pred_region
          _
        $region64: #{tpu_custom_call.1} parent=11 // pred_fallthru
          _
      $region12: #{tpu_custom_call.1} parent=5 // pred_fallthru
        _
      %p454 = scmp.lt.s32.totalorder %s25, 2
      // Predicated region
      $region65: #{tpu_custom_call.1} parent=5 // pred_check
        %p455 = pneg %p454
      $region66: #{tpu_custom_call.1} parent=5 // pred_check_branch
        %457 = sbr.rel (%p455) target = $region68
      $region67: #{tpu_custom_call.1} parent=5 // pred_region
        // Predicated region
        $region69: #{tpu_custom_call.1} parent=67 // pred_check
          %p458 = pneg %p78
        $region70: #{tpu_custom_call.1} parent=67 // pred_check_branch
          %460 = sbr.rel (%p458) target = $region72
        $region71: #{tpu_custom_call.1} parent=67 // pred_region
          %p461 = scmp.lt.s32.totalorder %s32, 1
          %s462 = scalar_select %p461, %s32, 1
          %s463 = smul.addr %s462, 8
          %s464 = scalar_lea.vmem %s1, %s463
        $region72: #{tpu_custom_call.1} parent=67 // pred_fallthru
          _
        // Predicated region
        $region73: #{tpu_custom_call.1} parent=67 // pred_check
          %p465 = pneg %p106
        $region74: #{tpu_custom_call.1} parent=67 // pred_check_branch
          %467 = sbr.rel (%p465) target = $region76
        $region75: #{tpu_custom_call.1} parent=67 // pred_region
          %p468 = scmp.lt.s32.totalorder %s32, 1
          %s469 = scalar_select %p468, %s32, 1
          %p470 = scmp.lt.s32.totalorder %s33, 0
          %s471 = scalar_select %p470, %s33, 0
          %s472 = sadd.s32 %s471, %s469
          %s473 = smul.addr %s472, 8
          %s474 = scalar_lea.vmem %s2, %s473
        $region76: #{tpu_custom_call.1} parent=67 // pred_fallthru
          _
      $region68: #{tpu_custom_call.1} parent=5 // pred_fallthru
        _
      %p475 = scmp.le.s32.totalorder 1, %s25
      %p476 = scmp.lt.s32.totalorder %s25, 3
      %p477 = pnand %p475, %p476
      %p478 = pneg %p477
      // Predicated region
      $region77: #{tpu_custom_call.1} parent=5 // pred_check
        _
      $region78: #{tpu_custom_call.1} parent=5 // pred_check_branch
        %480 = sbr.rel (%p477) target = $region80
      $region79: #{tpu_custom_call.1} parent=5 // pred_region
        %s481 = ssub.s32 %s25, 1
        // Predicated region
        $region81: #{tpu_custom_call.1} parent=79 // pred_check
          %p482 = pneg %p58
        $region82: #{tpu_custom_call.1} parent=79 // pred_check_branch
          %484 = sbr.rel (%p482) target = $region84
        $region83: #{tpu_custom_call.1} parent=79 // pred_region
          %485 = dma.done [#allocation6], 16
        $region84: #{tpu_custom_call.1} parent=79 // pred_fallthru
          _
        %486 = sfence
        %p487 = pneg %p58
        %p488 = pneg %p55
        %p489 = scmp.lt.s32.totalorder %s34, 1
        %s490 = scalar_select %p489, %s34, 1
        %s491 = smul.addr %s490, 8
        %s492 = scalar_lea.vmem %s1, %s491
        %p493 = pneg %p84
        %p494 = pneg %p81
        %p495 = scmp.lt.s32.totalorder %s34, 1
        %s496 = scalar_select %p495, %s34, 1
        %p497 = scmp.lt.s32.totalorder %s35, 0
        %s498 = scalar_select %p497, %s35, 0
        %s499 = sadd.s32 %s498, %s496
        %s500 = smul.addr %s499, 8
        %s501 = scalar_lea.vmem %s2, %s500
        %p502 = pneg %p112
        %p503 = pneg %p109
        %p504 = pneg %p133
        %p505 = pneg %p130
        %p506 = pneg %p154
        %p507 = pneg %p151
        %p508 = pneg %p175
        %p509 = pneg %p172
        %p510 = pneg %p196
        %p511 = pneg %p193
        %p512 = pneg %p217
        %p513 = pneg %p214
        %p514 = pneg %p238
        %p515 = pneg %p235
        %p516 = pneg %p259
        %p517 = pneg %p256
        %p518 = pneg %p280
        %p519 = pneg %p277
        %p520 = pneg %p301
        %p521 = pneg %p298
        %p522 = pneg %p322
        %p523 = pneg %p319
        %p524 = pneg %p343
        %p525 = pneg %p340
        %p526 = pneg %p364
        %p527 = pneg %p361
        %p528 = pneg %p392
        %p529 = pneg %p389
        %s530 = sand.u32 %s379, 1
        %s531 = scalar_lea.sflag [#allocation5], %s530
        %s532 = sand.u32 %s379, 1
        %s533 = smul.addr %s532, 8
        %s534 = scalar_lea.vmem [#allocation7], %s533
        %p535 = scmp.lt.s32.totalorder %s34, 1
        %s536 = scalar_select %p535, %s34, 1
        %s537 = smul.addr %s536, 8
        %s538 = scalar_lea.vmem %s1, %s537
        %p539 = scmp.lt.s32.totalorder %s34, 1
        %s540 = scalar_select %p539, %s34, 1
        %p541 = scmp.lt.s32.totalorder %s35, 0
        %s542 = scalar_select %p541, %s35, 0
        %s543 = sadd.s32 %s542, %s540
        %s544 = smul.addr %s543, 8
        %s545 = scalar_lea.vmem %s2, %s544
        %s547 = sld [smem:[#allocation4]]
        %s548 = sld [smem:[#allocation4 + $0x1]]
        %s549 = sld [smem:[#allocation4 + $0x2]]
        %p550 = scmp.eq.s32.totalorder %s35, 0
        // Predicated region
        $region85: #{tpu_custom_call.1} parent=79 // pred_check
          %p551 = pneg %p550
        $region86: #{tpu_custom_call.1} parent=79 // pred_check_branch
          %553 = sbr.rel (%p551) target = $region88
        $region87: #{tpu_custom_call.1} parent=79 // pred_region
          %v554 = vld [vmem:[%s3] sm:$0x1]
          %v555 = vld [vmem:[%s538] sm:$0xff]
          %v556 = vstv %s547
          %v557 = vmul.f32 %v556, %v555
          %v558 = vtanh.pop %v557
          %v560 = vlaneseq
          %v561 = vshrl.u32 %v560, 7
          %v562 = vsub.s32 0, %v561
          %v563 = vrot.slane %v554, %v562
          %v565 = vmul.f32 %v563, %v558
          %v566 = vpack.c.bf16 %v565, %v565
          %v567 = vld [vmem:[%s7] sm:$0xf]
          %v568 = vld [vmem:[%s7 + $0x4] sm:$0xf]
          %v571 = vunpack.c.l.b16 %v567
          %v572 = vunpack.c.l.b16 %v568
          %v573 = vpack.c.b16 %v572, %v571
          %vm575 = vcmask 130048
          %v577 = vsel %vm575, %v566, 0
          %579 = vmatprep.subr.bf16.mxu0 0
          %580 = vmatpush1.bf16.msra.mxu0 %v573
          %581 = vmatprep.subr.bf16.mxu0 0
          %582 = vmatpush1.bf16.msra.mxu0 0
          %583 = vmatprep.subr.bf16.mxu0 0
          %584 = vmatpush1.bf16.msra.mxu0 0
          %585 = vmatprep.subr.bf16.mxu0 0
          %586 = vmatpush1.bf16.msra.mxu0 0
          %587 = vmatprep.subr.bf16.mxu0 0
          %588 = vmatpush1.bf16.msra.mxu0 0
          %589 = vmatprep.subr.bf16.mxu0 0
          %590 = vmatpush1.bf16.msra.mxu0 0
          %591 = vmatprep.subr.bf16.mxu0 0
          %592 = vmatpush1.bf16.msra.mxu0 0
          %593 = vmatprep.subr.bf16.mxu0 0
          %594 = vmatpush1.bf16.msra.mxu0 0
          %595 = vmatprep.subr.bf16.mxu0 0
          %596 = vmatpush1.bf16.msra.mxu0 0
          %597 = vmatprep.subr.bf16.mxu0 0
          %598 = vmatpush1.bf16.msra.mxu0 0
          %599 = vmatprep.subr.bf16.mxu0 0
          %600 = vmatpush1.bf16.msra.mxu0 0
          %601 = vmatprep.subr.bf16.mxu0 0
          %602 = vmatpush1.bf16.msra.mxu0 0
          %603 = vmatprep.subr.bf16.mxu0 0
          %604 = vmatpush1.bf16.msra.mxu0 0
          %605 = vmatprep.subr.bf16.mxu0 0
          %606 = vmatpush1.bf16.msra.mxu0 0
          %607 = vmatprep.subr.bf16.mxu0 0
          %608 = vmatpush1.bf16.msra.mxu0 0
          %609 = vmatprep.subr.bf16.mxu0 0
          %610 = vmatpush1.bf16.msra.mxu0 0
          %611 = vmatprep.mubr.bf16.mxu0 0
          %612 = vmatmul.mubr.bf16.gmra.mrb[0].mxu0 %v577
          %v613 = vpop.f32.mrb[0].mxu0
          %v614 = vadd.f32 0.0, %v613
          %v615 = vpop.f32.mrb[0].mxu0
          %v616 = vpop.f32.mrb[0].mxu0
          %v617 = vpop.f32.mrb[0].mxu0
          %618 = vdwg.mxu0
          %v619 = vpack.c.bf16 %v614, %v614
          %vm620 = vcmask 60416
          %621 = vst.msk [vmem:[#allocation2] sm:$0xf] %vm620, %v619
          %v622 = vld [vmem:[%s8] sm:$0xf]
          %v623 = vld [vmem:[%s8 + $0x4] sm:$0xf]
          %v626 = vunpack.c.l.b16 %v622
          %v627 = vunpack.c.l.b16 %v623
          %v628 = vpack.c.b16 %v627, %v626
          %630 = vmatprep.subr.bf16.mxu0 0
          %631 = vmatpush1.bf16.msra.mxu0 %v628
          %632 = vmatprep.subr.bf16.mxu0 0
          %633 = vmatpush1.bf16.msra.mxu0 0
          %634 = vmatprep.subr.bf16.mxu0 0
          %635 = vmatpush1.bf16.msra.mxu0 0
          %636 = vmatprep.subr.bf16.mxu0 0
          %637 = vmatpush1.bf16.msra.mxu0 0
          %638 = vmatprep.subr.bf16.mxu0 0
          %639 = vmatpush1.bf16.msra.mxu0 0
          %640 = vmatprep.subr.bf16.mxu0 0
          %641 = vmatpush1.bf16.msra.mxu0 0
          %642 = vmatprep.subr.bf16.mxu0 0
          %643 = vmatpush1.bf16.msra.mxu0 0
          %644 = vmatprep.subr.bf16.mxu0 0
          %645 = vmatpush1.bf16.msra.mxu0 0
          %646 = vmatprep.subr.bf16.mxu0 0
          %647 = vmatpush1.bf16.msra.mxu0 0
          %648 = vmatprep.subr.bf16.mxu0 0
          %649 = vmatpush1.bf16.msra.mxu0 0
          %650 = vmatprep.subr.bf16.mxu0 0
          %651 = vmatpush1.bf16.msra.mxu0 0
          %652 = vmatprep.subr.bf16.mxu0 0
          %653 = vmatpush1.bf16.msra.mxu0 0
          %654 = vmatprep.subr.bf16.mxu0 0
          %655 = vmatpush1.bf16.msra.mxu0 0
          %656 = vmatprep.subr.bf16.mxu0 0
          %657 = vmatpush1.bf16.msra.mxu0 0
          %658 = vmatprep.subr.bf16.mxu0 0
          %659 = vmatpush1.bf16.msra.mxu0 0
          %660 = vmatprep.subr.bf16.mxu0 0
          %661 = vmatpush1.bf16.msra.mxu0 0
          %662 = vmatprep.mubr.bf16.mxu0 0
          %663 = vmatmul.mubr.bf16.gmra.mrb[0].mxu0 %v577
          %v664 = vpop.f32.mrb[0].mxu0
          %v665 = vadd.f32 0.0, %v664
          %v666 = vpop.f32.mrb[0].mxu0
          %v667 = vpop.f32.mrb[0].mxu0
          %v668 = vpop.f32.mrb[0].mxu0
          %669 = vdwg.mxu0
          %v670 = vpack.c.bf16 %v665, %v665
          %671 = vst.msk [vmem:[#allocation3] sm:$0xf] %vm620, %v670
          %s672 = scalar_lea.vmem %s7, 8
          %v673 = vld [vmem:[%s672] sm:$0xf]
          %v674 = vld [vmem:[%s672 + $0x4] sm:$0xf]
          %v677 = vunpack.c.l.b16 %v673
          %v678 = vunpack.c.l.b16 %v674
          %v679 = vpack.c.b16 %v678, %v677
          %681 = vmatprep.subr.bf16.mxu0 0
          %682 = vmatpush1.bf16.msra.mxu0 %v679
          %683 = vmatprep.subr.bf16.mxu0 0
          %684 = vmatpush1.bf16.msra.mxu0 0
          %685 = vmatprep.subr.bf16.mxu0 0
          %686 = vmatpush1.bf16.msra.mxu0 0
          %687 = vmatprep.subr.bf16.mxu0 0
          %688 = vmatpush1.bf16.msra.mxu0 0
          %689 = vmatprep.subr.bf16.mxu0 0
          %690 = vmatpush1.bf16.msra.mxu0 0
          %691 = vmatprep.subr.bf16.mxu0 0
          %692 = vmatpush1.bf16.msra.mxu0 0
          %693 = vmatprep.subr.bf16.mxu0 0
          %694 = vmatpush1.bf16.msra.mxu0 0
          %695 = vmatprep.subr.bf16.mxu0 0
          %696 = vmatpush1.bf16.msra.mxu0 0
          %697 = vmatprep.subr.bf16.mxu0 0
          %698 = vmatpush1.bf16.msra.mxu0 0
          %699 = vmatprep.subr.bf16.mxu0 0
          %700 = vmatpush1.bf16.msra.mxu0 0
          %701 = vmatprep.subr.bf16.mxu0 0
          %702 = vmatpush1.bf16.msra.mxu0 0
          %703 = vmatprep.subr.bf16.mxu0 0
          %704 = vmatpush1.bf16.msra.mxu0 0
          %705 = vmatprep.subr.bf16.mxu0 0
          %706 = vmatpush1.bf16.msra.mxu0 0
          %707 = vmatprep.subr.bf16.mxu0 0
          %708 = vmatpush1.bf16.msra.mxu0 0
          %709 = vmatprep.subr.bf16.mxu0 0
          %710 = vmatpush1.bf16.msra.mxu0 0
          %711 = vmatprep.subr.bf16.mxu0 0
          %712 = vmatpush1.bf16.msra.mxu0 0
          %713 = vmatprep.mubr.bf16.mxu0 0
          %714 = vmatmul.mubr.bf16.gmra.mrb[0].mxu0 %v577
          %v715 = vpop.f32.mrb[0].mxu0
          %v716 = vadd.f32 0.0, %v715
          %v717 = vpop.f32.mrb[0].mxu0
          %v718 = vpop.f32.mrb[0].mxu0
          %v719 = vpop.f32.mrb[0].mxu0
          %720 = vdwg.mxu0
          %v721 = vpack.c.bf16 %v716, %v716
          %s722 = scalar_lea.vmem [#allocation2], 4
          %723 = vst.msk [vmem:[%s722] sm:$0xf] %vm620, %v721
          %s724 = scalar_lea.vmem %s8, 8
          %v725 = vld [vmem:[%s724] sm:$0xf]
          %v726 = vld [vmem:[%s724 + $0x4] sm:$0xf]
          %v729 = vunpack.c.l.b16 %v725
          %v730 = vunpack.c.l.b16 %v726
          %v731 = vpack.c.b16 %v730, %v729
          %733 = vmatprep.subr.bf16.mxu0 0
          %734 = vmatpush1.bf16.msra.mxu0 %v731
          %735 = vmatprep.subr.bf16.mxu0 0
          %736 = vmatpush1.bf16.msra.mxu0 0
          %737 = vmatprep.subr.bf16.mxu0 0
          %738 = vmatpush1.bf16.msra.mxu0 0
          %739 = vmatprep.subr.bf16.mxu0 0
          %740 = vmatpush1.bf16.msra.mxu0 0
          %741 = vmatprep.subr.bf16.mxu0 0
          %742 = vmatpush1.bf16.msra.mxu0 0
          %743 = vmatprep.subr.bf16.mxu0 0
          %744 = vmatpush1.bf16.msra.mxu0 0
          %745 = vmatprep.subr.bf16.mxu0 0
          %746 = vmatpush1.bf16.msra.mxu0 0
          %747 = vmatprep.subr.bf16.mxu0 0
          %748 = vmatpush1.bf16.msra.mxu0 0
          %749 = vmatprep.subr.bf16.mxu0 0
          %750 = vmatpush1.bf16.msra.mxu0 0
          %751 = vmatprep.subr.bf16.mxu0 0
          %752 = vmatpush1.bf16.msra.mxu0 0
          %753 = vmatprep.subr.bf16.mxu0 0
          %754 = vmatpush1.bf16.msra.mxu0 0
          %755 = vmatprep.subr.bf16.mxu0 0
          %756 = vmatpush1.bf16.msra.mxu0 0
          %757 = vmatprep.subr.bf16.mxu0 0
          %758 = vmatpush1.bf16.msra.mxu0 0
          %759 = vmatprep.subr.bf16.mxu0 0
          %760 = vmatpush1.bf16.msra.mxu0 0
          %761 = vmatprep.subr.bf16.mxu0 0
          %762 = vmatpush1.bf16.msra.mxu0 0
          %763 = vmatprep.subr.bf16.mxu0 0
          %764 = vmatpush1.bf16.msra.mxu0 0
          %765 = vmatprep.mubr.bf16.mxu0 0
          %766 = vmatmul.mubr.bf16.gmra.mrb[0].mxu0 %v577
          %v767 = vpop.f32.mrb[0].mxu0
          %v768 = vadd.f32 0.0, %v767
          %v769 = vpop.f32.mrb[0].mxu0
          %v770 = vpop.f32.mrb[0].mxu0
          %v771 = vpop.f32.mrb[0].mxu0
          %772 = vdwg.mxu0
          %v773 = vpack.c.bf16 %v768, %v768
          %s774 = scalar_lea.vmem [#allocation3], 4
          %775 = vst.msk [vmem:[%s774] sm:$0xf] %vm620, %v773
          %s776 = scalar_lea.vmem %s7, 16
          %v777 = vld [vmem:[%s776] sm:$0xf]
          %v778 = vld [vmem:[%s776 + $0x4] sm:$0xf]
          %v781 = vunpack.c.l.b16 %v777
          %v782 = vunpack.c.l.b16 %v778
          %v783 = vpack.c.b16 %v782, %v781
          %785 = vmatprep.subr.bf16.mxu0 0
          %786 = vmatpush1.bf16.msra.mxu0 %v783
          %787 = vmatprep.subr.bf16.mxu0 0
          %788 = vmatpush1.bf16.msra.mxu0 0
          %789 = vmatprep.subr.bf16.mxu0 0
          %790 = vmatpush1.bf16.msra.mxu0 0
          %791 = vmatprep.subr.bf16.mxu0 0
          %792 = vmatpush1.bf16.msra.mxu0 0
          %793 = vmatprep.subr.bf16.mxu0 0
          %794 = vmatpush1.bf16.msra.mxu0 0
          %795 = vmatprep.subr.bf16.mxu0 0
          %796 = vmatpush1.bf16.msra.mxu0 0
          %797 = vmatprep.subr.bf16.mxu0 0
          %798 = vmatpush1.bf16.msra.mxu0 0
          %799 = vmatprep.subr.bf16.mxu0 0
          %800 = vmatpush1.bf16.msra.mxu0 0
          %801 = vmatprep.subr.bf16.mxu0 0
          %802 = vmatpush1.bf16.msra.mxu0 0
          %803 = vmatprep.subr.bf16.mxu0 0
          %804 = vmatpush1.bf16.msra.mxu0 0
          %805 = vmatprep.subr.bf16.mxu0 0
          %806 = vmatpush1.bf16.msra.mxu0 0
          %807 = vmatprep.subr.bf16.mxu0 0
          %808 = vmatpush1.bf16.msra.mxu0 0
          %809 = vmatprep.subr.bf16.mxu0 0
          %810 = vmatpush1.bf16.msra.mxu0 0
          %811 = vmatprep.subr.bf16.mxu0 0
          %812 = vmatpush1.bf16.msra.mxu0 0
          %813 = vmatprep.subr.bf16.mxu0 0
          %814 = vmatpush1.bf16.msra.mxu0 0
          %815 = vmatprep.subr.bf16.mxu0 0
          %816 = vmatpush1.bf16.msra.mxu0 0
          %817 = vmatprep.mubr.bf16.mxu0 0
          %818 = vmatmul.mubr.bf16.gmra.mrb[0].mxu0 %v577
          %v819 = vpop.f32.mrb[0].mxu0
          %v820 = vadd.f32 0.0, %v819
          %v821 = vpop.f32.mrb[0].mxu0
          %v822 = vpop.f32.mrb[0].mxu0
          %v823 = vpop.f32.mrb[0].mxu0
          %824 = vdwg.mxu0
          %v825 = vpack.c.bf16 %v820, %v820
          %s826 = scalar_lea.vmem [#allocation2], 8
          %827 = vst.msk [vmem:[%s826] sm:$0xf] %vm620, %v825
          %s828 = scalar_lea.vmem %s8, 16
          %v829 = vld [vmem:[%s828] sm:$0xf]
          %v830 = vld [vmem:[%s828 + $0x4] sm:$0xf]
          %v833 = vunpack.c.l.b16 %v829
          %v834 = vunpack.c.l.b16 %v830
          %v835 = vpack.c.b16 %v834, %v833
          %837 = vmatprep.subr.bf16.mxu0 0
          %838 = vmatpush1.bf16.msra.mxu0 %v835
          %839 = vmatprep.subr.bf16.mxu0 0
          %840 = vmatpush1.bf16.msra.mxu0 0
          %841 = vmatprep.subr.bf16.mxu0 0
          %842 = vmatpush1.bf16.msra.mxu0 0
          %843 = vmatprep.subr.bf16.mxu0 0
          %844 = vmatpush1.bf16.msra.mxu0 0
          %845 = vmatprep.subr.bf16.mxu0 0
          %846 = vmatpush1.bf16.msra.mxu0 0
          %847 = vmatprep.subr.bf16.mxu0 0
          %848 = vmatpush1.bf16.msra.mxu0 0
          %849 = vmatprep.subr.bf16.mxu0 0
          %850 = vmatpush1.bf16.msra.mxu0 0
          %851 = vmatprep.subr.bf16.mxu0 0
          %852 = vmatpush1.bf16.msra.mxu0 0
          %853 = vmatprep.subr.bf16.mxu0 0
          %854 = vmatpush1.bf16.msra.mxu0 0
          %855 = vmatprep.subr.bf16.mxu0 0
          %856 = vmatpush1.bf16.msra.mxu0 0
          %857 = vmatprep.subr.bf16.mxu0 0
          %858 = vmatpush1.bf16.msra.mxu0 0
          %859 = vmatprep.subr.bf16.mxu0 0
          %860 = vmatpush1.bf16.msra.mxu0 0
          %861 = vmatprep.subr.bf16.mxu0 0
          %862 = vmatpush1.bf16.msra.mxu0 0
          %863 = vmatprep.subr.bf16.mxu0 0
          %864 = vmatpush1.bf16.msra.mxu0 0
          %865 = vmatprep.subr.bf16.mxu0 0
          %866 = vmatpush1.bf16.msra.mxu0 0
          %867 = vmatprep.subr.bf16.mxu0 0
          %868 = vmatpush1.bf16.msra.mxu0 0
          %869 = vmatprep.mubr.bf16.mxu0 0
          %870 = vmatmul.mubr.bf16.gmra.mrb[0].mxu0 %v577
          %v871 = vpop.f32.mrb[0].mxu0
          %v872 = vadd.f32 0.0, %v871
          %v873 = vpop.f32.mrb[0].mxu0
          %v874 = vpop.f32.mrb[0].mxu0
          %v875 = vpop.f32.mrb[0].mxu0
          %876 = vdwg.mxu0
          %v877 = vpack.c.bf16 %v872, %v872
          %s878 = scalar_lea.vmem [#allocation3], 8
          %879 = vst.msk [vmem:[%s878] sm:$0xf] %vm620, %v877
          %s880 = scalar_lea.vmem %s7, 24
          %v881 = vld [vmem:[%s880] sm:$0xf]
          %v882 = vld [vmem:[%s880 + $0x4] sm:$0xf]
          %v885 = vunpack.c.l.b16 %v881
          %v886 = vunpack.c.l.b16 %v882
          %v887 = vpack.c.b16 %v886, %v885
          %889 = vmatprep.subr.bf16.mxu0 0
          %890 = vmatpush1.bf16.msra.mxu0 %v887
          %891 = vmatprep.subr.bf16.mxu0 0
          %892 = vmatpush1.bf16.msra.mxu0 0
          %893 = vmatprep.subr.bf16.mxu0 0
          %894 = vmatpush1.bf16.msra.mxu0 0
          %895 = vmatprep.subr.bf16.mxu0 0
          %896 = vmatpush1.bf16.msra.mxu0 0
          %897 = vmatprep.subr.bf16.mxu0 0
          %898 = vmatpush1.bf16.msra.mxu0 0
          %899 = vmatprep.subr.bf16.mxu0 0
          %900 = vmatpush1.bf16.msra.mxu0 0
          %901 = vmatprep.subr.bf16.mxu0 0
          %902 = vmatpush1.bf16.msra.mxu0 0
          %903 = vmatprep.subr.bf16.mxu0 0
          %904 = vmatpush1.bf16.msra.mxu0 0
          %905 = vmatprep.subr.bf16.mxu0 0
          %906 = vmatpush1.bf16.msra.mxu0 0
          %907 = vmatprep.subr.bf16.mxu0 0
          %908 = vmatpush1.bf16.msra.mxu0 0
          %909 = vmatprep.subr.bf16.mxu0 0
          %910 = vmatpush1.bf16.msra.mxu0 0
          %911 = vmatprep.subr.bf16.mxu0 0
          %912 = vmatpush1.bf16.msra.mxu0 0
          %913 = vmatprep.subr.bf16.mxu0 0
          %914 = vmatpush1.bf16.msra.mxu0 0
          %915 = vmatprep.subr.bf16.mxu0 0
          %916 = vmatpush1.bf16.msra.mxu0 0
          %917 = vmatprep.subr.bf16.mxu0 0
          %918 = vmatpush1.bf16.msra.mxu0 0
          %919 = vmatprep.subr.bf16.mxu0 0
          %920 = vmatpush1.bf16.msra.mxu0 0
          %921 = vmatprep.mubr.bf16.mxu0 0
          %922 = vmatmul.mubr.bf16.gmra.mrb[0].mxu0 %v577
          %v923 = vpop.f32.mrb[0].mxu0
          %v924 = vadd.f32 0.0, %v923
          %v925 = vpop.f32.mrb[0].mxu0
          %v926 = vpop.f32.mrb[0].mxu0
          %v927 = vpop.f32.mrb[0].mxu0
          %928 = vdwg.mxu0
          %v929 = vpack.c.bf16 %v924, %v924
          %s930 = scalar_lea.vmem [#allocation2], 12
          %931 = vst.msk [vmem:[%s930] sm:$0xf] %vm620, %v929
          %s932 = scalar_lea.vmem %s8, 24
          %v933 = vld [vmem:[%s932] sm:$0xf]
          %v934 = vld [vmem:[%s932 + $0x4] sm:$0xf]
          %v937 = vunpack.c.l.b16 %v933
          %v938 = vunpack.c.l.b16 %v934
          %v939 = vpack.c.b16 %v938, %v937
          %941 = vmatprep.subr.bf16.mxu0 0
          %942 = vmatpush1.bf16.msra.mxu0 %v939
          %943 = vmatprep.subr.bf16.mxu0 0
          %944 = vmatpush1.bf16.msra.mxu0 0
          %945 = vmatprep.subr.bf16.mxu0 0
          %946 = vmatpush1.bf16.msra.mxu0 0
          %947 = vmatprep.subr.bf16.mxu0 0
          %948 = vmatpush1.bf16.msra.mxu0 0
          %949 = vmatprep.subr.bf16.mxu0 0
          %950 = vmatpush1.bf16.msra.mxu0 0
          %951 = vmatprep.subr.bf16.mxu0 0
          %952 = vmatpush1.bf16.msra.mxu0 0
          %953 = vmatprep.subr.bf16.mxu0 0
          %954 = vmatpush1.bf16.msra.mxu0 0
          %955 = vmatprep.subr.bf16.mxu0 0
          %956 = vmatpush1.bf16.msra.mxu0 0
          %957 = vmatprep.subr.bf16.mxu0 0
          %958 = vmatpush1.bf16.msra.mxu0 0
          %959 = vmatprep.subr.bf16.mxu0 0
          %960 = vmatpush1.bf16.msra.mxu0 0
          %961 = vmatprep.subr.bf16.mxu0 0
          %962 = vmatpush1.bf16.msra.mxu0 0
          %963 = vmatprep.subr.bf16.mxu0 0
          %964 = vmatpush1.bf16.msra.mxu0 0
          %965 = vmatprep.subr.bf16.mxu0 0
          %966 = vmatpush1.bf16.msra.mxu0 0
          %967 = vmatprep.subr.bf16.mxu0 0
          %968 = vmatpush1.bf16.msra.mxu0 0
          %969 = vmatprep.subr.bf16.mxu0 0
          %970 = vmatpush1.bf16.msra.mxu0 0
          %971 = vmatprep.subr.bf16.mxu0 0
          %972 = vmatpush1.bf16.msra.mxu0 0
          %973 = vmatprep.mubr.bf16.mxu0 0
          %974 = vmatmul.mubr.bf16.gmra.mrb[0].mxu0 %v577
          %v975 = vpop.f32.mrb[0].mxu0
          %v976 = vadd.f32 0.0, %v975
          %v977 = vpop.f32.mrb[0].mxu0
          %v978 = vpop.f32.mrb[0].mxu0
          %v979 = vpop.f32.mrb[0].mxu0
          %980 = vdwg.mxu0
          %v981 = vpack.c.bf16 %v976, %v976
          %s982 = scalar_lea.vmem [#allocation3], 12
          %983 = vst.msk [vmem:[%s982] sm:$0xf] %vm620, %v981
        $region88: #{tpu_custom_call.1} parent=79 // pred_fallthru
          _
        %v984 = vld [vmem:[%s4] sm:$0x1]
        %v985 = vld [vmem:[%s545] sm:$0xff]
        %v986 = vstv %s548
        %v987 = vmul.f32 %v986, %v985
        %v988 = vtanh.pop %v987
        %v990 = vlaneseq
        %v991 = vshrl.u32 %v990, 7
        %v992 = vsub.s32 0, %v991
        %v993 = vrot.slane %v984, %v992
        %v995 = vmul.f32 %v993, %v988
        %v996 = vpack.c.bf16 %v995, %v995
        %v997 = vld [vmem:[%s6] sm:$0xf]
        %v998 = vld [vmem:[%s6 + $0x4] sm:$0xf]
        %v1001 = vunpack.c.l.b16 %v997
        %v1002 = vunpack.c.l.b16 %v998
        %v1003 = vpack.c.b16 %v1002, %v1001
        %vm1005 = vcmask 130048
        %v1007 = vsel %vm1005, %v996, 0
        %1009 = vmatprep.subr.bf16.mxu0 0
        %1010 = vmatpush1.bf16.msra.mxu0 %v1003
        %1011 = vmatprep.subr.bf16.mxu0 0
        %1012 = vmatpush1.bf16.msra.mxu0 0
        %1013 = vmatprep.subr.bf16.mxu0 0
        %1014 = vmatpush1.bf16.msra.mxu0 0
        %1015 = vmatprep.subr.bf16.mxu0 0
        %1016 = vmatpush1.bf16.msra.mxu0 0
        %1017 = vmatprep.subr.bf16.mxu0 0
        %1018 = vmatpush1.bf16.msra.mxu0 0
        %1019 = vmatprep.subr.bf16.mxu0 0
        %1020 = vmatpush1.bf16.msra.mxu0 0
        %1021 = vmatprep.subr.bf16.mxu0 0
        %1022 = vmatpush1.bf16.msra.mxu0 0
        %1023 = vmatprep.subr.bf16.mxu0 0
        %1024 = vmatpush1.bf16.msra.mxu0 0
        %1025 = vmatprep.subr.bf16.mxu0 0
        %1026 = vmatpush1.bf16.msra.mxu0 0
        %1027 = vmatprep.subr.bf16.mxu0 0
        %1028 = vmatpush1.bf16.msra.mxu0 0
        %1029 = vmatprep.subr.bf16.mxu0 0
        %1030 = vmatpush1.bf16.msra.mxu0 0
        %1031 = vmatprep.subr.bf16.mxu0 0
        %1032 = vmatpush1.bf16.msra.mxu0 0
        %1033 = vmatprep.subr.bf16.mxu0 0
        %1034 = vmatpush1.bf16.msra.mxu0 0
        %1035 = vmatprep.subr.bf16.mxu0 0
        %1036 = vmatpush1.bf16.msra.mxu0 0
        %1037 = vmatprep.subr.bf16.mxu0 0
        %1038 = vmatpush1.bf16.msra.mxu0 0
        %1039 = vmatprep.subr.bf16.mxu0 0
        %1040 = vmatpush1.bf16.msra.mxu0 0
        %1041 = vmatprep.mubr.bf16.mxu0 0
        %1042 = vmatmul.mubr.bf16.gmra.mrb[0].mxu0 %v1007
        %v1043 = vpop.f32.mrb[0].mxu0
        %v1044 = vadd.f32 0.0, %v1043
        %v1045 = vpop.f32.mrb[0].mxu0
        %v1046 = vpop.f32.mrb[0].mxu0
        %v1047 = vpop.f32.mrb[0].mxu0
        %1048 = vdwg.mxu0
        %v1049 = vpack.c.bf16 %v1044, %v1044
        %v1050 = vld [vmem:[#allocation2] sm:$0xf]
        %vm1051 = vcmask 64512
        %v1053 = vsel %vm1051, %v1049, 0
        %v1056 = vsel %vm1051, %v1050, 0
        %1058 = vmatprep.subr.bf16.mxu0 0
        %1059 = vmatpush1.bf16.xpose.msra.mxu0 %v1056
        %1060 = vmatprep.subr.bf16.mxu0 0
        %1061 = vmatpush1.bf16.xpose.msra.mxu0 0
        %1062 = vmatprep.subr.bf16.mxu0 0
        %1063 = vmatpush1.bf16.xpose.msra.mxu0 0
        %1064 = vmatprep.subr.bf16.mxu0 0
        %1065 = vmatpush1.bf16.xpose.msra.mxu0 0
        %1066 = vmatprep.subr.bf16.mxu0 0
        %1067 = vmatpush1.bf16.xpose.msra.mxu0 0
        %1068 = vmatprep.subr.bf16.mxu0 0
        %1069 = vmatpush1.bf16.xpose.msra.mxu0 0
        %1070 = vmatprep.subr.bf16.mxu0 0
        %1071 = vmatpush1.bf16.xpose.msra.mxu0 0
        %1072 = vmatprep.subr.bf16.mxu0 0
        %1073 = vmatpush1.bf16.xpose.msra.mxu0 0
        %1074 = vmatprep.subr.bf16.mxu0 0
        %1075 = vmatpush1.bf16.xpose.msra.mxu0 0
        %1076 = vmatprep.subr.bf16.mxu0 0
        %1077 = vmatpush1.bf16.xpose.msra.mxu0 0
        %1078 = vmatprep.subr.bf16.mxu0 0
        %1079 = vmatpush1.bf16.xpose.msra.mxu0 0
        %1080 = vmatprep.subr.bf16.mxu0 0
        %1081 = vmatpush1.bf16.xpose.msra.mxu0 0
        %1082 = vmatprep.subr.bf16.mxu0 0
        %1083 = vmatpush1.bf16.xpose.msra.mxu0 0
        %1084 = vmatprep.subr.bf16.mxu0 0
        %1085 = vmatpush1.bf16.xpose.msra.mxu0 0
        %1086 = vmatprep.subr.bf16.mxu0 0
        %1087 = vmatpush1.bf16.xpose.msra.mxu0 0
        %1088 = vmatprep.subr.bf16.mxu0 0
        %1089 = vmatpush1.bf16.xpose.msra.mxu0 0
        %1090 = vmatprep.mubr.bf16.mxu0 0
        %1091 = vmatmul.mubr.bf16.gmra.mrb[0].mxu0 %v1053
        %v1092 = vpop.f32.mrb[0].mxu0
        %v1093 = vadd.f32 0.0, %v1092
        %v1094 = vpop.f32.mrb[0].mxu0
        %v1095 = vpop.f32.mrb[0].mxu0
        %v1096 = vpop.f32.mrb[0].mxu0
        %1097 = vdwg.mxu0
        %v1098 = vsel %vm1051, %v1093, -inf
        %1099 = vmax.xlane.f32.xlu0 %v1098
        %v1100 = vpop.xlane.xlu0 %1099
        %v1101 = vsub.f32 %v1093, %v1100
        %v1102 = vmul.f32 %v1101, 1.442695
        %v1103 = vpow.pop %v1102
        %v1104 = vsel %vm1051, %v1103, 0.0
        %1105 = vadd.xlane.f32.xlu0 %v1104
        %v1106 = vpop.xlane.xlu0 %1105
        %v1107 = vpack.c.bf16 %v1103, %v1103
        %v1108 = vld [vmem:[#allocation3] sm:$0xf]
        %v1110 = vsel %vm1051, %v1107, 0
        %vm1112 = vcmask 1043456
        %v1114 = vsel %vm1112, %v1108, 0
        %1116 = vmatprep.subr.bf16.mxu0 0
        %1117 = vmatpush1.bf16.msra.mxu0 %v1114
        %1118 = vmatprep.subr.bf16.mxu0 0
        %1119 = vmatpush1.bf16.msra.mxu0 0
        %1120 = vmatprep.subr.bf16.mxu0 0
        %1121 = vmatpush1.bf16.msra.mxu0 0
        %1122 = vmatprep.subr.bf16.mxu0 0
        %1123 = vmatpush1.bf16.msra.mxu0 0
        %1124 = vmatprep.subr.bf16.mxu0 0
        %1125 = vmatpush1.bf16.msra.mxu0 0
        %1126 = vmatprep.subr.bf16.mxu0 0
        %1127 = vmatpush1.bf16.msra.mxu0 0
        %1128 = vmatprep.subr.bf16.mxu0 0
        %1129 = vmatpush1.bf16.msra.mxu0 0
        %1130 = vmatprep.subr.bf16.mxu0 0
        %1131 = vmatpush1.bf16.msra.mxu0 0
        %1132 = vmatprep.subr.bf16.mxu0 0
        %1133 = vmatpush1.bf16.msra.mxu0 0
        %1134 = vmatprep.subr.bf16.mxu0 0
        %1135 = vmatpush1.bf16.msra.mxu0 0
        %1136 = vmatprep.subr.bf16.mxu0 0
        %1137 = vmatpush1.bf16.msra.mxu0 0
        %1138 = vmatprep.subr.bf16.mxu0 0
        %1139 = vmatpush1.bf16.msra.mxu0 0
        %1140 = vmatprep.subr.bf16.mxu0 0
        %1141 = vmatpush1.bf16.msra.mxu0 0
        %1142 = vmatprep.subr.bf16.mxu0 0
        %1143 = vmatpush1.bf16.msra.mxu0 0
        %1144 = vmatprep.subr.bf16.mxu0 0
        %1145 = vmatpush1.bf16.msra.mxu0 0
        %1146 = vmatprep.subr.bf16.mxu0 0
        %1147 = vmatpush1.bf16.msra.mxu0 0
        %1148 = vmatprep.mubr.bf16.mxu0 0
        %1149 = vmatmul.mubr.bf16.gmra.mrb[0].mxu0 %v1110
        %v1150 = vpop.f32.mrb[0].mxu0
        %v1151 = vadd.f32 0.0, %v1150
        %v1152 = vpop.f32.mrb[0].mxu0
        %v1153 = vpop.f32.mrb[0].mxu0
        %v1154 = vpop.f32.mrb[0].mxu0
        %1155 = vdwg.mxu0
        %v1156 = vrcp.pop %v1106
        %v1157 = vmul.f32 %v1151, %v1156
        %v1158 = vpack.c.bf16 %v1157, %v1157
        %v1159 = vld [vmem:[%s9] sm:$0xf]
        %s1160 = scalar_lea.vmem %s6, 8
        %v1161 = vld [vmem:[%s1160] sm:$0xf]
        %v1162 = vld [vmem:[%s1160 + $0x4] sm:$0xf]
        %v1165 = vunpack.c.l.b16 %v1161
        %v1166 = vunpack.c.l.b16 %v1162
        %v1167 = vpack.c.b16 %v1166, %v1165
        %1169 = vmatprep.subr.bf16.mxu0 0
        %1170 = vmatpush1.bf16.msra.mxu0 %v1167
        %1171 = vmatprep.subr.bf16.mxu0 0
        %1172 = vmatpush1.bf16.msra.mxu0 0
        %1173 = vmatprep.subr.bf16.mxu0 0
        %1174 = vmatpush1.bf16.msra.mxu0 0
        %1175 = vmatprep.subr.bf16.mxu0 0
        %1176 = vmatpush1.bf16.msra.mxu0 0
        %1177 = vmatprep.subr.bf16.mxu0 0
        %1178 = vmatpush1.bf16.msra.mxu0 0
        %1179 = vmatprep.subr.bf16.mxu0 0
        %1180 = vmatpush1.bf16.msra.mxu0 0
        %1181 = vmatprep.subr.bf16.mxu0 0
        %1182 = vmatpush1.bf16.msra.mxu0 0
        %1183 = vmatprep.subr.bf16.mxu0 0
        %1184 = vmatpush1.bf16.msra.mxu0 0
        %1185 = vmatprep.subr.bf16.mxu0 0
        %1186 = vmatpush1.bf16.msra.mxu0 0
        %1187 = vmatprep.subr.bf16.mxu0 0
        %1188 = vmatpush1.bf16.msra.mxu0 0
        %1189 = vmatprep.subr.bf16.mxu0 0
        %1190 = vmatpush1.bf16.msra.mxu0 0
        %1191 = vmatprep.subr.bf16.mxu0 0
        %1192 = vmatpush1.bf16.msra.mxu0 0
        %1193 = vmatprep.subr.bf16.mxu0 0
        %1194 = vmatpush1.bf16.msra.mxu0 0
        %1195 = vmatprep.subr.bf16.mxu0 0
        %1196 = vmatpush1.bf16.msra.mxu0 0
        %1197 = vmatprep.subr.bf16.mxu0 0
        %1198 = vmatpush1.bf16.msra.mxu0 0
        %1199 = vmatprep.subr.bf16.mxu0 0
        %1200 = vmatpush1.bf16.msra.mxu0 0
        %1201 = vmatprep.mubr.bf16.mxu0 0
        %1202 = vmatmul.mubr.bf16.gmra.mrb[0].mxu0 %v1007
        %v1203 = vpop.f32.mrb[0].mxu0
        %v1204 = vadd.f32 0.0, %v1203
        %v1205 = vpop.f32.mrb[0].mxu0
        %v1206 = vpop.f32.mrb[0].mxu0
        %v1207 = vpop.f32.mrb[0].mxu0
        %1208 = vdwg.mxu0
        %v1209 = vpack.c.bf16 %v1204, %v1204
        %s1210 = scalar_lea.vmem [#allocation2], 4
        %v1211 = vld [vmem:[%s1210] sm:$0xf]
        %v1213 = vsel %vm1051, %v1209, 0
        %v1216 = vsel %vm1051, %v1211, 0
        %1218 = vmatprep.subr.bf16.mxu0 0
        %1219 = vmatpush1.bf16.xpose.msra.mxu0 %v1216
        %1220 = vmatprep.subr.bf16.mxu0 0
        %1221 = vmatpush1.bf16.xpose.msra.mxu0 0
        %1222 = vmatprep.subr.bf16.mxu0 0
        %1223 = vmatpush1.bf16.xpose.msra.mxu0 0
        %1224 = vmatprep.subr.bf16.mxu0 0
        %1225 = vmatpush1.bf16.xpose.msra.mxu0 0
        %1226 = vmatprep.subr.bf16.mxu0 0
        %1227 = vmatpush1.bf16.xpose.msra.mxu0 0
        %1228 = vmatprep.subr.bf16.mxu0 0
        %1229 = vmatpush1.bf16.xpose.msra.mxu0 0
        %1230 = vmatprep.subr.bf16.mxu0 0
        %1231 = vmatpush1.bf16.xpose.msra.mxu0 0
        %1232 = vmatprep.subr.bf16.mxu0 0
        %1233 = vmatpush1.bf16.xpose.msra.mxu0 0
        %1234 = vmatprep.subr.bf16.mxu0 0
        %1235 = vmatpush1.bf16.xpose.msra.mxu0 0
        %1236 = vmatprep.subr.bf16.mxu0 0
        %1237 = vmatpush1.bf16.xpose.msra.mxu0 0
        %1238 = vmatprep.subr.bf16.mxu0 0
        %1239 = vmatpush1.bf16.xpose.msra.mxu0 0
        %1240 = vmatprep.subr.bf16.mxu0 0
        %1241 = vmatpush1.bf16.xpose.msra.mxu0 0
        %1242 = vmatprep.subr.bf16.mxu0 0
        %1243 = vmatpush1.bf16.xpose.msra.mxu0 0
        %1244 = vmatprep.subr.bf16.mxu0 0
        %1245 = vmatpush1.bf16.xpose.msra.mxu0 0
        %1246 = vmatprep.subr.bf16.mxu0 0
        %1247 = vmatpush1.bf16.xpose.msra.mxu0 0
        %1248 = vmatprep.subr.bf16.mxu0 0
        %1249 = vmatpush1.bf16.xpose.msra.mxu0 0
        %1250 = vmatprep.mubr.bf16.mxu0 0
        %1251 = vmatmul.mubr.bf16.gmra.mrb[0].mxu0 %v1213
        %v1252 = vpop.f32.mrb[0].mxu0
        %v1253 = vadd.f32 0.0, %v1252
        %v1254 = vpop.f32.mrb[0].mxu0
        %v1255 = vpop.f32.mrb[0].mxu0
        %v1256 = vpop.f32.mrb[0].mxu0
        %1257 = vdwg.mxu0
        %v1258 = vsel %vm1051, %v1253, -inf
        %1259 = vmax.xlane.f32.xlu0 %v1258
        %v1260 = vpop.xlane.xlu0 %1259
        %v1261 = vsub.f32 %v1253, %v1260
        %v1262 = vmul.f32 %v1261, 1.442695
        %v1263 = vpow.pop %v1262
        %v1264 = vsel %vm1051, %v1263, 0.0
        %1265 = vadd.xlane.f32.xlu0 %v1264
        %v1266 = vpop.xlane.xlu0 %1265
        %v1267 = vpack.c.bf16 %v1263, %v1263
        %s1268 = scalar_lea.vmem [#allocation3], 4
        %v1269 = vld [vmem:[%s1268] sm:$0xf]
        %v1271 = vsel %vm1051, %v1267, 0
        %v1274 = vsel %vm1112, %v1269, 0
        %1276 = vmatprep.subr.bf16.mxu0 0
        %1277 = vmatpush1.bf16.msra.mxu0 %v1274
        %1278 = vmatprep.subr.bf16.mxu0 0
        %1279 = vmatpush1.bf16.msra.mxu0 0
        %1280 = vmatprep.subr.bf16.mxu0 0
        %1281 = vmatpush1.bf16.msra.mxu0 0
        %1282 = vmatprep.subr.bf16.mxu0 0
        %1283 = vmatpush1.bf16.msra.mxu0 0
        %1284 = vmatprep.subr.bf16.mxu0 0
        %1285 = vmatpush1.bf16.msra.mxu0 0
        %1286 = vmatprep.subr.bf16.mxu0 0
        %1287 = vmatpush1.bf16.msra.mxu0 0
        %1288 = vmatprep.subr.bf16.mxu0 0
        %1289 = vmatpush1.bf16.msra.mxu0 0
        %1290 = vmatprep.subr.bf16.mxu0 0
        %1291 = vmatpush1.bf16.msra.mxu0 0
        %1292 = vmatprep.subr.bf16.mxu0 0
        %1293 = vmatpush1.bf16.msra.mxu0 0
        %1294 = vmatprep.subr.bf16.mxu0 0
        %1295 = vmatpush1.bf16.msra.mxu0 0
        %1296 = vmatprep.subr.bf16.mxu0 0
        %1297 = vmatpush1.bf16.msra.mxu0 0
        %1298 = vmatprep.subr.bf16.mxu0 0
        %1299 = vmatpush1.bf16.msra.mxu0 0
        %1300 = vmatprep.subr.bf16.mxu0 0
        %1301 = vmatpush1.bf16.msra.mxu0 0
        %1302 = vmatprep.subr.bf16.mxu0 0
        %1303 = vmatpush1.bf16.msra.mxu0 0
        %1304 = vmatprep.subr.bf16.mxu0 0
        %1305 = vmatpush1.bf16.msra.mxu0 0
        %1306 = vmatprep.subr.bf16.mxu0 0
        %1307 = vmatpush1.bf16.msra.mxu0 0
        %1308 = vmatprep.mubr.bf16.mxu0 0
        %1309 = vmatmul.mubr.bf16.gmra.mrb[0].mxu0 %v1271
        %v1310 = vpop.f32.mrb[0].mxu0
        %v1311 = vadd.f32 0.0, %v1310
        %v1312 = vpop.f32.mrb[0].mxu0
        %v1313 = vpop.f32.mrb[0].mxu0
        %v1314 = vpop.f32.mrb[0].mxu0
        %1315 = vdwg.mxu0
        %v1316 = vrcp.pop %v1266
        %v1317 = vmul.f32 %v1311, %v1316
        %v1318 = vpack.c.bf16 %v1317, %v1317
        %s1319 = scalar_lea.vmem %s9, 4
        %v1320 = vld [vmem:[%s1319] sm:$0xf]
        %v1322 = vsel %vm1051, %v1318, 0
        %v1325 = vsel %vm1112, %v1320, 0
        %1327 = vmatprep.subr.bf16.mxu0 0
        %1328 = vmatpush1.bf16.msra.mxu0 %v1325
        %1329 = vmatprep.subr.bf16.mxu0 0
        %1330 = vmatpush1.bf16.msra.mxu0 0
        %1331 = vmatprep.subr.bf16.mxu0 0
        %1332 = vmatpush1.bf16.msra.mxu0 0
        %1333 = vmatprep.subr.bf16.mxu0 0
        %1334 = vmatpush1.bf16.msra.mxu0 0
        %1335 = vmatprep.subr.bf16.mxu0 0
        %1336 = vmatpush1.bf16.msra.mxu0 0
        %1337 = vmatprep.subr.bf16.mxu0 0
        %1338 = vmatpush1.bf16.msra.mxu0 0
        %1339 = vmatprep.subr.bf16.mxu0 0
        %1340 = vmatpush1.bf16.msra.mxu0 0
        %1341 = vmatprep.subr.bf16.mxu0 0
        %1342 = vmatpush1.bf16.msra.mxu0 0
        %1343 = vmatprep.subr.bf16.mxu0 0
        %1344 = vmatpush1.bf16.msra.mxu0 0
        %1345 = vmatprep.subr.bf16.mxu0 0
        %1346 = vmatpush1.bf16.msra.mxu0 0
        %1347 = vmatprep.subr.bf16.mxu0 0
        %1348 = vmatpush1.bf16.msra.mxu0 0
        %1349 = vmatprep.subr.bf16.mxu0 0
        %1350 = vmatpush1.bf16.msra.mxu0 0
        %1351 = vmatprep.subr.bf16.mxu0 0
        %1352 = vmatpush1.bf16.msra.mxu0 0
        %1353 = vmatprep.subr.bf16.mxu0 0
        %1354 = vmatpush1.bf16.msra.mxu0 0
        %1355 = vmatprep.subr.bf16.mxu0 0
        %1356 = vmatpush1.bf16.msra.mxu0 0
        %1357 = vmatprep.subr.bf16.mxu0 0
        %1358 = vmatpush1.bf16.msra.mxu0 0
        %1359 = vmatprep.mubr.bf16.mxu0 0
        %1360 = vmatmul.mubr.bf16.gmra.mrb[0].mxu0 %v1322
        %v1361 = vpop.f32.mrb[0].mxu0
        %v1362 = vadd.f32 0.0, %v1361
        %v1363 = vpop.f32.mrb[0].mxu0
        %v1364 = vpop.f32.mrb[0].mxu0
        %v1365 = vpop.f32.mrb[0].mxu0
        %1366 = vdwg.mxu0
        %v1368 = vsel %vm1051, %v1158, 0
        %v1371 = vsel %vm1112, %v1159, 0
        %1373 = vmatprep.subr.bf16.mxu0 0
        %1374 = vmatpush1.bf16.msra.mxu0 %v1371
        %1375 = vmatprep.subr.bf16.mxu0 0
        %1376 = vmatpush1.bf16.msra.mxu0 0
        %1377 = vmatprep.subr.bf16.mxu0 0
        %1378 = vmatpush1.bf16.msra.mxu0 0
        %1379 = vmatprep.subr.bf16.mxu0 0
        %1380 = vmatpush1.bf16.msra.mxu0 0
        %1381 = vmatprep.subr.bf16.mxu0 0
        %1382 = vmatpush1.bf16.msra.mxu0 0
        %1383 = vmatprep.subr.bf16.mxu0 0
        %1384 = vmatpush1.bf16.msra.mxu0 0
        %1385 = vmatprep.subr.bf16.mxu0 0
        %1386 = vmatpush1.bf16.msra.mxu0 0
        %1387 = vmatprep.subr.bf16.mxu0 0
        %1388 = vmatpush1.bf16.msra.mxu0 0
        %1389 = vmatprep.subr.bf16.mxu0 0
        %1390 = vmatpush1.bf16.msra.mxu0 0
        %1391 = vmatprep.subr.bf16.mxu0 0
        %1392 = vmatpush1.bf16.msra.mxu0 0
        %1393 = vmatprep.subr.bf16.mxu0 0
        %1394 = vmatpush1.bf16.msra.mxu0 0
        %1395 = vmatprep.subr.bf16.mxu0 0
        %1396 = vmatpush1.bf16.msra.mxu0 0
        %1397 = vmatprep.subr.bf16.mxu0 0
        %1398 = vmatpush1.bf16.msra.mxu0 0
        %1399 = vmatprep.subr.bf16.mxu0 0
        %1400 = vmatpush1.bf16.msra.mxu0 0
        %1401 = vmatprep.subr.bf16.mxu0 0
        %1402 = vmatpush1.bf16.msra.mxu0 0
        %1403 = vmatprep.subr.bf16.mxu0 0
        %1404 = vmatpush1.bf16.msra.mxu0 0
        %1405 = vmatprep.mubr.bf16.mxu0 0
        %1406 = vmatmul.mubr.bf16.gmra.mrb[0].mxu0 %v1368
        %v1407 = vpop.f32.mrb[0].mxu0
        %v1408 = vadd.f32 %v1362, %v1407
        %v1409 = vpop.f32.mrb[0].mxu0
        %v1410 = vpop.f32.mrb[0].mxu0
        %v1411 = vpop.f32.mrb[0].mxu0
        %1412 = vdwg.mxu0
        %s1413 = scalar_lea.vmem %s6, 16
        %v1414 = vld [vmem:[%s1413] sm:$0xf]
        %v1415 = vld [vmem:[%s1413 + $0x4] sm:$0xf]
        %v1418 = vunpack.c.l.b16 %v1414
        %v1419 = vunpack.c.l.b16 %v1415
        %v1420 = vpack.c.b16 %v1419, %v1418
        %1422 = vmatprep.subr.bf16.mxu0 0
        %1423 = vmatpush1.bf16.msra.mxu0 %v1420
        %1424 = vmatprep.subr.bf16.mxu0 0
        %1425 = vmatpush1.bf16.msra.mxu0 0
        %1426 = vmatprep.subr.bf16.mxu0 0
        %1427 = vmatpush1.bf16.msra.mxu0 0
        %1428 = vmatprep.subr.bf16.mxu0 0
        %1429 = vmatpush1.bf16.msra.mxu0 0
        %1430 = vmatprep.subr.bf16.mxu0 0
        %1431 = vmatpush1.bf16.msra.mxu0 0
        %1432 = vmatprep.subr.bf16.mxu0 0
        %1433 = vmatpush1.bf16.msra.mxu0 0
        %1434 = vmatprep.subr.bf16.mxu0 0
        %1435 = vmatpush1.bf16.msra.mxu0 0
        %1436 = vmatprep.subr.bf16.mxu0 0
        %1437 = vmatpush1.bf16.msra.mxu0 0
        %1438 = vmatprep.subr.bf16.mxu0 0
        %1439 = vmatpush1.bf16.msra.mxu0 0
        %1440 = vmatprep.subr.bf16.mxu0 0
        %1441 = vmatpush1.bf16.msra.mxu0 0
        %1442 = vmatprep.subr.bf16.mxu0 0
        %1443 = vmatpush1.bf16.msra.mxu0 0
        %1444 = vmatprep.subr.bf16.mxu0 0
        %1445 = vmatpush1.bf16.msra.mxu0 0
        %1446 = vmatprep.subr.bf16.mxu0 0
        %1447 = vmatpush1.bf16.msra.mxu0 0
        %1448 = vmatprep.subr.bf16.mxu0 0
        %1449 = vmatpush1.bf16.msra.mxu0 0
        %1450 = vmatprep.subr.bf16.mxu0 0
        %1451 = vmatpush1.bf16.msra.mxu0 0
        %1452 = vmatprep.subr.bf16.mxu0 0
        %1453 = vmatpush1.bf16.msra.mxu0 0
        %1454 = vmatprep.mubr.bf16.mxu0 0
        %1455 = vmatmul.mubr.bf16.gmra.mrb[0].mxu0 %v1007
        %v1456 = vpop.f32.mrb[0].mxu0
        %v1457 = vadd.f32 0.0, %v1456
        %v1458 = vpop.f32.mrb[0].mxu0
        %v1459 = vpop.f32.mrb[0].mxu0
        %v1460 = vpop.f32.mrb[0].mxu0
        %1461 = vdwg.mxu0
        %v1462 = vpack.c.bf16 %v1457, %v1457
        %s1463 = scalar_lea.vmem [#allocation2], 8
        %v1464 = vld [vmem:[%s1463] sm:$0xf]
        %v1466 = vsel %vm1051, %v1462, 0
        %v1469 = vsel %vm1051, %v1464, 0
        %1471 = vmatprep.subr.bf16.mxu0 0
        %1472 = vmatpush1.bf16.xpose.msra.mxu0 %v1469
        %1473 = vmatprep.subr.bf16.mxu0 0
        %1474 = vmatpush1.bf16.xpose.msra.mxu0 0
        %1475 = vmatprep.subr.bf16.mxu0 0
        %1476 = vmatpush1.bf16.xpose.msra.mxu0 0
        %1477 = vmatprep.subr.bf16.mxu0 0
        %1478 = vmatpush1.bf16.xpose.msra.mxu0 0
        %1479 = vmatprep.subr.bf16.mxu0 0
        %1480 = vmatpush1.bf16.xpose.msra.mxu0 0
        %1481 = vmatprep.subr.bf16.mxu0 0
        %1482 = vmatpush1.bf16.xpose.msra.mxu0 0
        %1483 = vmatprep.subr.bf16.mxu0 0
        %1484 = vmatpush1.bf16.xpose.msra.mxu0 0
        %1485 = vmatprep.subr.bf16.mxu0 0
        %1486 = vmatpush1.bf16.xpose.msra.mxu0 0
        %1487 = vmatprep.subr.bf16.mxu0 0
        %1488 = vmatpush1.bf16.xpose.msra.mxu0 0
        %1489 = vmatprep.subr.bf16.mxu0 0
        %1490 = vmatpush1.bf16.xpose.msra.mxu0 0
        %1491 = vmatprep.subr.bf16.mxu0 0
        %1492 = vmatpush1.bf16.xpose.msra.mxu0 0
        %1493 = vmatprep.subr.bf16.mxu0 0
        %1494 = vmatpush1.bf16.xpose.msra.mxu0 0
        %1495 = vmatprep.subr.bf16.mxu0 0
        %1496 = vmatpush1.bf16.xpose.msra.mxu0 0
        %1497 = vmatprep.subr.bf16.mxu0 0
        %1498 = vmatpush1.bf16.xpose.msra.mxu0 0
        %1499 = vmatprep.subr.bf16.mxu0 0
        %1500 = vmatpush1.bf16.xpose.msra.mxu0 0
        %1501 = vmatprep.subr.bf16.mxu0 0
        %1502 = vmatpush1.bf16.xpose.msra.mxu0 0
        %1503 = vmatprep.mubr.bf16.mxu0 0
        %1504 = vmatmul.mubr.bf16.gmra.mrb[0].mxu0 %v1466
        %v1505 = vpop.f32.mrb[0].mxu0
        %v1506 = vadd.f32 0.0, %v1505
        %v1507 = vpop.f32.mrb[0].mxu0
        %v1508 = vpop.f32.mrb[0].mxu0
        %v1509 = vpop.f32.mrb[0].mxu0
        %1510 = vdwg.mxu0
        %v1511 = vsel %vm1051, %v1506, -inf
        %1512 = vmax.xlane.f32.xlu0 %v1511
        %v1513 = vpop.xlane.xlu0 %1512
        %v1514 = vsub.f32 %v1506, %v1513
        %v1515 = vmul.f32 %v1514, 1.442695
        %v1516 = vpow.pop %v1515
        %v1517 = vsel %vm1051, %v1516, 0.0
        %1518 = vadd.xlane.f32.xlu0 %v1517
        %v1519 = vpop.xlane.xlu0 %1518
        %v1520 = vpack.c.bf16 %v1516, %v1516
        %s1521 = scalar_lea.vmem [#allocation3], 8
        %v1522 = vld [vmem:[%s1521] sm:$0xf]
        %v1524 = vsel %vm1051, %v1520, 0
        %v1527 = vsel %vm1112, %v1522, 0
        %1529 = vmatprep.subr.bf16.mxu0 0
        %1530 = vmatpush1.bf16.msra.mxu0 %v1527
        %1531 = vmatprep.subr.bf16.mxu0 0
        %1532 = vmatpush1.bf16.msra.mxu0 0
        %1533 = vmatprep.subr.bf16.mxu0 0
        %1534 = vmatpush1.bf16.msra.mxu0 0
        %1535 = vmatprep.subr.bf16.mxu0 0
        %1536 = vmatpush1.bf16.msra.mxu0 0
        %1537 = vmatprep.subr.bf16.mxu0 0
        %1538 = vmatpush1.bf16.msra.mxu0 0
        %1539 = vmatprep.subr.bf16.mxu0 0
        %1540 = vmatpush1.bf16.msra.mxu0 0
        %1541 = vmatprep.subr.bf16.mxu0 0
        %1542 = vmatpush1.bf16.msra.mxu0 0
        %1543 = vmatprep.subr.bf16.mxu0 0
        %1544 = vmatpush1.bf16.msra.mxu0 0
        %1545 = vmatprep.subr.bf16.mxu0 0
        %1546 = vmatpush1.bf16.msra.mxu0 0
        %1547 = vmatprep.subr.bf16.mxu0 0
        %1548 = vmatpush1.bf16.msra.mxu0 0
        %1549 = vmatprep.subr.bf16.mxu0 0
        %1550 = vmatpush1.bf16.msra.mxu0 0
        %1551 = vmatprep.subr.bf16.mxu0 0
        %1552 = vmatpush1.bf16.msra.mxu0 0
        %1553 = vmatprep.subr.bf16.mxu0 0
        %1554 = vmatpush1.bf16.msra.mxu0 0
        %1555 = vmatprep.subr.bf16.mxu0 0
        %1556 = vmatpush1.bf16.msra.mxu0 0
        %1557 = vmatprep.subr.bf16.mxu0 0
        %1558 = vmatpush1.bf16.msra.mxu0 0
        %1559 = vmatprep.subr.bf16.mxu0 0
        %1560 = vmatpush1.bf16.msra.mxu0 0
        %1561 = vmatprep.mubr.bf16.mxu0 0
        %1562 = vmatmul.mubr.bf16.gmra.mrb[0].mxu0 %v1524
        %v1563 = vpop.f32.mrb[0].mxu0
        %v1564 = vadd.f32 0.0, %v1563
        %v1565 = vpop.f32.mrb[0].mxu0
        %v1566 = vpop.f32.mrb[0].mxu0
        %v1567 = vpop.f32.mrb[0].mxu0
        %1568 = vdwg.mxu0
        %v1569 = vrcp.pop %v1519
        %v1570 = vmul.f32 %v1564, %v1569
        %v1571 = vpack.c.bf16 %v1570, %v1570
        %s1572 = scalar_lea.vmem %s9, 8
        %v1573 = vld [vmem:[%s1572] sm:$0xf]
        %v1575 = vsel %vm1051, %v1571, 0
        %v1578 = vsel %vm1112, %v1573, 0
        %1580 = vmatprep.subr.bf16.mxu0 0
        %1581 = vmatpush1.bf16.msra.mxu0 %v1578
        %1582 = vmatprep.subr.bf16.mxu0 0
        %1583 = vmatpush1.bf16.msra.mxu0 0
        %1584 = vmatprep.subr.bf16.mxu0 0
        %1585 = vmatpush1.bf16.msra.mxu0 0
        %1586 = vmatprep.subr.bf16.mxu0 0
        %1587 = vmatpush1.bf16.msra.mxu0 0
        %1588 = vmatprep.subr.bf16.mxu0 0
        %1589 = vmatpush1.bf16.msra.mxu0 0
        %1590 = vmatprep.subr.bf16.mxu0 0
        %1591 = vmatpush1.bf16.msra.mxu0 0
        %1592 = vmatprep.subr.bf16.mxu0 0
        %1593 = vmatpush1.bf16.msra.mxu0 0
        %1594 = vmatprep.subr.bf16.mxu0 0
        %1595 = vmatpush1.bf16.msra.mxu0 0
        %1596 = vmatprep.subr.bf16.mxu0 0
        %1597 = vmatpush1.bf16.msra.mxu0 0
        %1598 = vmatprep.subr.bf16.mxu0 0
        %1599 = vmatpush1.bf16.msra.mxu0 0
        %1600 = vmatprep.subr.bf16.mxu0 0
        %1601 = vmatpush1.bf16.msra.mxu0 0
        %1602 = vmatprep.subr.bf16.mxu0 0
        %1603 = vmatpush1.bf16.msra.mxu0 0
        %1604 = vmatprep.subr.bf16.mxu0 0
        %1605 = vmatpush1.bf16.msra.mxu0 0
        %1606 = vmatprep.subr.bf16.mxu0 0
        %1607 = vmatpush1.bf16.msra.mxu0 0
        %1608 = vmatprep.subr.bf16.mxu0 0
        %1609 = vmatpush1.bf16.msra.mxu0 0
        %1610 = vmatprep.subr.bf16.mxu0 0
        %1611 = vmatpush1.bf16.msra.mxu0 0
        %1612 = vmatprep.mubr.bf16.mxu0 0
        %1613 = vmatmul.mubr.bf16.gmra.mrb[0].mxu0 %v1575
        %v1614 = vpop.f32.mrb[0].mxu0
        %v1615 = vadd.f32 0.0, %v1614
        %v1616 = vpop.f32.mrb[0].mxu0
        %v1617 = vpop.f32.mrb[0].mxu0
        %v1618 = vpop.f32.mrb[0].mxu0
        %1619 = vdwg.mxu0
        %v1620 = vadd.f32 %v1408, %v1615
        %s1621 = scalar_lea.vmem %s6, 24
        %v1622 = vld [vmem:[%s1621] sm:$0xf]
        %v1623 = vld [vmem:[%s1621 + $0x4] sm:$0xf]
        %v1626 = vunpack.c.l.b16 %v1622
        %v1627 = vunpack.c.l.b16 %v1623
        %v1628 = vpack.c.b16 %v1627, %v1626
        %1630 = vmatprep.subr.bf16.mxu0 0
        %1631 = vmatpush1.bf16.msra.mxu0 %v1628
        %1632 = vmatprep.subr.bf16.mxu0 0
        %1633 = vmatpush1.bf16.msra.mxu0 0
        %1634 = vmatprep.subr.bf16.mxu0 0
        %1635 = vmatpush1.bf16.msra.mxu0 0
        %1636 = vmatprep.subr.bf16.mxu0 0
        %1637 = vmatpush1.bf16.msra.mxu0 0
        %1638 = vmatprep.subr.bf16.mxu0 0
        %1639 = vmatpush1.bf16.msra.mxu0 0
        %1640 = vmatprep.subr.bf16.mxu0 0
        %1641 = vmatpush1.bf16.msra.mxu0 0
        %1642 = vmatprep.subr.bf16.mxu0 0
        %1643 = vmatpush1.bf16.msra.mxu0 0
        %1644 = vmatprep.subr.bf16.mxu0 0
        %1645 = vmatpush1.bf16.msra.mxu0 0
        %1646 = vmatprep.subr.bf16.mxu0 0
        %1647 = vmatpush1.bf16.msra.mxu0 0
        %1648 = vmatprep.subr.bf16.mxu0 0
        %1649 = vmatpush1.bf16.msra.mxu0 0
        %1650 = vmatprep.subr.bf16.mxu0 0
        %1651 = vmatpush1.bf16.msra.mxu0 0
        %1652 = vmatprep.subr.bf16.mxu0 0
        %1653 = vmatpush1.bf16.msra.mxu0 0
        %1654 = vmatprep.subr.bf16.mxu0 0
        %1655 = vmatpush1.bf16.msra.mxu0 0
        %1656 = vmatprep.subr.bf16.mxu0 0
        %1657 = vmatpush1.bf16.msra.mxu0 0
        %1658 = vmatprep.subr.bf16.mxu0 0
        %1659 = vmatpush1.bf16.msra.mxu0 0
        %1660 = vmatprep.subr.bf16.mxu0 0
        %1661 = vmatpush1.bf16.msra.mxu0 0
        %1662 = vmatprep.mubr.bf16.mxu0 0
        %1663 = vmatmul.mubr.bf16.gmra.mrb[0].mxu0 %v1007
        %v1664 = vpop.f32.mrb[0].mxu0
        %v1665 = vadd.f32 0.0, %v1664
        %v1666 = vpop.f32.mrb[0].mxu0
        %v1667 = vpop.f32.mrb[0].mxu0
        %v1668 = vpop.f32.mrb[0].mxu0
        %1669 = vdwg.mxu0
        %v1670 = vpack.c.bf16 %v1665, %v1665
        %s1671 = scalar_lea.vmem [#allocation2], 12
        %v1672 = vld [vmem:[%s1671] sm:$0xf]
        %v1674 = vsel %vm1051, %v1670, 0
        %v1677 = vsel %vm1051, %v1672, 0
        %1679 = vmatprep.subr.bf16.mxu0 0
        %1680 = vmatpush1.bf16.xpose.msra.mxu0 %v1677
        %1681 = vmatprep.subr.bf16.mxu0 0
        %1682 = vmatpush1.bf16.xpose.msra.mxu0 0
        %1683 = vmatprep.subr.bf16.mxu0 0
        %1684 = vmatpush1.bf16.xpose.msra.mxu0 0
        %1685 = vmatprep.subr.bf16.mxu0 0
        %1686 = vmatpush1.bf16.xpose.msra.mxu0 0
        %1687 = vmatprep.subr.bf16.mxu0 0
        %1688 = vmatpush1.bf16.xpose.msra.mxu0 0
        %1689 = vmatprep.subr.bf16.mxu0 0
        %1690 = vmatpush1.bf16.xpose.msra.mxu0 0
        %1691 = vmatprep.subr.bf16.mxu0 0
        %1692 = vmatpush1.bf16.xpose.msra.mxu0 0
        %1693 = vmatprep.subr.bf16.mxu0 0
        %1694 = vmatpush1.bf16.xpose.msra.mxu0 0
        %1695 = vmatprep.subr.bf16.mxu0 0
        %1696 = vmatpush1.bf16.xpose.msra.mxu0 0
        %1697 = vmatprep.subr.bf16.mxu0 0
        %1698 = vmatpush1.bf16.xpose.msra.mxu0 0
        %1699 = vmatprep.subr.bf16.mxu0 0
        %1700 = vmatpush1.bf16.xpose.msra.mxu0 0
        %1701 = vmatprep.subr.bf16.mxu0 0
        %1702 = vmatpush1.bf16.xpose.msra.mxu0 0
        %1703 = vmatprep.subr.bf16.mxu0 0
        %1704 = vmatpush1.bf16.xpose.msra.mxu0 0
        %1705 = vmatprep.subr.bf16.mxu0 0
        %1706 = vmatpush1.bf16.xpose.msra.mxu0 0
        %1707 = vmatprep.subr.bf16.mxu0 0
        %1708 = vmatpush1.bf16.xpose.msra.mxu0 0
        %1709 = vmatprep.subr.bf16.mxu0 0
        %1710 = vmatpush1.bf16.xpose.msra.mxu0 0
        %1711 = vmatprep.mubr.bf16.mxu0 0
        %1712 = vmatmul.mubr.bf16.gmra.mrb[0].mxu0 %v1674
        %v1713 = vpop.f32.mrb[0].mxu0
        %v1714 = vadd.f32 0.0, %v1713
        %v1715 = vpop.f32.mrb[0].mxu0
        %v1716 = vpop.f32.mrb[0].mxu0
        %v1717 = vpop.f32.mrb[0].mxu0
        %1718 = vdwg.mxu0
        %v1719 = vsel %vm1051, %v1714, -inf
        %1720 = vmax.xlane.f32.xlu0 %v1719
        %v1721 = vpop.xlane.xlu0 %1720
        %v1722 = vsub.f32 %v1714, %v1721
        %v1723 = vmul.f32 %v1722, 1.442695
        %v1724 = vpow.pop %v1723
        %v1725 = vsel %vm1051, %v1724, 0.0
        %1726 = vadd.xlane.f32.xlu0 %v1725
        %v1727 = vpop.xlane.xlu0 %1726
        %v1728 = vpack.c.bf16 %v1724, %v1724
        %s1729 = scalar_lea.vmem [#allocation3], 12
        %v1730 = vld [vmem:[%s1729] sm:$0xf]
        %v1732 = vsel %vm1051, %v1728, 0
        %v1735 = vsel %vm1112, %v1730, 0
        %1737 = vmatprep.subr.bf16.mxu0 0
        %1738 = vmatpush1.bf16.msra.mxu0 %v1735
        %1739 = vmatprep.subr.bf16.mxu0 0
        %1740 = vmatpush1.bf16.msra.mxu0 0
        %1741 = vmatprep.subr.bf16.mxu0 0
        %1742 = vmatpush1.bf16.msra.mxu0 0
        %1743 = vmatprep.subr.bf16.mxu0 0
        %1744 = vmatpush1.bf16.msra.mxu0 0
        %1745 = vmatprep.subr.bf16.mxu0 0
        %1746 = vmatpush1.bf16.msra.mxu0 0
        %1747 = vmatprep.subr.bf16.mxu0 0
        %1748 = vmatpush1.bf16.msra.mxu0 0
        %1749 = vmatprep.subr.bf16.mxu0 0
        %1750 = vmatpush1.bf16.msra.mxu0 0
        %1751 = vmatprep.subr.bf16.mxu0 0
        %1752 = vmatpush1.bf16.msra.mxu0 0
        %1753 = vmatprep.subr.bf16.mxu0 0
        %1754 = vmatpush1.bf16.msra.mxu0 0
        %1755 = vmatprep.subr.bf16.mxu0 0
        %1756 = vmatpush1.bf16.msra.mxu0 0
        %1757 = vmatprep.subr.bf16.mxu0 0
        %1758 = vmatpush1.bf16.msra.mxu0 0
        %1759 = vmatprep.subr.bf16.mxu0 0
        %1760 = vmatpush1.bf16.msra.mxu0 0
        %1761 = vmatprep.subr.bf16.mxu0 0
        %1762 = vmatpush1.bf16.msra.mxu0 0
        %1763 = vmatprep.subr.bf16.mxu0 0
        %1764 = vmatpush1.bf16.msra.mxu0 0
        %1765 = vmatprep.subr.bf16.mxu0 0
        %1766 = vmatpush1.bf16.msra.mxu0 0
        %1767 = vmatprep.subr.bf16.mxu0 0
        %1768 = vmatpush1.bf16.msra.mxu0 0
        %1769 = vmatprep.mubr.bf16.mxu0 0
        %1770 = vmatmul.mubr.bf16.gmra.mrb[0].mxu0 %v1732
        %v1771 = vpop.f32.mrb[0].mxu0
        %v1772 = vadd.f32 0.0, %v1771
        %v1773 = vpop.f32.mrb[0].mxu0
        %v1774 = vpop.f32.mrb[0].mxu0
        %v1775 = vpop.f32.mrb[0].mxu0
        %1776 = vdwg.mxu0
        %v1777 = vrcp.pop %v1727
        %v1778 = vmul.f32 %v1772, %v1777
        %v1779 = vpack.c.bf16 %v1778, %v1778
        %s1780 = scalar_lea.vmem %s9, 12
        %v1781 = vld [vmem:[%s1780] sm:$0xf]
        %v1783 = vsel %vm1051, %v1779, 0
        %v1786 = vsel %vm1112, %v1781, 0
        %1788 = vmatprep.subr.bf16.mxu0 0
        %1789 = vmatpush1.bf16.msra.mxu0 %v1786
        %1790 = vmatprep.subr.bf16.mxu0 0
        %1791 = vmatpush1.bf16.msra.mxu0 0
        %1792 = vmatprep.subr.bf16.mxu0 0
        %1793 = vmatpush1.bf16.msra.mxu0 0
        %1794 = vmatprep.subr.bf16.mxu0 0
        %1795 = vmatpush1.bf16.msra.mxu0 0
        %1796 = vmatprep.subr.bf16.mxu0 0
        %1797 = vmatpush1.bf16.msra.mxu0 0
        %1798 = vmatprep.subr.bf16.mxu0 0
        %1799 = vmatpush1.bf16.msra.mxu0 0
        %1800 = vmatprep.subr.bf16.mxu0 0
        %1801 = vmatpush1.bf16.msra.mxu0 0
        %1802 = vmatprep.subr.bf16.mxu0 0
        %1803 = vmatpush1.bf16.msra.mxu0 0
        %1804 = vmatprep.subr.bf16.mxu0 0
        %1805 = vmatpush1.bf16.msra.mxu0 0
        %1806 = vmatprep.subr.bf16.mxu0 0
        %1807 = vmatpush1.bf16.msra.mxu0 0
        %1808 = vmatprep.subr.bf16.mxu0 0
        %1809 = vmatpush1.bf16.msra.mxu0 0
        %1810 = vmatprep.subr.bf16.mxu0 0
        %1811 = vmatpush1.bf16.msra.mxu0 0
        %1812 = vmatprep.subr.bf16.mxu0 0
        %1813 = vmatpush1.bf16.msra.mxu0 0
        %1814 = vmatprep.subr.bf16.mxu0 0
        %1815 = vmatpush1.bf16.msra.mxu0 0
        %1816 = vmatprep.subr.bf16.mxu0 0
        %1817 = vmatpush1.bf16.msra.mxu0 0
        %1818 = vmatprep.subr.bf16.mxu0 0
        %1819 = vmatpush1.bf16.msra.mxu0 0
        %1820 = vmatprep.mubr.bf16.mxu0 0
        %1821 = vmatmul.mubr.bf16.gmra.mrb[0].mxu0 %v1783
        %v1822 = vpop.f32.mrb[0].mxu0
        %v1823 = vadd.f32 0.0, %v1822
        %v1824 = vpop.f32.mrb[0].mxu0
        %v1825 = vpop.f32.mrb[0].mxu0
        %v1826 = vpop.f32.mrb[0].mxu0
        %1827 = vdwg.mxu0
        %v1828 = vadd.f32 %v1620, %v1823
        %v1829 = vld [vmem:[%s10] sm:$0x1]
        %v1831 = vlaneseq
        %v1832 = vshrl.u32 %v1831, 7
        %v1833 = vsub.s32 0, %v1832
        %v1834 = vrot.slane %v1829, %v1833
        %v1836 = vadd.f32 %v1828, %v1834
        %v1837 = vld [vmem:[%s5] sm:$0x1]
        %v1838 = vstv %s549
        %v1839 = vmul.f32 %v1838, %v1836
        %v1840 = vtanh.pop %v1839
        %v1842 = vlaneseq
        %v1843 = vshrl.u32 %v1842, 7
        %v1844 = vsub.s32 0, %v1843
        %v1845 = vrot.slane %v1837, %v1844
        %v1847 = vmul.f32 %v1845, %v1840
        %v1848 = vpack.c.bf16 %v1847, %v1847
        %v1849 = vld [vmem:[%s11] sm:$0xf]
        %v1850 = vld [vmem:[%s11 + $0x4] sm:$0xf]
        %v1851 = vld [vmem:[%s11 + $0x8] sm:$0xf]
        %v1852 = vld [vmem:[%s11 + $0xc] sm:$0xf]
        %v1853 = vld [vmem:[%s12] sm:$0x1]
        %v1855 = vlaneseq
        %v1856 = vshrl.u32 %v1855, 7
        %v1857 = vsub.s32 0, %v1856
        %v1858 = vrot.slane %v1853, %v1857
        %v1864 = vunpack.c.l.b16 %v1849
        %v1865 = vunpack.c.l.b16 %v1850
        %v1866 = vunpack.c.l.b16 %v1851
        %v1867 = vunpack.c.l.b16 %v1852
        %v1868 = vpack.c.b16 %v1865, %v1864
        %v1869 = vpack.c.b16 %v1867, %v1866
        %vm1872 = vcmask 261120
        %v1874 = vsel %vm1872, %v1848, 0
        %1876 = vmatprep.subr.bf16.mxu0 0
        %1877 = vmatpush1.bf16.msra.mxu0 %v1868
        %1878 = vmatprep.subr.bf16.mxu0 0
        %1879 = vmatpush1.bf16.msra.mxu0 %v1869
        %1880 = vmatprep.subr.bf16.mxu0 0
        %1881 = vmatpush1.bf16.msra.mxu0 0
        %1882 = vmatprep.subr.bf16.mxu0 0
        %1883 = vmatpush1.bf16.msra.mxu0 0
        %1884 = vmatprep.subr.bf16.mxu0 0
        %1885 = vmatpush1.bf16.msra.mxu0 0
        %1886 = vmatprep.subr.bf16.mxu0 0
        %1887 = vmatpush1.bf16.msra.mxu0 0
        %1888 = vmatprep.subr.bf16.mxu0 0
        %1889 = vmatpush1.bf16.msra.mxu0 0
        %1890 = vmatprep.subr.bf16.mxu0 0
        %1891 = vmatpush1.bf16.msra.mxu0 0
        %1892 = vmatprep.subr.bf16.mxu0 0
        %1893 = vmatpush1.bf16.msra.mxu0 0
        %1894 = vmatprep.subr.bf16.mxu0 0
        %1895 = vmatpush1.bf16.msra.mxu0 0
        %1896 = vmatprep.subr.bf16.mxu0 0
        %1897 = vmatpush1.bf16.msra.mxu0 0
        %1898 = vmatprep.subr.bf16.mxu0 0
        %1899 = vmatpush1.bf16.msra.mxu0 0
        %1900 = vmatprep.subr.bf16.mxu0 0
        %1901 = vmatpush1.bf16.msra.mxu0 0
        %1902 = vmatprep.subr.bf16.mxu0 0
        %1903 = vmatpush1.bf16.msra.mxu0 0
        %1904 = vmatprep.subr.bf16.mxu0 0
        %1905 = vmatpush1.bf16.msra.mxu0 0
        %1906 = vmatprep.subr.bf16.mxu0 0
        %1907 = vmatpush1.bf16.msra.mxu0 0
        %1908 = vmatprep.mubr.bf16.mxu0 0
        %1909 = vmatmul.mubr.bf16.gmra.mrb[0].mxu0 %v1874
        %v1910 = vpop.f32.mrb[0].mxu0
        %v1911 = vadd.f32 %v1858, %v1910
        %v1912 = vpop.f32.mrb[0].mxu0
        %v1913 = vpop.f32.mrb[0].mxu0
        %v1914 = vpop.f32.mrb[0].mxu0
        %1915 = vdwg.mxu0
        %v1916 = vmul.f32 %v1911, 0.5
        %v1917 = vmul.f32 %v1911, 0.70710677
        %v1918 = vmax.f32 %v1917, -4.0
        %v1919 = vmin.f32 %v1918, 4.0
        %v1920 = vmul.f32 %v1919, %v1919
        %v1921 = vmul.f32 %v1920, -2.7261424e-10
        %v1922 = vadd.f32 %v1921, 2.7706815e-08
        %v1923 = vmul.f32 %v1922, %v1920
        %v1924 = vadd.f32 %v1923, -2.101024e-06
        %v1925 = vmul.f32 %v1924, %v1920
        %v1926 = vadd.f32 %v1925, -5.6925062e-05
        %v1927 = vmul.f32 %v1926, %v1920
        %v1928 = vadd.f32 %v1927, -0.00073499064
        %v1929 = vmul.f32 %v1928, %v1920
        %v1930 = vadd.f32 %v1929, -0.0029546
        %v1931 = vmul.f32 %v1930, %v1920
        %v1932 = vadd.f32 %v1931, -0.016096033
        %v1933 = vmul.f32 %v1932, %v1919
        %v1934 = vmul.f32 %v1920, -1.45660715e-05
        %v1935 = vadd.f32 %v1934, -0.00021337405
        %v1936 = vmul.f32 %v1935, %v1920
        %v1937 = vadd.f32 %v1936, -0.001682827
        %v1938 = vmul.f32 %v1937, %v1920
        %v1939 = vadd.f32 %v1938, -0.0073733293
        %v1940 = vmul.f32 %v1939, %v1920
        %v1941 = vadd.f32 %v1940, -0.014264739
        %v1942 = vrcp.pop %v1941
        %v1943 = vmul.f32 %v1933, %v1942
        %v1944 = vadd.f32 %v1943, 1.0
        %v1945 = vmul.f32 %v1916, %v1944
        %v1946 = vpack.c.bf16 %v1945, %v1945
        %v1947 = vld [vmem:[%s13] sm:$0xf]
        %v1948 = vld [vmem:[%s13 + $0x4] sm:$0xf]
        %v1949 = vld [vmem:[%s13 + $0x8] sm:$0xf]
        %v1950 = vld [vmem:[%s13 + $0xc] sm:$0xf]
        %v1951 = vld [vmem:[%s13 + $0x10] sm:$0xf]
        %v1952 = vld [vmem:[%s13 + $0x14] sm:$0xf]
        %v1953 = vld [vmem:[%s13 + $0x18] sm:$0xf]
        %v1954 = vld [vmem:[%s13 + $0x1c] sm:$0xf]
        %v1955 = vld [vmem:[%s14] sm:$0x1]
        %v1957 = vlaneseq
        %v1958 = vshrl.u32 %v1957, 7
        %v1959 = vsub.s32 0, %v1958
        %v1960 = vrot.slane %v1955, %v1959
        %v1970 = vunpack.c.l.b16 %v1947
        %v1971 = vunpack.c.l.b16 %v1948
        %v1972 = vunpack.c.l.b16 %v1949
        %v1973 = vunpack.c.l.b16 %v1950
        %v1974 = vunpack.c.l.b16 %v1951
        %v1975 = vunpack.c.l.b16 %v1952
        %v1976 = vunpack.c.l.b16 %v1953
        %v1977 = vunpack.c.l.b16 %v1954
        %v1978 = vpack.c.b16 %v1971, %v1970
        %v1979 = vpack.c.b16 %v1973, %v1972
        %v1980 = vpack.c.b16 %v1975, %v1974
        %v1981 = vpack.c.b16 %v1977, %v1976
        %vm1986 = vcmask 523264
        %v1988 = vsel %vm1986, %v1946, 0
        %1990 = vmatprep.subr.bf16.mxu0 0
        %1991 = vmatpush1.bf16.msra.mxu0 %v1978
        %1992 = vmatprep.subr.bf16.mxu0 0
        %1993 = vmatpush1.bf16.msra.mxu0 %v1979
        %1994 = vmatprep.subr.bf16.mxu0 0
        %1995 = vmatpush1.bf16.msra.mxu0 %v1980
        %1996 = vmatprep.subr.bf16.mxu0 0
        %1997 = vmatpush1.bf16.msra.mxu0 %v1981
        %1998 = vmatprep.subr.bf16.mxu0 0
        %1999 = vmatpush1.bf16.msra.mxu0 0
        %2000 = vmatprep.subr.bf16.mxu0 0
        %2001 = vmatpush1.bf16.msra.mxu0 0
        %2002 = vmatprep.subr.bf16.mxu0 0
        %2003 = vmatpush1.bf16.msra.mxu0 0
        %2004 = vmatprep.subr.bf16.mxu0 0
        %2005 = vmatpush1.bf16.msra.mxu0 0
        %2006 = vmatprep.subr.bf16.mxu0 0
        %2007 = vmatpush1.bf16.msra.mxu0 0
        %2008 = vmatprep.subr.bf16.mxu0 0
        %2009 = vmatpush1.bf16.msra.mxu0 0
        %2010 = vmatprep.subr.bf16.mxu0 0
        %2011 = vmatpush1.bf16.msra.mxu0 0
        %2012 = vmatprep.subr.bf16.mxu0 0
        %2013 = vmatpush1.bf16.msra.mxu0 0
        %2014 = vmatprep.subr.bf16.mxu0 0
        %2015 = vmatpush1.bf16.msra.mxu0 0
        %2016 = vmatprep.subr.bf16.mxu0 0
        %2017 = vmatpush1.bf16.msra.mxu0 0
        %2018 = vmatprep.subr.bf16.mxu0 0
        %2019 = vmatpush1.bf16.msra.mxu0 0
        %2020 = vmatprep.subr.bf16.mxu0 0
        %2021 = vmatpush1.bf16.msra.mxu0 0
        %2022 = vmatprep.mubr.bf16.mxu0 0
        %2023 = vmatmul.mubr.bf16.gmra.mrb[0].mxu0 %v1988
        %v2024 = vpop.f32.mrb[0].mxu0
        %v2025 = vadd.f32 %v1960, %v2024
        %v2026 = vpop.f32.mrb[0].mxu0
        %v2027 = vpop.f32.mrb[0].mxu0
        %v2028 = vpop.f32.mrb[0].mxu0
        %2029 = vdwg.mxu0
        %v2030 = vadd.f32 %v1836, %v2025
        %2031 = vst.msk [vmem:[%s534] sm:$0xff] %vm1872, %v2030
        %s2032 = sand.u32 %s379, 1
        %s2033 = scalar_lea.sflag [#allocation5], %s2032
        %s2034 = sand.u32 %s379, 1
        %s2035 = smul.addr %s2034, 8
        %s2036 = scalar_lea.vmem [#allocation7], %s2035
        // Predicated region
        $region89: #{tpu_custom_call.1} parent=79 // pred_check
          %p2037 = pneg %p389
        $region90: #{tpu_custom_call.1} parent=79 // pred_check_branch
          %2039 = sbr.rel (%p2037) target = $region92
        $region91: #{tpu_custom_call.1} parent=79 // pred_region
          %s2041 = ssub.s32 128, 128
          %2042 = vsyncadd %s2033, %s2041
          %s2043 = sadd.s32 %s35, %s34
          %s2044 = smul.addr %s2043, 128
          %s2045 = scalar_lea.hbm %s15, %s2044
          %s2047 = sshll.u32 %s2036, 4
          %s2048 = int_to_ptr.vmem [resolvable:$true] %s2047
          %2050 = dma.vmem_to_hbm [thread:$0]  %s2048, 128, %s2045, %s2033
        $region92: #{tpu_custom_call.1} parent=79 // pred_fallthru
          _
      $region80: #{tpu_custom_call.1} parent=5 // pred_fallthru
        _
      %p2051 = scmp.le.s32.totalorder 2, %s25
      // Predicated region
      $region93: #{tpu_custom_call.1} parent=5 // pred_check
        %p2052 = pneg %p2051
      $region94: #{tpu_custom_call.1} parent=5 // pred_check_branch
        %2054 = sbr.rel (%p2052) target = $region96
      $region95: #{tpu_custom_call.1} parent=5 // pred_region
        %s2055 = ssub.s32 %s25, 2
        // Predicated region
        $region97: #{tpu_custom_call.1} parent=95 // pred_check
          %p2056 = pneg %p395
        $region98: #{tpu_custom_call.1} parent=95 // pred_check_branch
          %2058 = sbr.rel (%p2056) target = $region100
        $region99: #{tpu_custom_call.1} parent=95 // pred_region
          %s2059 = sand.u32 %s380, 1
          %s2060 = scalar_lea.sflag [#allocation5], %s2059
          %s2061 = sand.u32 %s380, 1
          %s2062 = smul.addr %s2061, 8
          %s2063 = scalar_lea.vmem [#allocation7], %s2062
          %2064 = dma.done %s2060, 128
        $region100: #{tpu_custom_call.1} parent=95 // pred_fallthru
          _
      $region96: #{tpu_custom_call.1} parent=5 // pred_fallthru
        _
    $region6: #{tpu_custom_call.1} parent=1 // loop_footer
      %s29 = sadd.s32 1, %s25
    $region7: #{tpu_custom_call.1} parent=1 // loop_footer_branch
      %24 = sbr.rel target = $region3
    $region8: #{tpu_custom_call.1} parent=1 // loop_exit
      _
    %2065 = vsyncpa [#allocation5], 1
    %s2066 = scalar_lea.sflag [#allocation5], 1
    %2067 = vsyncpa %s2066, 1
    %2068 = vsyncpa [#allocation6], 1
    %s2069 = scalar_lea.sflag [#allocation6], 1
    %2070 = vsyncpa %s2069, 1

</llo_original>
